<compile_context>
chip_gen: v6e
topology: v6e:2x2x1
jax: 0.10.0
libtpu: 0.0.40
codegen_flags: <defaults>
</compile_context>

<pallas_src>
import functools

import jax
import jax.numpy as jnp
from jax.experimental import pallas as pl
from jax.experimental.pallas import tpu as pltpu

_LANE = 128
_S_TILE_1X1 = 1024            # lane-tile target for the 1x1-conv matmuls


def _round_up(n, m):
    return ((n + m - 1) // m) * m


_VMEM_LIMIT_CACHE = None


def _vmem_limit_bytes():
    """Scoped-VMEM budget: ~3/4 of physical VMEM, capped at 96 MiB.
    v5e/v6e (128 MiB physical) -> 96 MiB; v7x (64 MiB) -> 48 MiB."""
    global _VMEM_LIMIT_CACHE
    if _VMEM_LIMIT_CACHE is None:
        try:
            cap = int(pltpu.get_tpu_info().vmem_capacity_bytes)
        except Exception:
            cap = 64 * 1024 * 1024
        _VMEM_LIMIT_CACHE = int(min(96 * 1024 * 1024, (cap * 3) // 4))
    return _VMEM_LIMIT_CACHE


# ----------------------------------------------------------------------------
# Generic 1x1 conv:   (Cout, K) @ (B, K, S)  with S on lanes, resident weight,
# no reduction grid axis (K is small for every 1x1 conv in this module).
# ----------------------------------------------------------------------------
def _mm1x1_kernel(w_ref, x_ref, o_ref, *, relu):
    y = jnp.dot(w_ref[...], x_ref[...], preferred_element_type=jnp.float32)
    if relu:
        y = jnp.maximum(y, 0.0)
    o_ref[...] = y.astype(o_ref.dtype)


def conv1x1(w, x, *, relu=False, out_dtype=jnp.float32):
    """w: (Cout, K) float; x: (B, K, S) float.  Returns (B, Cout, S) out_dtype.
    S is zero-padded to a lane-dense multiple of 128 (pad stripped on return);
    both operands hit the MXU as bf16, accumulation is f32."""
    cout, K = w.shape
    B, K2, S = x.shape
    assert K == K2
    s128 = _round_up(S, _LANE)
    if s128 <= _S_TILE_1X1:
        ts, s_pad = s128, s128
    else:
        ts, s_pad = _S_TILE_1X1, _round_up(S, _S_TILE_1X1)
    if s_pad != S:
        x = jnp.pad(x, ((0, 0), (0, 0), (0, s_pad - S)))
    x = x.astype(jnp.bfloat16)          # bf16 rhs in HBM (built by the pad anyway)
    w = w.astype(jnp.bfloat16)

    out = pl.pallas_call(
        functools.partial(_mm1x1_kernel, relu=relu),
        out_shape=jax.ShapeDtypeStruct((B, cout, s_pad), out_dtype),
        grid_spec=pltpu.PrefetchScalarGridSpec(
            num_scalar_prefetch=0,
            grid=(B, s_pad // ts),
            in_specs=[
                pl.BlockSpec((cout, K), lambda b, s: (0, 0)),      # resident weight
                pl.BlockSpec((None, K, ts), lambda b, s: (b, 0, s)),
            ],
            out_specs=pl.BlockSpec((None, cout, ts), lambda b, s: (b, 0, s)),
        ),
        compiler_params=pltpu.CompilerParams(
            dimension_semantics=("parallel", "parallel"),
            vmem_limit_bytes=_vmem_limit_bytes()),
        cost_estimate=pl.CostEstimate(
            flops=2 * B * cout * K * s_pad,
            transcendentals=0,
            bytes_accessed=int(w.size) * 2 + int(x.size) * 2
            + B * cout * s_pad * jnp.dtype(out_dtype).itemsize),
    )(w, x)
    return out[:, :, :S] if s_pad != S else out


# ----------------------------------------------------------------------------
# Fused FFC spatial kernel: 9-tap reflect 3x3 conv (l2l|g2l|l2g) + the
# SpectralTransform's final 1x1 conv, all accumulated into one output slab.
# The padded input is flattened to one lane axis so tap (ky,kx) is a static
# lane-offset window -- no im2col in HBM.
# ----------------------------------------------------------------------------
def _ffc_spatial_kernel(w_ref, xp_ref, spec_ref, o_ref, *, cin, c_spec, wp, sv):
    # Spectral-transform conv2 contribution (its rows are zero for out_xl).
    o_ref[...] = jnp.dot(w_ref[:, 9 * cin:9 * cin + c_spec], spec_ref[...],
                         preferred_element_type=jnp.float32)
    # 9-tap accumulation: flat offset d = ky*Wp + kx into the padded slab.
    for t in range(9):
        ky, kx = t // 3, t % 3
        d = ky * wp + kx
        o_ref[...] += jnp.dot(w_ref[:, t * cin:(t + 1) * cin],
                              xp_ref[:, d:d + sv],
                              preferred_element_type=jnp.float32)


def _ffc_spatial_fused(w_all, xp_flat, spec_rhs, *, cin, wp, sv_pad):
    B, _, sp_pad = xp_flat.shape
    cout = w_all.shape[0]
    c_spec = spec_rhs.shape[1]
    kernel = functools.partial(_ffc_spatial_kernel,
                               cin=cin, c_spec=c_spec, wp=wp, sv=sv_pad)
    return pl.pallas_call(
        kernel,
        out_shape=jax.ShapeDtypeStruct((B, cout, sv_pad), jnp.float32),
        grid_spec=pltpu.PrefetchScalarGridSpec(
            num_scalar_prefetch=0,
            grid=(B,),
            in_specs=[
                pl.BlockSpec((cout, w_all.shape[1]), lambda b: (0, 0)),   # resident
                pl.BlockSpec((None, cin, sp_pad), lambda b: (b, 0, 0)),
                pl.BlockSpec((None, c_spec, sv_pad), lambda b: (b, 0, 0)),
            ],
            out_specs=pl.BlockSpec((None, cout, sv_pad), lambda b: (b, 0, 0)),
        ),
        compiler_params=pltpu.CompilerParams(
            dimension_semantics=("parallel",),
            vmem_limit_bytes=_vmem_limit_bytes()),
        cost_estimate=pl.CostEstimate(
            flops=2 * B * cout * (9 * cin + c_spec) * sv_pad,
            transcendentals=0,
            bytes_accessed=int(w_all.size) * 2 + int(xp_flat.size) * 2
            + int(spec_rhs.size) * 2 + B * cout * sv_pad * 4),
    )(w_all, xp_flat, spec_rhs)


# ----------------------------------------------------------------------------
# FourierUnit / SpectralTransform (fft_norm='ortho', ffc3d=False, groups=1,
# no SE / pos-enc / spatial scaling, enable_lfu=True).
# ----------------------------------------------------------------------------
def _fu_pack_weight(w_oihw):
    """(2*out, 2*in, 1, 1) with (re,im) interleaved per channel -> (2*out, 2*in)
    matrix expecting [all-re | all-im] channel blocks on both sides, so the
    activation never needs the interleave shuffle."""
    o2, i2 = w_oihw.shape[0], w_oihw.shape[1]
    o, i = o2 // 2, i2 // 2
    w = w_oihw.reshape(o, 2, i, 2)            # (o, q, i, p)   q/p in {re, im}
    w = jnp.transpose(w, (1, 0, 3, 2))        # (q, o, p, i)
    return w.reshape(o2, i2)


def fourier_unit(x, w_conv):
    """x: (B, C, H, W) f32 -> (B, Cout, H, W) f32.
    rfft2 -> 1x1 conv(+ReLU) over (re,im) channels -> irfft2 (norm='ortho')."""
    B, C, H, W = x.shape
    ff = jnp.fft.rfft2(x, axes=(-2, -1), norm="ortho")        # (B, C, H, Wf) c64
    Wf = ff.shape[-1]
    S = H * Wf
    rhs = jnp.concatenate([ff.real, ff.imag], axis=1).reshape(B, 2 * C, S)
    wm = _fu_pack_weight(w_conv)                               # (2*Cout, 2*C)
    y = conv1x1(wm, rhs, relu=True)                            # (B, 2*Cout, S) f32
    cout = wm.shape[0] // 2
    y = y.reshape(B, 2, cout, H, Wf)
    comp = y[:, 0] + 1j * y[:, 1]
    out = jnp.fft.irfft2(comp, s=(H, W), axes=(-2, -1), norm="ortho")
    return out.astype(jnp.float32)


def spectral_transform_features(x_g, p):
    """SpectralTransform (stride=1, groups=1, enable_lfu=True) up to -- but not
    including -- its final 1x1 conv (that weight is folded into the fused FFC
    kernel).  Returns the pre-conv2 feature sum (B, out_cg//2, H, W) f32."""
    B, Cin, H, W = x_g.shape
    w1 = p["st_conv1_w"].reshape(p["st_conv1_w"].shape[0], Cin)
    x = conv1x1(w1, x_g.reshape(B, Cin, H * W), relu=True)     # (B, c, H*W)
    c = x.shape[1]
    x4 = x.reshape(B, c, H, W)

    out = fourier_unit(x4, p["st_fu_w"])                       # (B, c, H, W)

    # local fourier unit (LFU) branch
    xs = x4[:, : c // 4]
    xs = jnp.concatenate(jnp.split(xs, 2, axis=-2), axis=1)
    xs = jnp.concatenate(jnp.split(xs, 2, axis=-1), axis=1)    # (B, c, H/2, W/2)
    xs = fourier_unit(xs, p["st_lfu_w"])
    xs = jnp.tile(xs, (1, 1, 2, 2))                            # (B, c, H, W)

    return x4 + out + xs


# ----------------------------------------------------------------------------
# FFC forward.
# ----------------------------------------------------------------------------
def _pack_ffc_weight(params, in_cl, in_cg, out_cl, out_cg):
    """Pack convl2l / convg2l / convl2g (3x3, tap-major columns) and st_conv2
    (1x1) into one (out_cl+out_cg, 9*cin + c_spec) matrix."""
    cin = in_cl + in_cg
    w_local = jnp.concatenate([params["convl2l_w"], params["convg2l_w"]], axis=1)
    w_global = jnp.concatenate(
        [params["convl2g_w"],
         jnp.zeros((out_cg, in_cg, 3, 3), jnp.float32)], axis=1)
    w_sp = jnp.concatenate([w_local, w_global], axis=0)        # (Cout, cin, 3, 3)
    # tap-major: columns [t*cin:(t+1)*cin] hold w[:, :, ky, kx] with t = ky*3+kx
    w_sp = jnp.transpose(w_sp, (0, 2, 3, 1)).reshape(out_cl + out_cg, 9 * cin)

    c_spec = params["st_conv2_w"].shape[1]
    w_spec = jnp.concatenate(
        [jnp.zeros((out_cl, c_spec), jnp.float32),
         params["st_conv2_w"].reshape(out_cg, c_spec)], axis=0)
    return jnp.concatenate([w_sp, w_spec], axis=1)


def ffc_forward(x_l, x_g, params):
    """FFC forward: k=3, ratio_gin=ratio_gout=0.5, stride=1, reflect padding=1,
    groups=1, bias=False, gated=False (gates == 1), enable_lfu=True."""
    B, in_cl, H, W = x_l.shape
    in_cg = x_g.shape[1]
    out_cl = params["convl2l_w"].shape[0]
    out_cg = params["convl2g_w"].shape[0]
    cin = in_cl + in_cg
    hp, wp = H + 2, W + 2
    sv = H * wp                                   # padded-width flattened output grid
    sv_pad = _round_up(sv, _LANE)                 # lane-dense output columns
    sp_pad = _round_up(2 * wp + 2 + sv_pad, _LANE)  # every tap window stays in bounds

    # convg2g (SpectralTransform) features; its final conv is fused below.
    spec_feat = spectral_transform_features(x_g, params)        # (B, c_spec, H, W)
    c_spec = spec_feat.shape[1]
    spec_rhs = jnp.pad(spec_feat, ((0, 0), (0, 0), (0, 0), (0, 2)))   # width -> Wp
    spec_rhs = spec_rhs.reshape(B, c_spec, sv)
    spec_rhs = jnp.pad(spec_rhs, ((0, 0), (0, 0), (0, sv_pad - sv))).astype(jnp.bfloat16)

    # One reflect pad of the concatenated (x_l | x_g) input, flattened; zero
    # tail pad keeps tap windows in bounds and the lane width a multiple of 128.
    x_cat = jnp.concatenate([x_l, x_g], axis=1)                  # (B, cin, H, W)
    xp = jnp.pad(x_cat, ((0, 0), (0, 0), (1, 1), (1, 1)), mode="reflect")
    xp_flat = xp.reshape(B, cin, hp * wp)
    xp_flat = jnp.pad(
        xp_flat, ((0, 0), (0, 0), (0, sp_pad - hp * wp))).astype(jnp.bfloat16)

    w_all = _pack_ffc_weight(params, in_cl, in_cg, out_cl, out_cg).astype(jnp.bfloat16)

    out = _ffc_spatial_fused(w_all, xp_flat, spec_rhs, cin=cin, wp=wp, sv_pad=sv_pad)
    out = out[:, :, :sv].reshape(B, out_cl + out_cg, H, wp)[:, :, :, :W]
    return out[:, :out_cl], out[:, out_cl:]


# ----------------------------------------------------------------------------
# Pure-JAX reference (f32, HIGHEST precision) for a correctness self-check.
# ----------------------------------------------------------------------------
def _conv2d_ref(x, w, pad_reflect=False, relu=False):
    if pad_reflect:
        x = jnp.pad(x, ((0, 0), (0, 0), (1, 1), (1, 1)), mode="reflect")
    y = jax.lax.conv_general_dilated(
        x, w, window_strides=(1, 1), padding="VALID",
        dimension_numbers=("NCHW", "OIHW", "NCHW"),
        precision=jax.lax.Precision.HIGHEST)
    return jnp.maximum(y, 0.0) if relu else y


def _fourier_unit_ref(x, w):
    n, c, h, wd = x.shape
    ff = jnp.fft.rfft2(x, axes=(-2, -1), norm="ortho")
    ff = jnp.stack([ff.real, ff.imag], axis=-1)
    ff = jnp.transpose(ff, (0, 1, 4, 2, 3)).reshape(n, 2 * c, h, -1)
    ff = _conv2d_ref(ff, w, relu=True)
    co = ff.shape[1] // 2
    ff = ff.reshape(n, co, 2, h, -1)
    comp = ff[:, :, 0] + 1j * ff[:, :, 1]
    return jnp.fft.irfft2(comp, s=(h, wd), axes=(-2, -1), norm="ortho")


def _ffc_ref(x_l, x_g, p):
    x = _conv2d_ref(x_g, p["st_conv1_w"], relu=True)
    out = _fourier_unit_ref(x, p["st_fu_w"])
    n, c, h, wd = x.shape
    xs = x[:, : c // 4]
    xs = jnp.concatenate(jnp.split(xs, 2, axis=-2), axis=1)
    xs = jnp.concatenate(jnp.split(xs, 2, axis=-1), axis=1)
    xs = _fourier_unit_ref(xs, p["st_lfu_w"])
    xs = jnp.tile(xs, (1, 1, 2, 2))
    spec = _conv2d_ref(x + out + xs, p["st_conv2_w"])
    out_xl = (_conv2d_ref(x_l, p["convl2l_w"], pad_reflect=True)
              + _conv2d_ref(x_g, p["convg2l_w"], pad_reflect=True))
    out_xg = _conv2d_ref(x_l, p["convl2g_w"], pad_reflect=True) + spec
    return out_xl, out_xg


# ----------------------------------------------------------------------------
# Deterministic parameters / inputs and smoke test.
# ----------------------------------------------------------------------------
if __name__ == "__main__":
    key = jax.random.PRNGKey(0)
    ks = jax.random.split(key, 10)

    N, IN_CH, OUT_CH, H, W = 2, 16, 16, 16, 16
    ratio_gin = ratio_gout = 0.5
    in_cg = int(IN_CH * ratio_gin)
    in_cl = IN_CH - in_cg
    out_cg = int(OUT_CH * ratio_gout)
    out_cl = OUT_CH - out_cg

    def init(k, shape, scale=0.1):
        return scale * jax.random.normal(k, shape, dtype=jnp.float32)

    params = {
        # FFC cross convs: (Cout, Cin, 3, 3), bias=False
        "convl2l_w": init(ks[0], (out_cl, in_cl, 3, 3)),
        "convl2g_w": init(ks[1], (out_cg, in_cl, 3, 3)),
        "convg2l_w": init(ks[2], (out_cl, in_cg, 3, 3)),
        # SpectralTransform (convg2g)
        "st_conv1_w": init(ks[3], (out_cg // 2, in_cg, 1, 1)),
        "st_fu_w":    init(ks[4], (out_cg, out_cg, 1, 1)),   # FourierUnit conv
        "st_lfu_w":   init(ks[5], (out_cg, out_cg, 1, 1)),   # LFU FourierUnit conv
        "st_conv2_w": init(ks[6], (out_cg, out_cg // 2, 1, 1)),
    }

    x_l = jax.random.normal(ks[7], (N, in_cl, H, W), dtype=jnp.float32)
    x_g = jax.random.normal(ks[8], (N, in_cg, H, W), dtype=jnp.float32)

    fwd = jax.jit(ffc_forward)
    out_xl, out_xg = fwd(x_l, x_g, params)
    jax.block_until_ready((out_xl, out_xg))

    assert out_xl.shape == (N, out_cl, H, W)
    assert out_xg.shape == (N, out_cg, H, W)

    # Correctness self-check vs pure-JAX f32 reference (loose tolerance due to
    # bf16 MXU operands in the Pallas path; structural bugs would be O(1) off).
    ref_l, ref_g = jax.jit(_ffc_ref)(x_l, x_g, params)
    err = max(float(jnp.max(jnp.abs(out_xl - ref_l))),
              float(jnp.max(jnp.abs(out_xg - ref_g))))
    assert err < 0.1, f"max abs err vs reference: {err}"

    print("KERNEL_OK")
</pallas_src>

<mosaic_0001>
module attributes {stable_mosaic.version = 11 : i64} {
  func.func @_mm1x1_kernel(%arg0: i32, %arg1: i32, %arg2: memref<4x8xbf16, #tpu.memory_space<vmem>>, %arg3: memref<1x8x256xbf16, #tpu.memory_space<vmem>>, %arg4: memref<1x4x256xf32, #tpu.memory_space<vmem>>) attributes {dimension_semantics = [#tpu.dimension_semantics<parallel>, #tpu.dimension_semantics<parallel>], iteration_bounds = array<i64: 2, 1>, scalar_prefetch = 0 : i64, scratch_operands = 0 : i64, tpu.core_type = #tpu.core_type<tc>, window_params = [{pipeline_mode = #tpu.pipeline_mode<synchronous>, transform_indices = @transform_0, window_bounds = array<i64: 4, 8>}, {transform_indices = @transform_1, window_bounds = array<i64: 1, 8, 256>}, {transform_indices = @transform_2, window_bounds = array<i64: 1, 4, 256>}]} {
    %c0 = arith.constant 0 : index
    %c0_0 = arith.constant 0 : index
    %0 = vector.load %arg2[%c0, %c0_0] : memref<4x8xbf16, #tpu.memory_space<vmem>>, vector<4x8xbf16>
    %c0_1 = arith.constant 0 : index
    %c0_2 = arith.constant 0 : index
    %c0_3 = arith.constant 0 : index
    %1 = vector.load %arg3[%c0_1, %c0_2, %c0_3] : memref<1x8x256xbf16, #tpu.memory_space<vmem>>, vector<1x8x256xbf16>
    %2 = vector.shape_cast %1 : vector<1x8x256xbf16> to vector<8x256xbf16>
    %cst = arith.constant dense<0.000000e+00> : vector<4x256xf32>
    %3 = tpu.matmul %0, %2, %cst {dimension_numbers = #tpu.dot_dimension_numbers<[1], [0], [0], [1], [0, 0, 1, 1], [], []>} : vector<4x8xbf16>, vector<8x256xbf16>, vector<4x256xf32> -> vector<4x256xf32>
    %cst_4 = arith.constant 0.000000e+00 : f32
    %4 = vector.broadcast %cst_4 : f32 to vector<4x256xf32>
    %5 = arith.maximumf %3, %4 : vector<4x256xf32>
    %c0_5 = arith.constant 0 : index
    %c0_6 = arith.constant 0 : index
    %c0_7 = arith.constant 0 : index
    %6 = vector.load %arg4[%c0_5, %c0_6, %c0_7] : memref<1x4x256xf32, #tpu.memory_space<vmem>>, vector<1x4x256xf32>
    %7 = vector.shape_cast %6 : vector<1x4x256xf32> to vector<4x256xf32>
    %8 = vector.shape_cast %5 : vector<4x256xf32> to vector<1x4x256xf32>
    tpu.vector_store %arg4[%c0_5, %c0_6, %c0_7], %8 {strides = array<i32>} : memref<1x4x256xf32, #tpu.memory_space<vmem>>, vector<1x4x256xf32>,
    return
  }
  func.func @transform_0(%arg0: i32, %arg1: i32) -> (i32, i32) {
    %c0_i32 = arith.constant 0 : i32
    %c0_i32_0 = arith.constant 0 : i32
    %c0_i32_1 = arith.constant 0 : i32
    return %c0_i32, %c0_i32_0 : i32, i32
  }
  func.func @transform_1(%arg0: i32, %arg1: i32) -> (i32, i32, i32) {
    %c0_i32 = arith.constant 0 : i32
    %c0_i32_0 = arith.constant 0 : i32
    return %arg0, %c0_i32, %arg1 : i32, i32, i32
  }
  func.func @transform_2(%arg0: i32, %arg1: i32) -> (i32, i32, i32) {
    %c0_i32 = arith.constant 0 : i32
    %c0_i32_0 = arith.constant 0 : i32
    return %arg0, %c0_i32, %arg1 : i32, i32, i32
  }
}

module attributes {stable_mosaic.version = 11 : i64} {
  func.func @_mm1x1_kernel(%arg0: i32, %arg1: i32, %arg2: memref<8x8xbf16, #tpu.memory_space<vmem>>, %arg3: memref<1x8x256xbf16, #tpu.memory_space<vmem>>, %arg4: memref<1x8x256xf32, #tpu.memory_space<vmem>>) attributes {dimension_semantics = [#tpu.dimension_semantics<parallel>, #tpu.dimension_semantics<parallel>], iteration_bounds = array<i64: 2, 1>, scalar_prefetch = 0 : i64, scratch_operands = 0 : i64, tpu.core_type = #tpu.core_type<tc>, window_params = [{pipeline_mode = #tpu.pipeline_mode<synchronous>, transform_indices = @transform_0, window_bounds = array<i64: 8, 8>}, {transform_indices = @transform_1, window_bounds = array<i64: 1, 8, 256>}, {transform_indices = @transform_2, window_bounds = array<i64: 1, 8, 256>}]} {
    %c0 = arith.constant 0 : index
    %c0_0 = arith.constant 0 : index
    %0 = vector.load %arg2[%c0, %c0_0] : memref<8x8xbf16, #tpu.memory_space<vmem>>, vector<8x8xbf16>
    %c0_1 = arith.constant 0 : index
    %c0_2 = arith.constant 0 : index
    %c0_3 = arith.constant 0 : index
    %1 = vector.load %arg3[%c0_1, %c0_2, %c0_3] : memref<1x8x256xbf16, #tpu.memory_space<vmem>>, vector<1x8x256xbf16>
    %2 = vector.shape_cast %1 : vector<1x8x256xbf16> to vector<8x256xbf16>
    %cst = arith.constant dense<0.000000e+00> : vector<8x256xf32>
    %3 = tpu.matmul %0, %2, %cst {dimension_numbers = #tpu.dot_dimension_numbers<[1], [0], [0], [1], [0, 0, 1, 1], [], []>} : vector<8x8xbf16>, vector<8x256xbf16>, vector<8x256xf32> -> vector<8x256xf32>
    %cst_4 = arith.constant 0.000000e+00 : f32
    %4 = vector.broadcast %cst_4 : f32 to vector<8x256xf32>
    %5 = arith.maximumf %3, %4 : vector<8x256xf32>
    %c0_5 = arith.constant 0 : index
    %c0_6 = arith.constant 0 : index
    %c0_7 = arith.constant 0 : index
    %6 = vector.load %arg4[%c0_5, %c0_6, %c0_7] : memref<1x8x256xf32, #tpu.memory_space<vmem>>, vector<1x8x256xf32>
    %7 = vector.shape_cast %6 : vector<1x8x256xf32> to vector<8x256xf32>
    %8 = vector.shape_cast %5 : vector<8x256xf32> to vector<1x8x256xf32>
    tpu.vector_store %arg4[%c0_5, %c0_6, %c0_7], %8 {strides = array<i32>} : memref<1x8x256xf32, #tpu.memory_space<vmem>>, vector<1x8x256xf32>,
    return
  }
  func.func @transform_0(%arg0: i32, %arg1: i32) -> (i32, i32) {
    %c0_i32 = arith.constant 0 : i32
    %c0_i32_0 = arith.constant 0 : i32
    %c0_i32_1 = arith.constant 0 : i32
    return %c0_i32, %c0_i32_0 : i32, i32
  }
  func.func @transform_1(%arg0: i32, %arg1: i32) -> (i32, i32, i32) {
    %c0_i32 = arith.constant 0 : i32
    %c0_i32_0 = arith.constant 0 : i32
    return %arg0, %c0_i32, %arg1 : i32, i32, i32
  }
  func.func @transform_2(%arg0: i32, %arg1: i32) -> (i32, i32, i32) {
    %c0_i32 = arith.constant 0 : i32
    %c0_i32_0 = arith.constant 0 : i32
    return %arg0, %c0_i32, %arg1 : i32, i32, i32
  }
}

module attributes {stable_mosaic.version = 11 : i64} {
  func.func @_mm1x1_kernel(%arg0: i32, %arg1: i32, %arg2: memref<8x8xbf16, #tpu.memory_space<vmem>>, %arg3: memref<1x8x128xbf16, #tpu.memory_space<vmem>>, %arg4: memref<1x8x128xf32, #tpu.memory_space<vmem>>) attributes {dimension_semantics = [#tpu.dimension_semantics<parallel>, #tpu.dimension_semantics<parallel>], iteration_bounds = array<i64: 2, 1>, scalar_prefetch = 0 : i64, scratch_operands = 0 : i64, tpu.core_type = #tpu.core_type<tc>, window_params = [{pipeline_mode = #tpu.pipeline_mode<synchronous>, transform_indices = @transform_0, window_bounds = array<i64: 8, 8>}, {transform_indices = @transform_1, window_bounds = array<i64: 1, 8, 128>}, {transform_indices = @transform_2, window_bounds = array<i64: 1, 8, 128>}]} {
    %c0 = arith.constant 0 : index
    %c0_0 = arith.constant 0 : index
    %0 = vector.load %arg2[%c0, %c0_0] : memref<8x8xbf16, #tpu.memory_space<vmem>>, vector<8x8xbf16>
    %c0_1 = arith.constant 0 : index
    %c0_2 = arith.constant 0 : index
    %c0_3 = arith.constant 0 : index
    %1 = vector.load %arg3[%c0_1, %c0_2, %c0_3] : memref<1x8x128xbf16, #tpu.memory_space<vmem>>, vector<1x8x128xbf16>
    %2 = vector.shape_cast %1 : vector<1x8x128xbf16> to vector<8x128xbf16>
    %cst = arith.constant dense<0.000000e+00> : vector<8x128xf32>
    %3 = tpu.matmul %0, %2, %cst {dimension_numbers = #tpu.dot_dimension_numbers<[1], [0], [0], [1], [0, 0, 1, 1], [], []>} : vector<8x8xbf16>, vector<8x128xbf16>, vector<8x128xf32> -> vector<8x128xf32>
    %cst_4 = arith.constant 0.000000e+00 : f32
    %4 = vector.broadcast %cst_4 : f32 to vector<8x128xf32>
    %5 = arith.maximumf %3, %4 : vector<8x128xf32>
    %c0_5 = arith.constant 0 : index
    %c0_6 = arith.constant 0 : index
    %c0_7 = arith.constant 0 : index
    %6 = vector.load %arg4[%c0_5, %c0_6, %c0_7] : memref<1x8x128xf32, #tpu.memory_space<vmem>>, vector<1x8x128xf32>
    %7 = vector.shape_cast %6 : vector<1x8x128xf32> to vector<8x128xf32>
    %8 = vector.shape_cast %5 : vector<8x128xf32> to vector<1x8x128xf32>
    tpu.vector_store %arg4[%c0_5, %c0_6, %c0_7], %8 {strides = array<i32>} : memref<1x8x128xf32, #tpu.memory_space<vmem>>, vector<1x8x128xf32>,
    return
  }
  func.func @transform_0(%arg0: i32, %arg1: i32) -> (i32, i32) {
    %c0_i32 = arith.constant 0 : i32
    %c0_i32_0 = arith.constant 0 : i32
    %c0_i32_1 = arith.constant 0 : i32
    return %c0_i32, %c0_i32_0 : i32, i32
  }
  func.func @transform_1(%arg0: i32, %arg1: i32) -> (i32, i32, i32) {
    %c0_i32 = arith.constant 0 : i32
    %c0_i32_0 = arith.constant 0 : i32
    return %arg0, %c0_i32, %arg1 : i32, i32, i32
  }
  func.func @transform_2(%arg0: i32, %arg1: i32) -> (i32, i32, i32) {
    %c0_i32 = arith.constant 0 : i32
    %c0_i32_0 = arith.constant 0 : i32
    return %arg0, %c0_i32, %arg1 : i32, i32, i32
  }
}

module attributes {stable_mosaic.version = 11 : i64} {
  func.func @_ffc_spatial_kernel(%arg0: i32, %arg1: memref<16x148xbf16, #tpu.memory_space<vmem>>, %arg2: memref<1x16x512xbf16, #tpu.memory_space<vmem>>, %arg3: memref<1x4x384xbf16, #tpu.memory_space<vmem>>, %arg4: memref<1x16x384xf32, #tpu.memory_space<vmem>>) attributes {dimension_semantics = [#tpu.dimension_semantics<parallel>], iteration_bounds = array<i64: 2>, scalar_prefetch = 0 : i64, scratch_operands = 0 : i64, tpu.core_type = #tpu.core_type<tc>, window_params = [{pipeline_mode = #tpu.pipeline_mode<synchronous>, transform_indices = @transform_0, window_bounds = array<i64: 16, 148>}, {transform_indices = @transform_1, window_bounds = array<i64: 1, 16, 512>}, {transform_indices = @transform_2, window_bounds = array<i64: 1, 4, 384>}, {transform_indices = @transform_3, window_bounds = array<i64: 1, 16, 384>}]} {
    %c0 = arith.constant 0 : index
    %c144 = arith.constant 144 : index
    %0 = vector.load %arg1[%c0, %c144] : memref<16x148xbf16, #tpu.memory_space<vmem>>, vector<16x4xbf16>
    %c0_0 = arith.constant 0 : index
    %c0_1 = arith.constant 0 : index
    %c0_2 = arith.constant 0 : index
    %1 = vector.load %arg3[%c0_0, %c0_1, %c0_2] : memref<1x4x384xbf16, #tpu.memory_space<vmem>>, vector<1x4x384xbf16>
    %2 = vector.shape_cast %1 : vector<1x4x384xbf16> to vector<4x384xbf16>
    %cst = arith.constant dense<0.000000e+00> : vector<16x384xf32>
    %3 = tpu.matmul %0, %2, %cst {dimension_numbers = #tpu.dot_dimension_numbers<[1], [0], [0], [1], [0, 0, 1, 1], [], []>} : vector<16x4xbf16>, vector<4x384xbf16>, vector<16x384xf32> -> vector<16x384xf32>
    %c0_3 = arith.constant 0 : index
    %c0_4 = arith.constant 0 : index
    %c0_5 = arith.constant 0 : index
    %4 = vector.load %arg4[%c0_3, %c0_4, %c0_5] : memref<1x16x384xf32, #tpu.memory_space<vmem>>, vector<1x16x384xf32>
    %5 = vector.shape_cast %4 : vector<1x16x384xf32> to vector<16x384xf32>
    %6 = vector.shape_cast %3 : vector<16x384xf32> to vector<1x16x384xf32>
    tpu.vector_store %arg4[%c0_3, %c0_4, %c0_5], %6 {strides = array<i32>} : memref<1x16x384xf32, #tpu.memory_space<vmem>>, vector<1x16x384xf32>,
    %c0_6 = arith.constant 0 : index
    %c0_7 = arith.constant 0 : index
    %c0_8 = arith.constant 0 : index
    %7 = vector.load %arg4[%c0_6, %c0_7, %c0_8] : memref<1x16x384xf32, #tpu.memory_space<vmem>>, vector<1x16x384xf32>
    %8 = vector.shape_cast %7 : vector<1x16x384xf32> to vector<16x384xf32>
    %c0_9 = arith.constant 0 : index
    %c0_10 = arith.constant 0 : index
    %9 = vector.load %arg1[%c0_9, %c0_10] : memref<16x148xbf16, #tpu.memory_space<vmem>>, vector<16x16xbf16>
    %c0_11 = arith.constant 0 : index
    %c0_12 = arith.constant 0 : index
    %c0_13 = arith.constant 0 : index
    %10 = vector.load %arg2[%c0_11, %c0_12, %c0_13] : memref<1x16x512xbf16, #tpu.memory_space<vmem>>, vector<1x16x384xbf16>
    %11 = vector.shape_cast %10 : vector<1x16x384xbf16> to vector<16x384xbf16>
    %cst_14 = arith.constant dense<0.000000e+00> : vector<16x384xf32>
    %12 = tpu.matmul %9, %11, %cst_14 {dimension_numbers = #tpu.dot_dimension_numbers<[1], [0], [0], [1], [0, 0, 1, 1], [], []>} : vector<16x16xbf16>, vector<16x384xbf16>, vector<16x384xf32> -> vector<16x384xf32>
    %13 = arith.addf %8, %12 : vector<16x384xf32>
    %c0_15 = arith.constant 0 : index
    %c0_16 = arith.constant 0 : index
    %c0_17 = arith.constant 0 : index
    %14 = vector.load %arg4[%c0_15, %c0_16, %c0_17] : memref<1x16x384xf32, #tpu.memory_space<vmem>>, vector<1x16x384xf32>
    %15 = vector.shape_cast %14 : vector<1x16x384xf32> to vector<16x384xf32>
    %16 = vector.shape_cast %13 : vector<16x384xf32> to vector<1x16x384xf32>
    tpu.vector_store %arg4[%c0_15, %c0_16, %c0_17], %16 {strides = array<i32>} : memref<1x16x384xf32, #tpu.memory_space<vmem>>, vector<1x16x384xf32>,
    %c0_18 = arith.constant 0 : index
    %c0_19 = arith.constant 0 : index
    %c0_20 = arith.constant 0 : index
    %17 = vector.load %arg4[%c0_18, %c0_19, %c0_20] : memref<1x16x384xf32, #tpu.memory_space<vmem>>, vector<1x16x384xf32>
    %18 = vector.shape_cast %17 : vector<1x16x384xf32> to vector<16x384xf32>
    %c0_21 = arith.constant 0 : index
    %c16 = arith.constant 16 : index
    %19 = vector.load %arg1[%c0_21, %c16] : memref<16x148xbf16, #tpu.memory_space<vmem>>, vector<16x16xbf16>
    %c0_22 = arith.constant 0 : index
    %c0_23 = arith.constant 0 : index
    %c1 = arith.constant 1 : index
    %20 = vector.load %arg2[%c0_22, %c0_23, %c1] : memref<1x16x512xbf16, #tpu.memory_space<vmem>>, vector<1x16x384xbf16>
    %21 = vector.shape_cast %20 : vector<1x16x384xbf16> to vector<16x384xbf16>
    %cst_24 = arith.constant dense<0.000000e+00> : vector<16x384xf32>
    %22 = tpu.matmul %19, %21, %cst_24 {dimension_numbers = #tpu.dot_dimension_numbers<[1], [0], [0], [1], [0, 0, 1, 1], [], []>} : vector<16x16xbf16>, vector<16x384xbf16>, vector<16x384xf32> -> vector<16x384xf32>
    %23 = arith.addf %18, %22 : vector<16x384xf32>
    %c0_25 = arith.constant 0 : index
    %c0_26 = arith.constant 0 : index
    %c0_27 = arith.constant 0 : index
    %24 = vector.load %arg4[%c0_25, %c0_26, %c0_27] : memref<1x16x384xf32, #tpu.memory_space<vmem>>, vector<1x16x384xf32>
    %25 = vector.shape_cast %24 : vector<1x16x384xf32> to vector<16x384xf32>
    %26 = vector.shape_cast %23 : vector<16x384xf32> to vector<1x16x384xf32>
    tpu.vector_store %arg4[%c0_25, %c0_26, %c0_27], %26 {strides = array<i32>} : memref<1x16x384xf32, #tpu.memory_space<vmem>>, vector<1x16x384xf32>,
    %c0_28 = arith.constant 0 : index
    %c0_29 = arith.constant 0 : index
    %c0_30 = arith.constant 0 : index
    %27 = vector.load %arg4[%c0_28, %c0_29, %c0_30] : memref<1x16x384xf32, #tpu.memory_space<vmem>>, vector<1x16x384xf32>
    %28 = vector.shape_cast %27 : vector<1x16x384xf32> to vector<16x384xf32>
    %c0_31 = arith.constant 0 : index
    %c32 = arith.constant 32 : index
    %29 = vector.load %arg1[%c0_31, %c32] : memref<16x148xbf16, #tpu.memory_space<vmem>>, vector<16x16xbf16>
    %c0_32 = arith.constant 0 : index
    %c0_33 = arith.constant 0 : index
    %c2 = arith.constant 2 : index
    %30 = vector.load %arg2[%c0_32, %c0_33, %c2] : memref<1x16x512xbf16, #tpu.memory_space<vmem>>, vector<1x16x384xbf16>
    %31 = vector.shape_cast %30 : vector<1x16x384xbf16> to vector<16x384xbf16>
    %cst_34 = arith.constant dense<0.000000e+00> : vector<16x384xf32>
    %32 = tpu.matmul %29, %31, %cst_34 {dimension_numbers = #tpu.dot_dimension_numbers<[1], [0], [0], [1], [0, 0, 1, 1], [], []>} : vector<16x16xbf16>, vector<16x384xbf16>, vector<16x384xf32> -> vector<16x384xf32>
    %33 = arith.addf %28, %32 : vector<16x384xf32>
    %c0_35 = arith.constant 0 : index
    %c0_36 = arith.constant 0 : index
    %c0_37 = arith.constant 0 : index
    %34 = vector.load %arg4[%c0_35, %c0_36, %c0_37] : memref<1x16x384xf32, #tpu.memory_space<vmem>>, vector<1x16x384xf32>
    %35 = vector.shape_cast %34 : vector<1x16x384xf32> to vector<16x384xf32>
    %36 = vector.shape_cast %33 : vector<16x384xf32> to vector<1x16x384xf32>
    tpu.vector_store %arg4[%c0_35, %c0_36, %c0_37], %36 {strides = array<i32>} : memref<1x16x384xf32, #tpu.memory_space<vmem>>, vector<1x16x384xf32>,
    %c0_38 = arith.constant 0 : index
    %c0_39 = arith.constant 0 : index
    %c0_40 = arith.constant 0 : index
    %37 = vector.load %arg4[%c0_38, %c0_39, %c0_40] : memref<1x16x384xf32, #tpu.memory_space<vmem>>, vector<1x16x384xf32>
    %38 = vector.shape_cast %37 : vector<1x16x384xf32> to vector<16x384xf32>
    %c0_41 = arith.constant 0 : index
    %c48 = arith.constant 48 : index
    %39 = vector.load %arg1[%c0_41, %c48] : memref<16x148xbf16, #tpu.memory_space<vmem>>, vector<16x16xbf16>
    %c0_42 = arith.constant 0 : index
    %c0_43 = arith.constant 0 : index
    %c18 = arith.constant 18 : index
    %40 = vector.load %arg2[%c0_42, %c0_43, %c18] : memref<1x16x512xbf16, #tpu.memory_space<vmem>>, vector<1x16x384xbf16>
    %41 = vector.shape_cast %40 : vector<1x16x384xbf16> to vector<16x384xbf16>
    %cst_44 = arith.constant dense<0.000000e+00> : vector<16x384xf32>
    %42 = tpu.matmul %39, %41, %cst_44 {dimension_numbers = #tpu.dot_dimension_numbers<[1], [0], [0], [1], [0, 0, 1, 1], [], []>} : vector<16x16xbf16>, vector<16x384xbf16>, vector<16x384xf32> -> vector<16x384xf32>
    %43 = arith.addf %38, %42 : vector<16x384xf32>
    %c0_45 = arith.constant 0 : index
    %c0_46 = arith.constant 0 : index
    %c0_47 = arith.constant 0 : index
    %44 = vector.load %arg4[%c0_45, %c0_46, %c0_47] : memref<1x16x384xf32, #tpu.memory_space<vmem>>, vector<1x16x384xf32>
    %45 = vector.shape_cast %44 : vector<1x16x384xf32> to vector<16x384xf32>
    %46 = vector.shape_cast %43 : vector<16x384xf32> to vector<1x16x384xf32>
    tpu.vector_store %arg4[%c0_45, %c0_46, %c0_47], %46 {strides = array<i32>} : memref<1x16x384xf32, #tpu.memory_space<vmem>>, vector<1x16x384xf32>,
    %c0_48 = arith.constant 0 : index
    %c0_49 = arith.constant 0 : index
    %c0_50 = arith.constant 0 : index
    %47 = vector.load %arg4[%c0_48, %c0_49, %c0_50] : memref<1x16x384xf32, #tpu.memory_space<vmem>>, vector<1x16x384xf32>
    %48 = vector.shape_cast %47 : vector<1x16x384xf32> to vector<16x384xf32>
    %c0_51 = arith.constant 0 : index
    %c64 = arith.constant 64 : index
    %49 = vector.load %arg1[%c0_51, %c64] : memref<16x148xbf16, #tpu.memory_space<vmem>>, vector<16x16xbf16>
    %c0_52 = arith.constant 0 : index
    %c0_53 = arith.constant 0 : index
    %c19 = arith.constant 19 : index
    %50 = vector.load %arg2[%c0_52, %c0_53, %c19] : memref<1x16x512xbf16, #tpu.memory_space<vmem>>, vector<1x16x384xbf16>
    %51 = vector.shape_cast %50 : vector<1x16x384xbf16> to vector<16x384xbf16>
    %cst_54 = arith.constant dense<0.000000e+00> : vector<16x384xf32>
    %52 = tpu.matmul %49, %51, %cst_54 {dimension_numbers = #tpu.dot_dimension_numbers<[1], [0], [0], [1], [0, 0, 1, 1], [], []>} : vector<16x16xbf16>, vector<16x384xbf16>, vector<16x384xf32> -> vector<16x384xf32>
    %53 = arith.addf %48, %52 : vector<16x384xf32>
    %c0_55 = arith.constant 0 : index
    %c0_56 = arith.constant 0 : index
    %c0_57 = arith.constant 0 : index
    %54 = vector.load %arg4[%c0_55, %c0_56, %c0_57] : memref<1x16x384xf32, #tpu.memory_space<vmem>>, vector<1x16x384xf32>
    %55 = vector.shape_cast %54 : vector<1x16x384xf32> to vector<16x384xf32>
    %56 = vector.shape_cast %53 : vector<16x384xf32> to vector<1x16x384xf32>
    tpu.vector_store %arg4[%c0_55, %c0_56, %c0_57], %56 {strides = array<i32>} : memref<1x16x384xf32, #tpu.memory_space<vmem>>, vector<1x16x384xf32>,
    %c0_58 = arith.constant 0 : index
    %c0_59 = arith.constant 0 : index
    %c0_60 = arith.constant 0 : index
    %57 = vector.load %arg4[%c0_58, %c0_59, %c0_60] : memref<1x16x384xf32, #tpu.memory_space<vmem>>, vector<1x16x384xf32>
    %58 = vector.shape_cast %57 : vector<1x16x384xf32> to vector<16x384xf32>
    %c0_61 = arith.constant 0 : index
    %c80 = arith.constant 80 : index
    %59 = vector.load %arg1[%c0_61, %c80] : memref<16x148xbf16, #tpu.memory_space<vmem>>, vector<16x16xbf16>
    %c0_62 = arith.constant 0 : index
    %c0_63 = arith.constant 0 : index
    %c20 = arith.constant 20 : index
    %60 = vector.load %arg2[%c0_62, %c0_63, %c20] : memref<1x16x512xbf16, #tpu.memory_space<vmem>>, vector<1x16x384xbf16>
    %61 = vector.shape_cast %60 : vector<1x16x384xbf16> to vector<16x384xbf16>
    %cst_64 = arith.constant dense<0.000000e+00> : vector<16x384xf32>
    %62 = tpu.matmul %59, %61, %cst_64 {dimension_numbers = #tpu.dot_dimension_numbers<[1], [0], [0], [1], [0, 0, 1, 1], [], []>} : vector<16x16xbf16>, vector<16x384xbf16>, vector<16x384xf32> -> vector<16x384xf32>
    %63 = arith.addf %58, %62 : vector<16x384xf32>
    %c0_65 = arith.constant 0 : index
    %c0_66 = arith.constant 0 : index
    %c0_67 = arith.constant 0 : index
    %64 = vector.load %arg4[%c0_65, %c0_66, %c0_67] : memref<1x16x384xf32, #tpu.memory_space<vmem>>, vector<1x16x384xf32>
    %65 = vector.shape_cast %64 : vector<1x16x384xf32> to vector<16x384xf32>
    %66 = vector.shape_cast %63 : vector<16x384xf32> to vector<1x16x384xf32>
    tpu.vector_store %arg4[%c0_65, %c0_66, %c0_67], %66 {strides = array<i32>} : memref<1x16x384xf32, #tpu.memory_space<vmem>>, vector<1x16x384xf32>,
    %c0_68 = arith.constant 0 : index
    %c0_69 = arith.constant 0 : index
    %c0_70 = arith.constant 0 : index
    %67 = vector.load %arg4[%c0_68, %c0_69, %c0_70] : memref<1x16x384xf32, #tpu.memory_space<vmem>>, vector<1x16x384xf32>
    %68 = vector.shape_cast %67 : vector<1x16x384xf32> to vector<16x384xf32>
    %c0_71 = arith.constant 0 : index
    %c96 = arith.constant 96 : index
    %69 = vector.load %arg1[%c0_71, %c96] : memref<16x148xbf16, #tpu.memory_space<vmem>>, vector<16x16xbf16>
    %c0_72 = arith.constant 0 : index
    %c0_73 = arith.constant 0 : index
    %c36 = arith.constant 36 : index
    %70 = vector.load %arg2[%c0_72, %c0_73, %c36] : memref<1x16x512xbf16, #tpu.memory_space<vmem>>, vector<1x16x384xbf16>
    %71 = vector.shape_cast %70 : vector<1x16x384xbf16> to vector<16x384xbf16>
    %cst_74 = arith.constant dense<0.000000e+00> : vector<16x384xf32>
    %72 = tpu.matmul %69, %71, %cst_74 {dimension_numbers = #tpu.dot_dimension_numbers<[1], [0], [0], [1], [0, 0, 1, 1], [], []>} : vector<16x16xbf16>, vector<16x384xbf16>, vector<16x384xf32> -> vector<16x384xf32>
    %73 = arith.addf %68, %72 : vector<16x384xf32>
    %c0_75 = arith.constant 0 : index
    %c0_76 = arith.constant 0 : index
    %c0_77 = arith.constant 0 : index
    %74 = vector.load %arg4[%c0_75, %c0_76, %c0_77] : memref<1x16x384xf32, #tpu.memory_space<vmem>>, vector<1x16x384xf32>
    %75 = vector.shape_cast %74 : vector<1x16x384xf32> to vector<16x384xf32>
    %76 = vector.shape_cast %73 : vector<16x384xf32> to vector<1x16x384xf32>
    tpu.vector_store %arg4[%c0_75, %c0_76, %c0_77], %76 {strides = array<i32>} : memref<1x16x384xf32, #tpu.memory_space<vmem>>, vector<1x16x384xf32>,
    %c0_78 = arith.constant 0 : index
    %c0_79 = arith.constant 0 : index
    %c0_80 = arith.constant 0 : index
    %77 = vector.load %arg4[%c0_78, %c0_79, %c0_80] : memref<1x16x384xf32, #tpu.memory_space<vmem>>, vector<1x16x384xf32>
    %78 = vector.shape_cast %77 : vector<1x16x384xf32> to vector<16x384xf32>
    %c0_81 = arith.constant 0 : index
    %c112 = arith.constant 112 : index
    %79 = vector.load %arg1[%c0_81, %c112] : memref<16x148xbf16, #tpu.memory_space<vmem>>, vector<16x16xbf16>
    %c0_82 = arith.constant 0 : index
    %c0_83 = arith.constant 0 : index
    %c37 = arith.constant 37 : index
    %80 = vector.load %arg2[%c0_82, %c0_83, %c37] : memref<1x16x512xbf16, #tpu.memory_space<vmem>>, vector<1x16x384xbf16>
    %81 = vector.shape_cast %80 : vector<1x16x384xbf16> to vector<16x384xbf16>
    %cst_84 = arith.constant dense<0.000000e+00> : vector<16x384xf32>
    %82 = tpu.matmul %79, %81, %cst_84 {dimension_numbers = #tpu.dot_dimension_numbers<[1], [0], [0], [1], [0, 0, 1, 1], [], []>} : vector<16x16xbf16>, vector<16x384xbf16>, vector<16x384xf32> -> vector<16x384xf32>
    %83 = arith.addf %78, %82 : vector<16x384xf32>
    %c0_85 = arith.constant 0 : index
    %c0_86 = arith.constant 0 : index
    %c0_87 = arith.constant 0 : index
    %84 = vector.load %arg4[%c0_85, %c0_86, %c0_87] : memref<1x16x384xf32, #tpu.memory_space<vmem>>, vector<1x16x384xf32>
    %85 = vector.shape_cast %84 : vector<1x16x384xf32> to vector<16x384xf32>
    %86 = vector.shape_cast %83 : vector<16x384xf32> to vector<1x16x384xf32>
    tpu.vector_store %arg4[%c0_85, %c0_86, %c0_87], %86 {strides = array<i32>} : memref<1x16x384xf32, #tpu.memory_space<vmem>>, vector<1x16x384xf32>,
    %c0_88 = arith.constant 0 : index
    %c0_89 = arith.constant 0 : index
    %c0_90 = arith.constant 0 : index
    %87 = vector.load %arg4[%c0_88, %c0_89, %c0_90] : memref<1x16x384xf32, #tpu.memory_space<vmem>>, vector<1x16x384xf32>
    %88 = vector.shape_cast %87 : vector<1x16x384xf32> to vector<16x384xf32>
    %c0_91 = arith.constant 0 : index
    %c128 = arith.constant 128 : index
    %89 = vector.load %arg1[%c0_91, %c128] : memref<16x148xbf16, #tpu.memory_space<vmem>>, vector<16x16xbf16>
    %c0_92 = arith.constant 0 : index
    %c0_93 = arith.constant 0 : index
    %c38 = arith.constant 38 : index
    %90 = vector.load %arg2[%c0_92, %c0_93, %c38] : memref<1x16x512xbf16, #tpu.memory_space<vmem>>, vector<1x16x384xbf16>
    %91 = vector.shape_cast %90 : vector<1x16x384xbf16> to vector<16x384xbf16>
    %cst_94 = arith.constant dense<0.000000e+00> : vector<16x384xf32>
    %92 = tpu.matmul %89, %91, %cst_94 {dimension_numbers = #tpu.dot_dimension_numbers<[1], [0], [0], [1], [0, 0, 1, 1], [], []>} : vector<16x16xbf16>, vector<16x384xbf16>, vector<16x384xf32> -> vector<16x384xf32>
    %93 = arith.addf %88, %92 : vector<16x384xf32>
    %c0_95 = arith.constant 0 : index
    %c0_96 = arith.constant 0 : index
    %c0_97 = arith.constant 0 : index
    %94 = vector.load %arg4[%c0_95, %c0_96, %c0_97] : memref<1x16x384xf32, #tpu.memory_space<vmem>>, vector<1x16x384xf32>
    %95 = vector.shape_cast %94 : vector<1x16x384xf32> to vector<16x384xf32>
    %96 = vector.shape_cast %93 : vector<16x384xf32> to vector<1x16x384xf32>
    tpu.vector_store %arg4[%c0_95, %c0_96, %c0_97], %96 {strides = array<i32>} : memref<1x16x384xf32, #tpu.memory_space<vmem>>, vector<1x16x384xf32>,
    return
  }
  func.func @transform_0(%arg0: i32) -> (i32, i32) {
    %c0_i32 = arith.constant 0 : i32
    %c0_i32_0 = arith.constant 0 : i32
    %c0_i32_1 = arith.constant 0 : i32
    return %c0_i32, %c0_i32_0 : i32, i32
  }
  func.func @transform_1(%arg0: i32) -> (i32, i32, i32) {
    %c0_i32 = arith.constant 0 : i32
    %c0_i32_0 = arith.constant 0 : i32
    %c0_i32_1 = arith.constant 0 : i32
    return %arg0, %c0_i32, %c0_i32_0 : i32, i32, i32
  }
  func.func @transform_2(%arg0: i32) -> (i32, i32, i32) {
    %c0_i32 = arith.constant 0 : i32
    %c0_i32_0 = arith.constant 0 : i32
    %c0_i32_1 = arith.constant 0 : i32
    return %arg0, %c0_i32, %c0_i32_0 : i32, i32, i32
  }
  func.func @transform_3(%arg0: i32) -> (i32, i32, i32) {
    %c0_i32 = arith.constant 0 : i32
    %c0_i32_0 = arith.constant 0 : i32
    %c0_i32_1 = arith.constant 0 : i32
    return %arg0, %c0_i32, %c0_i32_0 : i32, i32, i32
  }
}

</mosaic_0001>

<llo_original>
// kernel: ffc_forward.4
$region0: #{ffc_forward.4}
  #allocation0 [shape = 'u32[]', space=smem, size = 0x4, offset = 0x4, fixed_abs, tag = 'smem constant byte address 0x4 - core index']
  #allocation1 [shape = 'u32[144,128]{1,0:T(1,128)}', space=vmem, size = 0x12000, scoped, tag = 'internal scratch']
  %s0 = inlined_call_operand.vmem [shape: bf16[4,8], index: 0, kind: input, shape index: {}]
  %s1 = inlined_call_operand.vmem [shape: bf16[2,8,256], index: 1, kind: input, shape index: {}]
  %s2 = inlined_call_operand.vmem [shape: f32[2,4,256], index: 2, kind: output, shape index: {}]
  %s3 = sld [smem:[#allocation0]]
  $region41: #{ffc_forward.4} parent=0
    _
  %s5 = ssub.s32 1, %s3
  %s6 = scalar_select 0, %s5, %s3
  loop: start=0, step=1, limit=4
  $region2: #{ffc_forward.4} parent=0 // loop_pre_header
    _
  $region3: #{ffc_forward.4} parent=0 // loop_header
    %s8 = sphi 0, %s12
    %p9 = scmp.ge.s32.totalorder %s8, 4
    %s15 = sphi 0, %s27
    %s16 = sphi 0, %s23
    %s17 = sphi 0, %s15
    %s18 = sphi 0, %s16
    %s19 = sphi 0, %s17
    %s20 = sphi 0, %s18
    %s28 = sphi 0, %s28
    %s30 = sphi 0, %s28
    %s31 = sphi 0, %s30
    %s45 = sphi 0, %s31
    %s53 = sphi 0, %s55
    %s56 = sphi 0, %s53
    %s57 = sphi 0, %s56
    %s73 = sphi 0, %s57
    %s81 = sphi 0, %s83
    %s84 = sphi 0, %s81
    %s85 = sphi 0, %s84
    %s101 = sphi 0, %s85
  $region4: #{ffc_forward.4} parent=0 // loop_header_branch
    %11 = sbr.rel (%p9) target = $region8
  $region5: #{ffc_forward.4} parent=0 // loop_body
    %s13 = ssub.s32 %s8, 1
    %s14 = ssub.s32 %s8, 2
    %s21 = sadd.s32 1, %s16
    %p22 = scmp.ge.s32.totalorder %s21, 1
    %s23 = scalar_select %p22, 0, %s21
    %s24 = sadd.s32 1, %s15
    %s25 = scalar_select %p22, %s24, %s15
    %p26 = scmp.ge.s32.totalorder %s25, 2
    %s27 = scalar_select %p26, 0, %s25
    %s29 = sadd.s32 %s28, 1
    %p32 = scmp.eq.s32.totalorder %s8, 1
    %p33 = scmp.ne.s32.totalorder %s28, %s30
    %p34 = scmp.eq.s32.totalorder %s8, 0
    %p35 = por %p33, %p34
    %p36 = scmp.ne.s32.totalorder %s28, %s30
    %p37 = scmp.eq.s32.totalorder %s13, 1
    %p38 = por %p36, %p37
    %p39 = scmp.ne.s32.totalorder %s30, %s31
    %p40 = scmp.eq.s32.totalorder %s13, 0
    %p41 = por %p39, %p40
    %p42 = scmp.ne.s32.totalorder %s30, %s31
    %p43 = scmp.eq.s32.totalorder %s14, 1
    %p44 = por %p42, %p43
    %p46 = scmp.ne.s32.totalorder %s31, %s45
    %p47 = scmp.eq.s32.totalorder %s14, 0
    %p48 = por %p46, %p47
    %s49 = ssub.s32 %s15, %s27
    %s50 = ssub.s32 %s16, %s23
    %s51 = sor.u32 %s49, %s50
    %p52 = scmp.eq.s32.totalorder %s51, 0
    %s54 = sadd.s32 %s53, 1
    %s55 = scalar_select %p52, %s53, %s54
    %p58 = pneg %p52
    %p59 = scmp.eq.s32.totalorder %s8, 1
    %p60 = por %p58, %p59
    %p61 = scmp.ne.s32.totalorder %s53, %s56
    %p62 = scmp.eq.s32.totalorder %s8, 0
    %p63 = por %p61, %p62
    %p64 = scmp.ne.s32.totalorder %s53, %s56
    %p65 = scmp.eq.s32.totalorder %s13, 1
    %p66 = por %p64, %p65
    %p67 = scmp.ne.s32.totalorder %s56, %s57
    %p68 = scmp.eq.s32.totalorder %s13, 0
    %p69 = por %p67, %p68
    %p70 = scmp.ne.s32.totalorder %s56, %s57
    %p71 = scmp.eq.s32.totalorder %s14, 1
    %p72 = por %p70, %p71
    %p74 = scmp.ne.s32.totalorder %s57, %s73
    %p75 = scmp.eq.s32.totalorder %s14, 0
    %p76 = por %p74, %p75
    %s77 = ssub.s32 %s15, %s27
    %s78 = ssub.s32 %s16, %s23
    %s79 = sor.u32 %s77, %s78
    %p80 = scmp.eq.s32.totalorder %s79, 0
    %s82 = sadd.s32 %s81, 1
    %s83 = scalar_select %p80, %s81, %s82
    %p86 = pneg %p80
    %p87 = scmp.eq.s32.totalorder %s8, 1
    %p88 = por %p86, %p87
    %p89 = scmp.ne.s32.totalorder %s81, %s84
    %p90 = scmp.eq.s32.totalorder %s8, 0
    %p91 = por %p89, %p90
    %p92 = scmp.ne.s32.totalorder %s81, %s84
    %p93 = scmp.eq.s32.totalorder %s13, 1
    %p94 = por %p92, %p93
    %p95 = scmp.ne.s32.totalorder %s84, %s85
    %p96 = scmp.eq.s32.totalorder %s13, 0
    %p97 = por %p95, %p96
    %p98 = scmp.ne.s32.totalorder %s84, %s85
    %p99 = scmp.eq.s32.totalorder %s14, 1
    %p100 = por %p98, %p99
    %p102 = scmp.ne.s32.totalorder %s85, %s101
    %p103 = scmp.eq.s32.totalorder %s14, 0
    %p104 = por %p102, %p103
    %p105 = scmp.le.s32.totalorder 1, %s8
    %p106 = scmp.lt.s32.totalorder %s8, 3
    %p107 = pnand %p105, %p106
    %p108 = pneg %p107
    // Predicated region
    $region9: #{ffc_forward.4} parent=5 // pred_check
      _
    $region10: #{ffc_forward.4} parent=5 // pred_check_branch
      %110 = sbr.rel (%p107) target = $region12
    $region11: #{ffc_forward.4} parent=5 // pred_region
      %s111 = ssub.s32 %s8, 1
      // Predicated region
      $region13: #{ffc_forward.4} parent=11 // pred_check
        %p112 = pneg %p41
      $region14: #{ffc_forward.4} parent=11 // pred_check_branch
        %114 = sbr.rel (%p112) target = $region16
      $region15: #{ffc_forward.4} parent=11 // pred_region
        _
      $region16: #{ffc_forward.4} parent=11 // pred_fallthru
        _
    $region12: #{ffc_forward.4} parent=5 // pred_fallthru
      _
    %p115 = scmp.lt.s32.totalorder %s8, 2
    // Predicated region
    $region17: #{ffc_forward.4} parent=5 // pred_check
      %p116 = pneg %p115
    $region18: #{ffc_forward.4} parent=5 // pred_check_branch
      %118 = sbr.rel (%p116) target = $region20
    $region19: #{ffc_forward.4} parent=5 // pred_region
      // Predicated region
      $region21: #{ffc_forward.4} parent=19 // pred_check
        %p119 = pneg %p63
      $region22: #{ffc_forward.4} parent=19 // pred_check_branch
        %121 = sbr.rel (%p119) target = $region24
      $region23: #{ffc_forward.4} parent=19 // pred_region
        %s122 = smul.u32 2, %s16
        %p123 = scmp.lt.s32.totalorder %s15, 1
        %s124 = scalar_select %p123, %s15, 1
        %p125 = scmp.lt.s32.totalorder %s122, 1
        %s126 = scalar_select %p125, %s122, 1
        %s127 = smul.addr %s124, 2
        %s128 = sadd.s32 %s126, %s127
        %s129 = smul.addr %s128, 4
        %s130 = scalar_lea.vmem %s1, %s129
        %s131 = smul.u32 2, %s16
      $region24: #{ffc_forward.4} parent=19 // pred_fallthru
        _
    $region20: #{ffc_forward.4} parent=5 // pred_fallthru
      _
    %p132 = scmp.le.s32.totalorder 1, %s8
    %p133 = scmp.lt.s32.totalorder %s8, 3
    %p134 = pnand %p132, %p133
    %p135 = pneg %p134
    // Predicated region
    $region25: #{ffc_forward.4} parent=5 // pred_check
      _
    $region26: #{ffc_forward.4} parent=5 // pred_check_branch
      %137 = sbr.rel (%p134) target = $region28
    $region27: #{ffc_forward.4} parent=5 // pred_region
      %s138 = ssub.s32 %s8, 1
      %p139 = pneg %p41
      %p140 = pneg %p38
      %s141 = smul.u32 2, %s18
      %p142 = scmp.lt.s32.totalorder %s17, 1
      %s143 = scalar_select %p142, %s17, 1
      %p144 = scmp.lt.s32.totalorder %s141, 1
      %s145 = scalar_select %p144, %s141, 1
      %s146 = smul.addr %s143, 2
      %s147 = sadd.s32 %s145, %s146
      %s148 = smul.addr %s147, 4
      %s149 = scalar_lea.vmem %s1, %s148
      %p150 = pneg %p69
      %p151 = pneg %p66
      %p152 = pneg %p97
      %p153 = pneg %p94
      %s154 = smul.u32 2, %s18
      %p155 = scmp.lt.s32.totalorder %s17, 1
      %s156 = scalar_select %p155, %s17, 1
      %p157 = scmp.lt.s32.totalorder %s154, 1
      %s158 = scalar_select %p157, %s154, 1
      %s159 = smul.addr %s156, 2
      %s160 = sadd.s32 %s158, %s159
      %s161 = smul.addr %s160, 4
      %s162 = scalar_lea.vmem %s2, %s161
      %s163 = smul.u32 2, %s18
      %p164 = scmp.lt.s32.totalorder %s17, 1
      %s165 = scalar_select %p164, %s17, 1
      %p166 = scmp.lt.s32.totalorder %s163, 1
      %s167 = scalar_select %p166, %s163, 1
      %s168 = smul.addr %s165, 2
      %s169 = sadd.s32 %s167, %s168
      %s170 = smul.addr %s169, 4
      %s171 = scalar_lea.vmem %s1, %s170
      %s172 = smul.u32 2, %s18
      %s173 = smul.u32 2, %s18
      %p174 = scmp.lt.s32.totalorder %s17, 1
      %s175 = scalar_select %p174, %s17, 1
      %p176 = scmp.lt.s32.totalorder %s173, 1
      %s177 = scalar_select %p176, %s173, 1
      %s178 = smul.addr %s175, 2
      %s179 = sadd.s32 %s177, %s178
      %s180 = smul.addr %s179, 4
      %s181 = scalar_lea.vmem %s2, %s180
      %s182 = smul.u32 2, %s18
      %v184 = vld [vmem:[%s0] sm:$0x3]
      %v185 = vld [vmem:[%s171] sm:$0xff]
      %v187 = vunpack.c.l.b16 %v185
      %v188 = vunpack.c.h.b16 %v185
      %v189 = vpack.c.b16 %v187, %v187
      %v190 = vpack.c.b16 %v188, %v188
      %vm191 = vcmask 64512
      %v193 = vsel %vm191, %v184, 0
      %vm195 = vcmask 1043456
      %v197 = vsel %vm195, %v189, 0
      %v200 = vsel %vm195, %v190, 0
      %202 = vmatprep.subr.bf16.mxu0 0
      %203 = vmatpush1.bf16.msra.mxu0 0
      %204 = vmatprep.subr.bf16.mxu0 0
      %205 = vmatpush1.bf16.msra.mxu0 0
      %206 = vmatprep.subr.bf16.mxu0 0
      %207 = vmatpush1.bf16.msra.mxu0 0
      %208 = vmatprep.subr.bf16.mxu0 0
      %209 = vmatpush1.bf16.msra.mxu0 0
      %210 = vmatprep.subr.bf16.mxu0 0
      %211 = vmatpush1.bf16.msra.mxu0 0
      %212 = vmatprep.subr.bf16.mxu0 0
      %213 = vmatpush1.bf16.msra.mxu0 0
      %214 = vmatprep.subr.bf16.mxu0 0
      %215 = vmatpush1.bf16.msra.mxu0 0
      %216 = vmatprep.subr.bf16.mxu0 %v200
      %217 = vmatpush1.bf16.msra.mxu0 %v197
      %218 = vmatprep.subr.bf16.mxu0 0
      %219 = vmatpush2.bf16.msra.mxu0 0
      %220 = vmatprep.subr.bf16.mxu0 0
      %221 = vmatpush2.bf16.msra.mxu0 0
      %222 = vmatprep.subr.bf16.mxu0 0
      %223 = vmatpush2.bf16.msra.mxu0 0
      %224 = vmatprep.subr.bf16.mxu0 0
      %225 = vmatpush2.bf16.msra.mxu0 0
      %226 = vmatprep.subr.bf16.mxu0 0
      %227 = vmatpush2.bf16.msra.mxu0 0
      %228 = vmatprep.subr.bf16.mxu0 0
      %229 = vmatpush2.bf16.msra.mxu0 0
      %230 = vmatprep.subr.bf16.mxu0 0
      %231 = vmatpush2.bf16.msra.mxu0 0
      %232 = vmatprep.subr.bf16.mxu0 0
      %233 = vmatpush2.bf16.msra.mxu0 0
      %234 = vmatprep.mubr.bf16.mxu0 0
      %235 = vmatmul.mubr.bf16.gmra.mxu0 %v193
      %v236 = vpop.f32.mrf.mxu0
      %v237 = vadd.f32 0.0, %v236
      %v238 = vpop.f32.mrf.mxu0
      %v239 = vadd.f32 0.0, %v238
      %v240 = vpop.f32.mrf.mxu0
      %v241 = vpop.f32.mrf.mxu0
      %242 = vdwg.mxu0
      %v243 = vmax.f32 %v237, 0.0
      %v244 = vmax.f32 %v239, 0.0
      %v247 = vcombine.low %v243, %v244
      %249 = vst [vmem:[%s181] sm:$0xff] %v247
      %s250 = smul.u32 2, %s18
      %p251 = scmp.lt.s32.totalorder %s17, 1
      %s252 = scalar_select %p251, %s17, 1
      %p253 = scmp.lt.s32.totalorder %s250, 1
      %s254 = scalar_select %p253, %s250, 1
      %s255 = smul.addr %s252, 2
      %s256 = sadd.s32 %s254, %s255
      %s257 = smul.addr %s256, 4
      %s258 = scalar_lea.vmem %s2, %s257
      // Predicated region
      $region29: #{ffc_forward.4} parent=27 // pred_check
        %p259 = pneg %p94
      $region30: #{ffc_forward.4} parent=27 // pred_check_branch
        %261 = sbr.rel (%p259) target = $region32
      $region31: #{ffc_forward.4} parent=27 // pred_region
        %s262 = smul.u32 2, %s18
      $region32: #{ffc_forward.4} parent=27 // pred_fallthru
        _
    $region28: #{ffc_forward.4} parent=5 // pred_fallthru
      _
    %p263 = scmp.le.s32.totalorder 2, %s8
    // Predicated region
    $region33: #{ffc_forward.4} parent=5 // pred_check
      %p264 = pneg %p263
    $region34: #{ffc_forward.4} parent=5 // pred_check_branch
      %266 = sbr.rel (%p264) target = $region36
    $region35: #{ffc_forward.4} parent=5 // pred_region
      %s267 = ssub.s32 %s8, 2
      // Predicated region
      $region37: #{ffc_forward.4} parent=35 // pred_check
        %p268 = pneg %p100
      $region38: #{ffc_forward.4} parent=35 // pred_check_branch
        %270 = sbr.rel (%p268) target = $region40
      $region39: #{ffc_forward.4} parent=35 // pred_region
        %s271 = smul.u32 2, %s20
        %p272 = scmp.lt.s32.totalorder %s19, 1
        %s273 = scalar_select %p272, %s19, 1
        %p274 = scmp.lt.s32.totalorder %s271, 1
        %s275 = scalar_select %p274, %s271, 1
        %s276 = smul.addr %s273, 2
        %s277 = sadd.s32 %s275, %s276
        %s278 = smul.addr %s277, 4
        %s279 = scalar_lea.vmem %s2, %s278
      $region40: #{ffc_forward.4} parent=35 // pred_fallthru
        _
    $region36: #{ffc_forward.4} parent=5 // pred_fallthru
      _
  $region6: #{ffc_forward.4} parent=0 // loop_footer
    %s12 = sadd.s32 1, %s8
  $region7: #{ffc_forward.4} parent=0 // loop_footer_branch
    %7 = sbr.rel target = $region3
  $region8: #{ffc_forward.4} parent=0 // loop_exit
    _

// kernel: reverse.0
$region0: #{reverse.0}
  %s0 = inlined_call_operand.vmem [shape: f32[2,4,16,7], index: 0, kind: input, shape index: {}]
  %s1 = inlined_call_operand.vmem [shape: f32[2,4,16,7], index: 1, kind: output, shape index: {}]
  $region1: #{reverse.0} parent=0
    #allocation0 [shape = 'u8[65536]{0}', space=vmem, size = 0x10000, scoped, tag = 'operand span for operand 0']
    #allocation1 [shape = 'u8[32768]{0}', space=vmem, size = 0x8000, scoped, tag = 'operand span for operand 1']
    %s2 = scalar_lea.vmem [#allocation0], 8
    // Predicated region
    $region2: #{reverse.0} parent=1 // pred_check
      _
    $region3: #{reverse.0} parent=1 // pred_check_branch
      %4 = sbr.rel (0) target = $region5
    $region4: #{reverse.0} parent=1 // pred_region
      // Predicated region
      $region6: #{reverse.0} parent=4 // pred_check
        _
      $region7: #{reverse.0} parent=4 // pred_check_branch
        %6 = sbr.rel (0) target = $region9
      $region8: #{reverse.0} parent=4 // pred_region
        // Predicated region
        $region21: #{reverse.0} parent=8 // pred_check
          _
        $region22: #{reverse.0} parent=8 // pred_check_branch
          %36 = sbr.rel (0) target = $region24
        $region23: #{reverse.0} parent=8 // pred_region
          loop: start=0, step=1, limit=1
          $region25: #{reverse.0} parent=23 // loop_pre_header
            _
          $region26: #{reverse.0} parent=23 // loop_header
            %s38 = sphi 0, %s42
            %p39 = scmp.ge.s32.totalorder %s38, 1
            %s43 = sphi %s0, %s0
            %s44 = sphi %s2, %s2
          $region27: #{reverse.0} parent=23 // loop_header_branch
            %41 = sbr.rel (%p39) target = $region31
          $region28: #{reverse.0} parent=23 // loop_body
            %v45 = vld [vmem:[%s43] sm:$0xff]
            %46 = vst [vmem:[%s44] sm:$0xff] %v45
            %v47 = vld [vmem:[%s43 + $0x8] sm:$0xff]
            %48 = vst [vmem:[%s44 + $0x10] sm:$0xff] %v47
            %v49 = vld [vmem:[%s43 + $0x10] sm:$0xff]
            %50 = vst [vmem:[%s44 + $0x20] sm:$0xff] %v49
            %v51 = vld [vmem:[%s43 + $0x18] sm:$0xff]
            %52 = vst [vmem:[%s44 + $0x30] sm:$0xff] %v51
            %v53 = vld [vmem:[%s43 + $0x20] sm:$0xff]
            %54 = vst [vmem:[%s44 + $0x40] sm:$0xff] %v53
            %v55 = vld [vmem:[%s43 + $0x28] sm:$0xff]
            %56 = vst [vmem:[%s44 + $0x50] sm:$0xff] %v55
            %v57 = vld [vmem:[%s43 + $0x30] sm:$0xff]
            %58 = vst [vmem:[%s44 + $0x60] sm:$0xff] %v57
            %v59 = vld [vmem:[%s43 + $0x38] sm:$0xff]
            %60 = vst [vmem:[%s44 + $0x70] sm:$0xff] %v59
          $region29: #{reverse.0} parent=23 // loop_footer
            %s42 = sadd.s32 1, %s38
          $region30: #{reverse.0} parent=23 // loop_footer_branch
            %37 = sbr.rel target = $region26
          $region31: #{reverse.0} parent=23 // loop_exit
            _
        $region24: #{reverse.0} parent=8 // pred_fallthru
          _
        // Predicated region
        $region32: #{reverse.0} parent=8 // pred_check
          _
        $region33: #{reverse.0} parent=8 // pred_check_branch
          %62 = sbr.rel target = $region35
        $region34: #{reverse.0} parent=8 // pred_region
          _
        $region35: #{reverse.0} parent=8 // pred_fallthru
          _
      $region9: #{reverse.0} parent=4 // pred_fallthru
        _
      // Predicated region
      $region10: #{reverse.0} parent=4 // pred_check
        _
      $region11: #{reverse.0} parent=4 // pred_check_branch
        %8 = sbr.rel target = $region13
      $region12: #{reverse.0} parent=4 // pred_region
        %s10 = ssub.s32 256, 1
        loop: start=0, step=1, limit=1
        $region14: #{reverse.0} parent=12 // loop_pre_header
          _
        $region15: #{reverse.0} parent=12 // loop_header
          %s12 = sphi 0, %s16
          %p13 = scmp.ge.s32.totalorder %s12, 1
          %s17 = sphi %s0, %s0
          %s18 = sphi %s2, %s2
        $region16: #{reverse.0} parent=12 // loop_header_branch
          %15 = sbr.rel (%p13) target = $region20
        $region17: #{reverse.0} parent=12 // loop_body
          %v19 = vld [vmem:[%s17] sm:%s10]
          %20 = vst [vmem:[%s18] sm:%s10] %v19
          %v21 = vld [vmem:[%s17 + $0x8] sm:%s10]
          %22 = vst [vmem:[%s18 + $0x10] sm:%s10] %v21
          %v23 = vld [vmem:[%s17 + $0x10] sm:%s10]
          %24 = vst [vmem:[%s18 + $0x20] sm:%s10] %v23
          %v25 = vld [vmem:[%s17 + $0x18] sm:%s10]
          %26 = vst [vmem:[%s18 + $0x30] sm:%s10] %v25
          %v27 = vld [vmem:[%s17 + $0x20] sm:%s10]
          %28 = vst [vmem:[%s18 + $0x40] sm:%s10] %v27
          %v29 = vld [vmem:[%s17 + $0x28] sm:%s10]
          %30 = vst [vmem:[%s18 + $0x50] sm:%s10] %v29
          %v31 = vld [vmem:[%s17 + $0x30] sm:%s10]
          %32 = vst [vmem:[%s18 + $0x60] sm:%s10] %v31
          %v33 = vld [vmem:[%s17 + $0x38] sm:%s10]
          %34 = vst [vmem:[%s18 + $0x70] sm:%s10] %v33
        $region18: #{reverse.0} parent=12 // loop_footer
          %s16 = sadd.s32 1, %s12
        $region19: #{reverse.0} parent=12 // loop_footer_branch
          %11 = sbr.rel target = $region15
        $region20: #{reverse.0} parent=12 // loop_exit
          _
      $region13: #{reverse.0} parent=4 // pred_fallthru
        _
    $region5: #{reverse.0} parent=1 // pred_fallthru
      _
    %63 = vnop
    %s64 = scalar_lea.vmem [#allocation0], 7
    %v65 = vld [vmem:[%s64] ss:$-1 sm:$0xff]
    %v66 = vrot.slane %v65, 1
    %67 = vst [vmem:[#allocation1] sm:$0xff] %v66
    %s68 = scalar_lea.vmem [#allocation0], 8
    %s69 = scalar_lea.vmem %s68, 7 [#allocation0]
    %v70 = vld [vmem:[%s69] ss:$-1 sm:$0xff]
    %v71 = vrot.slane %v70, 1
    %v72 = vlaneseq
    %v73 = vshrl.u32 %v72, 7
    %vm74 = vcmp.lt.s32.totalorder %v73, 7
    %75 = vst.msk [vmem:[#allocation1] sm:$0xff] %vm74, %v71
    %s76 = scalar_lea.vmem [#allocation1], 8
    %s77 = scalar_lea.vmem [#allocation0], 16
    %s78 = scalar_lea.vmem %s77, 7 [#allocation0]
    %v79 = vld [vmem:[%s78] ss:$-1 sm:$0xff]
    %v80 = vrot.slane %v79, 1
    %81 = vst [vmem:[%s76] sm:$0xff] %v80
    %s82 = scalar_lea.vmem %s77, 8 [#allocation0]
    %s83 = scalar_lea.vmem %s82, 7 [#allocation0]
    %v84 = vld [vmem:[%s83] ss:$-1 sm:$0xff]
    %v85 = vrot.slane %v84, 1
    %v86 = vlaneseq
    %v87 = vshrl.u32 %v86, 7
    %vm88 = vcmp.lt.s32.totalorder %v87, 7
    %89 = vst.msk [vmem:[%s76] sm:$0xff] %vm88, %v85
    %s90 = scalar_lea.vmem [#allocation1], 16
    %s91 = scalar_lea.vmem [#allocation0], 32
    %s92 = scalar_lea.vmem %s91, 7 [#allocation0]
    %v93 = vld [vmem:[%s92] ss:$-1 sm:$0xff]
    %v94 = vrot.slane %v93, 1
    %95 = vst [vmem:[%s90] sm:$0xff] %v94
    %s96 = scalar_lea.vmem %s91, 8 [#allocation0]
    %s97 = scalar_lea.vmem %s96, 7 [#allocation0]
    %v98 = vld [vmem:[%s97] ss:$-1 sm:$0xff]
    %v99 = vrot.slane %v98, 1
    %v100 = vlaneseq
    %v101 = vshrl.u32 %v100, 7
    %vm102 = vcmp.lt.s32.totalorder %v101, 7
    %103 = vst.msk [vmem:[%s90] sm:$0xff] %vm102, %v99
    %s104 = scalar_lea.vmem [#allocation1], 24
    %s105 = scalar_lea.vmem [#allocation0], 48
    %s106 = scalar_lea.vmem %s105, 7 [#allocation0]
    %v107 = vld [vmem:[%s106] ss:$-1 sm:$0xff]
    %v108 = vrot.slane %v107, 1
    %109 = vst [vmem:[%s104] sm:$0xff] %v108
    %s110 = scalar_lea.vmem %s105, 8 [#allocation0]
    %s111 = scalar_lea.vmem %s110, 7 [#allocation0]
    %v112 = vld [vmem:[%s111] ss:$-1 sm:$0xff]
    %v113 = vrot.slane %v112, 1
    %v114 = vlaneseq
    %v115 = vshrl.u32 %v114, 7
    %vm116 = vcmp.lt.s32.totalorder %v115, 7
    %117 = vst.msk [vmem:[%s104] sm:$0xff] %vm116, %v113
    %s118 = scalar_lea.vmem [#allocation1], 32
    %s119 = scalar_lea.vmem [#allocation0], 64
    %s120 = scalar_lea.vmem %s119, 7 [#allocation0]
    %v121 = vld [vmem:[%s120] ss:$-1 sm:$0xff]
    %v122 = vrot.slane %v121, 1
    %123 = vst [vmem:[%s118] sm:$0xff] %v122
    %s124 = scalar_lea.vmem %s119, 8 [#allocation0]
    %s125 = scalar_lea.vmem %s124, 7 [#allocation0]
    %v126 = vld [vmem:[%s125] ss:$-1 sm:$0xff]
    %v127 = vrot.slane %v126, 1
    %v128 = vlaneseq
    %v129 = vshrl.u32 %v128, 7
    %vm130 = vcmp.lt.s32.totalorder %v129, 7
    %131 = vst.msk [vmem:[%s118] sm:$0xff] %vm130, %v127
    %s132 = scalar_lea.vmem [#allocation1], 40
    %s133 = scalar_lea.vmem [#allocation0], 80
    %s134 = scalar_lea.vmem %s133, 7 [#allocation0]
    %v135 = vld [vmem:[%s134] ss:$-1 sm:$0xff]
    %v136 = vrot.slane %v135, 1
    %137 = vst [vmem:[%s132] sm:$0xff] %v136
    %s138 = scalar_lea.vmem %s133, 8 [#allocation0]
    %s139 = scalar_lea.vmem %s138, 7 [#allocation0]
    %v140 = vld [vmem:[%s139] ss:$-1 sm:$0xff]
    %v141 = vrot.slane %v140, 1
    %v142 = vlaneseq
    %v143 = vshrl.u32 %v142, 7
    %vm144 = vcmp.lt.s32.totalorder %v143, 7
    %145 = vst.msk [vmem:[%s132] sm:$0xff] %vm144, %v141
    %s146 = scalar_lea.vmem [#allocation1], 48
    %s147 = scalar_lea.vmem [#allocation0], 96
    %s148 = scalar_lea.vmem %s147, 7 [#allocation0]
    %v149 = vld [vmem:[%s148] ss:$-1 sm:$0xff]
    %v150 = vrot.slane %v149, 1
    %151 = vst [vmem:[%s146] sm:$0xff] %v150
    %s152 = scalar_lea.vmem %s147, 8 [#allocation0]
    %s153 = scalar_lea.vmem %s152, 7 [#allocation0]
    %v154 = vld [vmem:[%s153] ss:$-1 sm:$0xff]
    %v155 = vrot.slane %v154, 1
    %v156 = vlaneseq
    %v157 = vshrl.u32 %v156, 7
    %vm158 = vcmp.lt.s32.totalorder %v157, 7
    %159 = vst.msk [vmem:[%s146] sm:$0xff] %vm158, %v155
    %s160 = scalar_lea.vmem [#allocation1], 56
    %s161 = scalar_lea.vmem [#allocation0], 112
    %s162 = scalar_lea.vmem %s161, 7 [#allocation0]
    %v163 = vld [vmem:[%s162] ss:$-1 sm:$0xff]
    %v164 = vrot.slane %v163, 1
    %165 = vst [vmem:[%s160] sm:$0xff] %v164
    %s166 = scalar_lea.vmem %s161, 8 [#allocation0]
    %s167 = scalar_lea.vmem %s166, 7 [#allocation0]
    %v168 = vld [vmem:[%s167] ss:$-1 sm:$0xff]
    %v169 = vrot.slane %v168, 1
    %v170 = vlaneseq
    %v171 = vshrl.u32 %v170, 7
    %vm172 = vcmp.lt.s32.totalorder %v171, 7
    %173 = vst.msk [vmem:[%s160] sm:$0xff] %vm172, %v169
    // Predicated region
    $region36: #{reverse.0} parent=1 // pred_check
      _
    $region37: #{reverse.0} parent=1 // pred_check_branch
      %175 = sbr.rel (0) target = $region39
    $region38: #{reverse.0} parent=1 // pred_region
      // Predicated region
      $region40: #{reverse.0} parent=38 // pred_check
        _
      $region41: #{reverse.0} parent=38 // pred_check_branch
        %177 = sbr.rel (0) target = $region43
      $region42: #{reverse.0} parent=38 // pred_region
        // Predicated region
        $region55: #{reverse.0} parent=42 // pred_check
          _
        $region56: #{reverse.0} parent=42 // pred_check_branch
          %207 = sbr.rel (0) target = $region58
        $region57: #{reverse.0} parent=42 // pred_region
          loop: start=0, step=1, limit=1
          $region59: #{reverse.0} parent=57 // loop_pre_header
            _
          $region60: #{reverse.0} parent=57 // loop_header
            %s209 = sphi 0, %s213
            %p210 = scmp.ge.s32.totalorder %s209, 1
            %s214 = sphi [#allocation1], [#allocation1]
            %s215 = sphi %s1, %s1
          $region61: #{reverse.0} parent=57 // loop_header_branch
            %212 = sbr.rel (%p210) target = $region65
          $region62: #{reverse.0} parent=57 // loop_body
            %v216 = vld [vmem:[%s214] sm:$0xff]
            %217 = vst [vmem:[%s215] sm:$0xff] %v216
            %v218 = vld [vmem:[%s214 + $0x8] sm:$0xff]
            %219 = vst [vmem:[%s215 + $0x8] sm:$0xff] %v218
            %v220 = vld [vmem:[%s214 + $0x10] sm:$0xff]
            %221 = vst [vmem:[%s215 + $0x10] sm:$0xff] %v220
            %v222 = vld [vmem:[%s214 + $0x18] sm:$0xff]
            %223 = vst [vmem:[%s215 + $0x18] sm:$0xff] %v222
            %v224 = vld [vmem:[%s214 + $0x20] sm:$0xff]
            %225 = vst [vmem:[%s215 + $0x20] sm:$0xff] %v224
            %v226 = vld [vmem:[%s214 + $0x28] sm:$0xff]
            %227 = vst [vmem:[%s215 + $0x28] sm:$0xff] %v226
            %v228 = vld [vmem:[%s214 + $0x30] sm:$0xff]
            %229 = vst [vmem:[%s215 + $0x30] sm:$0xff] %v228
            %v230 = vld [vmem:[%s214 + $0x38] sm:$0xff]
            %231 = vst [vmem:[%s215 + $0x38] sm:$0xff] %v230
          $region63: #{reverse.0} parent=57 // loop_footer
            %s213 = sadd.s32 1, %s209
          $region64: #{reverse.0} parent=57 // loop_footer_branch
            %208 = sbr.rel target = $region60
          $region65: #{reverse.0} parent=57 // loop_exit
            _
        $region58: #{reverse.0} parent=42 // pred_fallthru
          _
        // Predicated region
        $region66: #{reverse.0} parent=42 // pred_check
          _
        $region67: #{reverse.0} parent=42 // pred_check_branch
          %233 = sbr.rel target = $region69
        $region68: #{reverse.0} parent=42 // pred_region
          _
        $region69: #{reverse.0} parent=42 // pred_fallthru
          _
      $region43: #{reverse.0} parent=38 // pred_fallthru
        _
      // Predicated region
      $region44: #{reverse.0} parent=38 // pred_check
        _
      $region45: #{reverse.0} parent=38 // pred_check_branch
        %179 = sbr.rel target = $region47
      $region46: #{reverse.0} parent=38 // pred_region
        %s181 = ssub.s32 256, 1
        loop: start=0, step=1, limit=1
        $region48: #{reverse.0} parent=46 // loop_pre_header
          _
        $region49: #{reverse.0} parent=46 // loop_header
          %s183 = sphi 0, %s187
          %p184 = scmp.ge.s32.totalorder %s183, 1
          %s188 = sphi [#allocation1], [#allocation1]
          %s189 = sphi %s1, %s1
        $region50: #{reverse.0} parent=46 // loop_header_branch
          %186 = sbr.rel (%p184) target = $region54
        $region51: #{reverse.0} parent=46 // loop_body
          %v190 = vld [vmem:[%s188] sm:%s181]
          %191 = vst [vmem:[%s189] sm:%s181] %v190
          %v192 = vld [vmem:[%s188 + $0x8] sm:%s181]
          %193 = vst [vmem:[%s189 + $0x8] sm:%s181] %v192
          %v194 = vld [vmem:[%s188 + $0x10] sm:%s181]
          %195 = vst [vmem:[%s189 + $0x10] sm:%s181] %v194
          %v196 = vld [vmem:[%s188 + $0x18] sm:%s181]
          %197 = vst [vmem:[%s189 + $0x18] sm:%s181] %v196
          %v198 = vld [vmem:[%s188 + $0x20] sm:%s181]
          %199 = vst [vmem:[%s189 + $0x20] sm:%s181] %v198
          %v200 = vld [vmem:[%s188 + $0x28] sm:%s181]
          %201 = vst [vmem:[%s189 + $0x28] sm:%s181] %v200
          %v202 = vld [vmem:[%s188 + $0x30] sm:%s181]
          %203 = vst [vmem:[%s189 + $0x30] sm:%s181] %v202
          %v204 = vld [vmem:[%s188 + $0x38] sm:%s181]
          %205 = vst [vmem:[%s189 + $0x38] sm:%s181] %v204
        $region52: #{reverse.0} parent=46 // loop_footer
          %s187 = sadd.s32 1, %s183
        $region53: #{reverse.0} parent=46 // loop_footer_branch
          %182 = sbr.rel target = $region49
        $region54: #{reverse.0} parent=46 // loop_exit
          _
      $region47: #{reverse.0} parent=38 // pred_fallthru
        _
    $region39: #{reverse.0} parent=1 // pred_fallthru
      _
    %234 = vnop

// kernel: ffc_forward.5
$region0: #{ffc_forward.5}
  #allocation0 [shape = 'u32[]', space=smem, size = 0x4, offset = 0x4, fixed_abs, tag = 'smem constant byte address 0x4 - core index']
  #allocation1 [shape = 'u32[144,128]{1,0:T(1,128)}', space=vmem, size = 0x12000, scoped, tag = 'internal scratch']
  %s0 = inlined_call_operand.vmem [shape: bf16[8,8], index: 0, kind: input, shape index: {}]
  %s1 = inlined_call_operand.vmem [shape: bf16[2,8,256], index: 1, kind: input, shape index: {}]
  %s2 = inlined_call_operand.vmem [shape: f32[2,8,256], index: 2, kind: output, shape index: {}]
  %s3 = sld [smem:[#allocation0]]
  $region41: #{ffc_forward.5} parent=0
    _
  %s5 = ssub.s32 1, %s3
  %s6 = scalar_select 0, %s5, %s3
  loop: start=0, step=1, limit=4
  $region2: #{ffc_forward.5} parent=0 // loop_pre_header
    _
  $region3: #{ffc_forward.5} parent=0 // loop_header
    %s8 = sphi 0, %s12
    %p9 = scmp.ge.s32.totalorder %s8, 4
    %s15 = sphi 0, %s27
    %s16 = sphi 0, %s23
    %s17 = sphi 0, %s15
    %s18 = sphi 0, %s16
    %s19 = sphi 0, %s17
    %s20 = sphi 0, %s18
    %s28 = sphi 0, %s28
    %s30 = sphi 0, %s28
    %s31 = sphi 0, %s30
    %s45 = sphi 0, %s31
    %s53 = sphi 0, %s55
    %s56 = sphi 0, %s53
    %s57 = sphi 0, %s56
    %s73 = sphi 0, %s57
    %s81 = sphi 0, %s83
    %s84 = sphi 0, %s81
    %s85 = sphi 0, %s84
    %s101 = sphi 0, %s85
  $region4: #{ffc_forward.5} parent=0 // loop_header_branch
    %11 = sbr.rel (%p9) target = $region8
  $region5: #{ffc_forward.5} parent=0 // loop_body
    %s13 = ssub.s32 %s8, 1
    %s14 = ssub.s32 %s8, 2
    %s21 = sadd.s32 1, %s16
    %p22 = scmp.ge.s32.totalorder %s21, 1
    %s23 = scalar_select %p22, 0, %s21
    %s24 = sadd.s32 1, %s15
    %s25 = scalar_select %p22, %s24, %s15
    %p26 = scmp.ge.s32.totalorder %s25, 2
    %s27 = scalar_select %p26, 0, %s25
    %s29 = sadd.s32 %s28, 1
    %p32 = scmp.eq.s32.totalorder %s8, 1
    %p33 = scmp.ne.s32.totalorder %s28, %s30
    %p34 = scmp.eq.s32.totalorder %s8, 0
    %p35 = por %p33, %p34
    %p36 = scmp.ne.s32.totalorder %s28, %s30
    %p37 = scmp.eq.s32.totalorder %s13, 1
    %p38 = por %p36, %p37
    %p39 = scmp.ne.s32.totalorder %s30, %s31
    %p40 = scmp.eq.s32.totalorder %s13, 0
    %p41 = por %p39, %p40
    %p42 = scmp.ne.s32.totalorder %s30, %s31
    %p43 = scmp.eq.s32.totalorder %s14, 1
    %p44 = por %p42, %p43
    %p46 = scmp.ne.s32.totalorder %s31, %s45
    %p47 = scmp.eq.s32.totalorder %s14, 0
    %p48 = por %p46, %p47
    %s49 = ssub.s32 %s15, %s27
    %s50 = ssub.s32 %s16, %s23
    %s51 = sor.u32 %s49, %s50
    %p52 = scmp.eq.s32.totalorder %s51, 0
    %s54 = sadd.s32 %s53, 1
    %s55 = scalar_select %p52, %s53, %s54
    %p58 = pneg %p52
    %p59 = scmp.eq.s32.totalorder %s8, 1
    %p60 = por %p58, %p59
    %p61 = scmp.ne.s32.totalorder %s53, %s56
    %p62 = scmp.eq.s32.totalorder %s8, 0
    %p63 = por %p61, %p62
    %p64 = scmp.ne.s32.totalorder %s53, %s56
    %p65 = scmp.eq.s32.totalorder %s13, 1
    %p66 = por %p64, %p65
    %p67 = scmp.ne.s32.totalorder %s56, %s57
    %p68 = scmp.eq.s32.totalorder %s13, 0
    %p69 = por %p67, %p68
    %p70 = scmp.ne.s32.totalorder %s56, %s57
    %p71 = scmp.eq.s32.totalorder %s14, 1
    %p72 = por %p70, %p71
    %p74 = scmp.ne.s32.totalorder %s57, %s73
    %p75 = scmp.eq.s32.totalorder %s14, 0
    %p76 = por %p74, %p75
    %s77 = ssub.s32 %s15, %s27
    %s78 = ssub.s32 %s16, %s23
    %s79 = sor.u32 %s77, %s78
    %p80 = scmp.eq.s32.totalorder %s79, 0
    %s82 = sadd.s32 %s81, 1
    %s83 = scalar_select %p80, %s81, %s82
    %p86 = pneg %p80
    %p87 = scmp.eq.s32.totalorder %s8, 1
    %p88 = por %p86, %p87
    %p89 = scmp.ne.s32.totalorder %s81, %s84
    %p90 = scmp.eq.s32.totalorder %s8, 0
    %p91 = por %p89, %p90
    %p92 = scmp.ne.s32.totalorder %s81, %s84
    %p93 = scmp.eq.s32.totalorder %s13, 1
    %p94 = por %p92, %p93
    %p95 = scmp.ne.s32.totalorder %s84, %s85
    %p96 = scmp.eq.s32.totalorder %s13, 0
    %p97 = por %p95, %p96
    %p98 = scmp.ne.s32.totalorder %s84, %s85
    %p99 = scmp.eq.s32.totalorder %s14, 1
    %p100 = por %p98, %p99
    %p102 = scmp.ne.s32.totalorder %s85, %s101
    %p103 = scmp.eq.s32.totalorder %s14, 0
    %p104 = por %p102, %p103
    %p105 = scmp.le.s32.totalorder 1, %s8
    %p106 = scmp.lt.s32.totalorder %s8, 3
    %p107 = pnand %p105, %p106
    %p108 = pneg %p107
    // Predicated region
    $region9: #{ffc_forward.5} parent=5 // pred_check
      _
    $region10: #{ffc_forward.5} parent=5 // pred_check_branch
      %110 = sbr.rel (%p107) target = $region12
    $region11: #{ffc_forward.5} parent=5 // pred_region
      %s111 = ssub.s32 %s8, 1
      // Predicated region
      $region13: #{ffc_forward.5} parent=11 // pred_check
        %p112 = pneg %p41
      $region14: #{ffc_forward.5} parent=11 // pred_check_branch
        %114 = sbr.rel (%p112) target = $region16
      $region15: #{ffc_forward.5} parent=11 // pred_region
        _
      $region16: #{ffc_forward.5} parent=11 // pred_fallthru
        _
    $region12: #{ffc_forward.5} parent=5 // pred_fallthru
      _
    %p115 = scmp.lt.s32.totalorder %s8, 2
    // Predicated region
    $region17: #{ffc_forward.5} parent=5 // pred_check
      %p116 = pneg %p115
    $region18: #{ffc_forward.5} parent=5 // pred_check_branch
      %118 = sbr.rel (%p116) target = $region20
    $region19: #{ffc_forward.5} parent=5 // pred_region
      // Predicated region
      $region21: #{ffc_forward.5} parent=19 // pred_check
        %p119 = pneg %p63
      $region22: #{ffc_forward.5} parent=19 // pred_check_branch
        %121 = sbr.rel (%p119) target = $region24
      $region23: #{ffc_forward.5} parent=19 // pred_region
        %s122 = smul.u32 2, %s16
        %p123 = scmp.lt.s32.totalorder %s15, 1
        %s124 = scalar_select %p123, %s15, 1
        %p125 = scmp.lt.s32.totalorder %s122, 1
        %s126 = scalar_select %p125, %s122, 1
        %s127 = smul.addr %s124, 2
        %s128 = sadd.s32 %s126, %s127
        %s129 = smul.addr %s128, 4
        %s130 = scalar_lea.vmem %s1, %s129
        %s131 = smul.u32 2, %s16
      $region24: #{ffc_forward.5} parent=19 // pred_fallthru
        _
    $region20: #{ffc_forward.5} parent=5 // pred_fallthru
      _
    %p132 = scmp.le.s32.totalorder 1, %s8
    %p133 = scmp.lt.s32.totalorder %s8, 3
    %p134 = pnand %p132, %p133
    %p135 = pneg %p134
    // Predicated region
    $region25: #{ffc_forward.5} parent=5 // pred_check
      _
    $region26: #{ffc_forward.5} parent=5 // pred_check_branch
      %137 = sbr.rel (%p134) target = $region28
    $region27: #{ffc_forward.5} parent=5 // pred_region
      %s138 = ssub.s32 %s8, 1
      %p139 = pneg %p41
      %p140 = pneg %p38
      %s141 = smul.u32 2, %s18
      %p142 = scmp.lt.s32.totalorder %s17, 1
      %s143 = scalar_select %p142, %s17, 1
      %p144 = scmp.lt.s32.totalorder %s141, 1
      %s145 = scalar_select %p144, %s141, 1
      %s146 = smul.addr %s143, 2
      %s147 = sadd.s32 %s145, %s146
      %s148 = smul.addr %s147, 4
      %s149 = scalar_lea.vmem %s1, %s148
      %p150 = pneg %p69
      %p151 = pneg %p66
      %p152 = pneg %p97
      %p153 = pneg %p94
      %s154 = smul.u32 2, %s18
      %p155 = scmp.lt.s32.totalorder %s17, 1
      %s156 = scalar_select %p155, %s17, 1
      %p157 = scmp.lt.s32.totalorder %s154, 1
      %s158 = scalar_select %p157, %s154, 1
      %s159 = smul.addr %s156, 2
      %s160 = sadd.s32 %s158, %s159
      %s161 = smul.addr %s160, 8
      %s162 = scalar_lea.vmem %s2, %s161
      %s163 = smul.u32 2, %s18
      %p164 = scmp.lt.s32.totalorder %s17, 1
      %s165 = scalar_select %p164, %s17, 1
      %p166 = scmp.lt.s32.totalorder %s163, 1
      %s167 = scalar_select %p166, %s163, 1
      %s168 = smul.addr %s165, 2
      %s169 = sadd.s32 %s167, %s168
      %s170 = smul.addr %s169, 4
      %s171 = scalar_lea.vmem %s1, %s170
      %s172 = smul.u32 2, %s18
      %s173 = smul.u32 2, %s18
      %p174 = scmp.lt.s32.totalorder %s17, 1
      %s175 = scalar_select %p174, %s17, 1
      %p176 = scmp.lt.s32.totalorder %s173, 1
      %s177 = scalar_select %p176, %s173, 1
      %s178 = smul.addr %s175, 2
      %s179 = sadd.s32 %s177, %s178
      %s180 = smul.addr %s179, 8
      %s181 = scalar_lea.vmem %s2, %s180
      %s182 = smul.u32 2, %s18
      %v184 = vld [vmem:[%s0] sm:$0xf]
      %v185 = vld [vmem:[%s171] sm:$0xff]
      %v187 = vunpack.c.l.b16 %v185
      %v188 = vunpack.c.h.b16 %v185
      %v189 = vpack.c.b16 %v187, %v187
      %v190 = vpack.c.b16 %v188, %v188
      %vm191 = vcmask 64512
      %v193 = vsel %vm191, %v184, 0
      %vm195 = vcmask 1043456
      %v197 = vsel %vm195, %v189, 0
      %v200 = vsel %vm195, %v190, 0
      %202 = vmatprep.subr.bf16.mxu0 0
      %203 = vmatpush1.bf16.msra.mxu0 0
      %204 = vmatprep.subr.bf16.mxu0 0
      %205 = vmatpush1.bf16.msra.mxu0 0
      %206 = vmatprep.subr.bf16.mxu0 0
      %207 = vmatpush1.bf16.msra.mxu0 0
      %208 = vmatprep.subr.bf16.mxu0 0
      %209 = vmatpush1.bf16.msra.mxu0 0
      %210 = vmatprep.subr.bf16.mxu0 0
      %211 = vmatpush1.bf16.msra.mxu0 0
      %212 = vmatprep.subr.bf16.mxu0 0
      %213 = vmatpush1.bf16.msra.mxu0 0
      %214 = vmatprep.subr.bf16.mxu0 0
      %215 = vmatpush1.bf16.msra.mxu0 0
      %216 = vmatprep.subr.bf16.mxu0 %v200
      %217 = vmatpush1.bf16.msra.mxu0 %v197
      %218 = vmatprep.subr.bf16.mxu0 0
      %219 = vmatpush2.bf16.msra.mxu0 0
      %220 = vmatprep.subr.bf16.mxu0 0
      %221 = vmatpush2.bf16.msra.mxu0 0
      %222 = vmatprep.subr.bf16.mxu0 0
      %223 = vmatpush2.bf16.msra.mxu0 0
      %224 = vmatprep.subr.bf16.mxu0 0
      %225 = vmatpush2.bf16.msra.mxu0 0
      %226 = vmatprep.subr.bf16.mxu0 0
      %227 = vmatpush2.bf16.msra.mxu0 0
      %228 = vmatprep.subr.bf16.mxu0 0
      %229 = vmatpush2.bf16.msra.mxu0 0
      %230 = vmatprep.subr.bf16.mxu0 0
      %231 = vmatpush2.bf16.msra.mxu0 0
      %232 = vmatprep.subr.bf16.mxu0 0
      %233 = vmatpush2.bf16.msra.mxu0 0
      %234 = vmatprep.mubr.bf16.mxu0 0
      %235 = vmatmul.mubr.bf16.gmra.mxu0 %v193
      %v236 = vpop.f32.mrf.mxu0
      %v237 = vadd.f32 0.0, %v236
      %v238 = vpop.f32.mrf.mxu0
      %v239 = vadd.f32 0.0, %v238
      %v240 = vpop.f32.mrf.mxu0
      %v241 = vpop.f32.mrf.mxu0
      %242 = vdwg.mxu0
      %v243 = vmax.f32 %v237, 0.0
      %v244 = vmax.f32 %v239, 0.0
      %245 = vst [vmem:[%s181] sm:$0xff] %v243
      %246 = vst [vmem:[%s181 + $0x8] sm:$0xff] %v244
      %s247 = smul.u32 2, %s18
      %p248 = scmp.lt.s32.totalorder %s17, 1
      %s249 = scalar_select %p248, %s17, 1
      %p250 = scmp.lt.s32.totalorder %s247, 1
      %s251 = scalar_select %p250, %s247, 1
      %s252 = smul.addr %s249, 2
      %s253 = sadd.s32 %s251, %s252
      %s254 = smul.addr %s253, 8
      %s255 = scalar_lea.vmem %s2, %s254
      // Predicated region
      $region29: #{ffc_forward.5} parent=27 // pred_check
        %p256 = pneg %p94
      $region30: #{ffc_forward.5} parent=27 // pred_check_branch
        %258 = sbr.rel (%p256) target = $region32
      $region31: #{ffc_forward.5} parent=27 // pred_region
        %s259 = smul.u32 2, %s18
      $region32: #{ffc_forward.5} parent=27 // pred_fallthru
        _
    $region28: #{ffc_forward.5} parent=5 // pred_fallthru
      _
    %p260 = scmp.le.s32.totalorder 2, %s8
    // Predicated region
    $region33: #{ffc_forward.5} parent=5 // pred_check
      %p261 = pneg %p260
    $region34: #{ffc_forward.5} parent=5 // pred_check_branch
      %263 = sbr.rel (%p261) target = $region36
    $region35: #{ffc_forward.5} parent=5 // pred_region
      %s264 = ssub.s32 %s8, 2
      // Predicated region
      $region37: #{ffc_forward.5} parent=35 // pred_check
        %p265 = pneg %p100
      $region38: #{ffc_forward.5} parent=35 // pred_check_branch
        %267 = sbr.rel (%p265) target = $region40
      $region39: #{ffc_forward.5} parent=35 // pred_region
        %s268 = smul.u32 2, %s20
        %p269 = scmp.lt.s32.totalorder %s19, 1
        %s270 = scalar_select %p269, %s19, 1
        %p271 = scmp.lt.s32.totalorder %s268, 1
        %s272 = scalar_select %p271, %s268, 1
        %s273 = smul.addr %s270, 2
        %s274 = sadd.s32 %s272, %s273
        %s275 = smul.addr %s274, 8
        %s276 = scalar_lea.vmem %s2, %s275
      $region40: #{ffc_forward.5} parent=35 // pred_fallthru
        _
    $region36: #{ffc_forward.5} parent=5 // pred_fallthru
      _
  $region6: #{ffc_forward.5} parent=0 // loop_footer
    %s12 = sadd.s32 1, %s8
  $region7: #{ffc_forward.5} parent=0 // loop_footer_branch
    %7 = sbr.rel target = $region3
  $region8: #{ffc_forward.5} parent=0 // loop_exit
    _

// kernel: reverse.1
$region0: #{reverse.1}
  %s0 = inlined_call_operand.vmem [shape: f32[2,4,8,3], index: 0, kind: input, shape index: {}]
  %s1 = inlined_call_operand.vmem [shape: f32[2,4,8,3], index: 1, kind: output, shape index: {}]
  $region1: #{reverse.1} parent=0
    #allocation0 [shape = 'u8[65536]{0}', space=vmem, size = 0x10000, scoped, tag = 'operand span for operand 0']
    #allocation1 [shape = 'u8[32768]{0}', space=vmem, size = 0x8000, scoped, tag = 'packed  for operand 0']
    #allocation2 [shape = 'u8[32768]{0}', space=vmem, size = 0x8000, scoped, tag = 'operand span for operand 1']
    #allocation3 [shape = 'u8[16384]{0}', space=vmem, size = 0x4000, scoped, tag = 'packed  for operand 1']
    %s2 = scalar_lea.vmem [#allocation1], 4
    // Predicated region
    $region2: #{reverse.1} parent=1 // pred_check
      _
    $region3: #{reverse.1} parent=1 // pred_check_branch
      %4 = sbr.rel (0) target = $region5
    $region4: #{reverse.1} parent=1 // pred_region
      // Predicated region
      $region6: #{reverse.1} parent=4 // pred_check
        _
      $region7: #{reverse.1} parent=4 // pred_check_branch
        %6 = sbr.rel target = $region9
      $region8: #{reverse.1} parent=4 // pred_region
        // Predicated region
        $region21: #{reverse.1} parent=8 // pred_check
          _
        $region22: #{reverse.1} parent=8 // pred_check_branch
          %36 = sbr.rel (0) target = $region24
        $region23: #{reverse.1} parent=8 // pred_region
          loop: start=0, step=1, limit=1
          $region25: #{reverse.1} parent=23 // loop_pre_header
            _
          $region26: #{reverse.1} parent=23 // loop_header
            %s38 = sphi 0, %s42
            %p39 = scmp.ge.s32.totalorder %s38, 1
            %s43 = sphi %s0, %s0
            %s44 = sphi %s2, %s2
          $region27: #{reverse.1} parent=23 // loop_header_branch
            %41 = sbr.rel (%p39) target = $region31
          $region28: #{reverse.1} parent=23 // loop_body
            _
          $region29: #{reverse.1} parent=23 // loop_footer
            %s42 = sadd.s32 1, %s38
          $region30: #{reverse.1} parent=23 // loop_footer_branch
            %37 = sbr.rel target = $region26
          $region31: #{reverse.1} parent=23 // loop_exit
            _
          %s46 = ssub.s32 16, 1
          loop: start=0, step=1, limit=1
          $region32: #{reverse.1} parent=23 // loop_pre_header
            _
          $region33: #{reverse.1} parent=23 // loop_header
            %s48 = sphi 0, %s52
            %p49 = scmp.ge.s32.totalorder %s48, 1
            %s53 = sphi %s0, %s0
            %s54 = sphi %s2, %s2
          $region34: #{reverse.1} parent=23 // loop_header_branch
            %51 = sbr.rel (%p49) target = $region38
          $region35: #{reverse.1} parent=23 // loop_body
            %v55 = vld [vmem:[%s53] sm:%s46]
            %56 = vst [vmem:[%s54] sm:%s46] %v55
            %v57 = vld [vmem:[%s53 + $0x4] sm:%s46]
            %58 = vst [vmem:[%s54 + $0x8] sm:%s46] %v57
            %v59 = vld [vmem:[%s53 + $0x8] sm:%s46]
            %60 = vst [vmem:[%s54 + $0x10] sm:%s46] %v59
            %v61 = vld [vmem:[%s53 + $0xc] sm:%s46]
            %62 = vst [vmem:[%s54 + $0x18] sm:%s46] %v61
            %v63 = vld [vmem:[%s53 + $0x10] sm:%s46]
            %64 = vst [vmem:[%s54 + $0x20] sm:%s46] %v63
            %v65 = vld [vmem:[%s53 + $0x14] sm:%s46]
            %66 = vst [vmem:[%s54 + $0x28] sm:%s46] %v65
            %v67 = vld [vmem:[%s53 + $0x18] sm:%s46]
            %68 = vst [vmem:[%s54 + $0x30] sm:%s46] %v67
            %v69 = vld [vmem:[%s53 + $0x1c] sm:%s46]
            %70 = vst [vmem:[%s54 + $0x38] sm:%s46] %v69
          $region36: #{reverse.1} parent=23 // loop_footer
            %s52 = sadd.s32 1, %s48
          $region37: #{reverse.1} parent=23 // loop_footer_branch
            %47 = sbr.rel target = $region33
          $region38: #{reverse.1} parent=23 // loop_exit
            _
        $region24: #{reverse.1} parent=8 // pred_fallthru
          _
      $region9: #{reverse.1} parent=4 // pred_fallthru
        _
      // Predicated region
      $region10: #{reverse.1} parent=4 // pred_check
        _
      $region11: #{reverse.1} parent=4 // pred_check_branch
        %8 = sbr.rel (0) target = $region13
      $region12: #{reverse.1} parent=4 // pred_region
        %s10 = ssub.s32 16, 1
        loop: start=0, step=1, limit=1
        $region14: #{reverse.1} parent=12 // loop_pre_header
          _
        $region15: #{reverse.1} parent=12 // loop_header
          %s12 = sphi 0, %s16
          %p13 = scmp.ge.s32.totalorder %s12, 1
          %s17 = sphi %s0, %s0
          %s18 = sphi %s2, %s2
        $region16: #{reverse.1} parent=12 // loop_header_branch
          %15 = sbr.rel (%p13) target = $region20
        $region17: #{reverse.1} parent=12 // loop_body
          %v19 = vld [vmem:[%s17] sm:%s10]
          %20 = vst [vmem:[%s18] sm:%s10] %v19
          %v21 = vld [vmem:[%s17 + $0x4] sm:%s10]
          %22 = vst [vmem:[%s18 + $0x8] sm:%s10] %v21
          %v23 = vld [vmem:[%s17 + $0x8] sm:%s10]
          %24 = vst [vmem:[%s18 + $0x10] sm:%s10] %v23
          %v25 = vld [vmem:[%s17 + $0xc] sm:%s10]
          %26 = vst [vmem:[%s18 + $0x18] sm:%s10] %v25
          %v27 = vld [vmem:[%s17 + $0x10] sm:%s10]
          %28 = vst [vmem:[%s18 + $0x20] sm:%s10] %v27
          %v29 = vld [vmem:[%s17 + $0x14] sm:%s10]
          %30 = vst [vmem:[%s18 + $0x28] sm:%s10] %v29
          %v31 = vld [vmem:[%s17 + $0x18] sm:%s10]
          %32 = vst [vmem:[%s18 + $0x30] sm:%s10] %v31
          %v33 = vld [vmem:[%s17 + $0x1c] sm:%s10]
          %34 = vst [vmem:[%s18 + $0x38] sm:%s10] %v33
        $region18: #{reverse.1} parent=12 // loop_footer
          %s16 = sadd.s32 1, %s12
        $region19: #{reverse.1} parent=12 // loop_footer_branch
          %11 = sbr.rel target = $region15
        $region20: #{reverse.1} parent=12 // loop_exit
          _
      $region13: #{reverse.1} parent=4 // pred_fallthru
        _
    $region5: #{reverse.1} parent=1 // pred_fallthru
      _
    %71 = vnop
    %s73 = sshll.u32 1, 4
    %s74 = ssub.s32 %s73, 1
    %s75 = smul.addr 4, 15
    %s76 = scalar_lea.vmem [#allocation1], %s75
    %v77 = vld [vmem:[%s76] sm:%s74]
    %s78 = scalar_lea.vmem [#allocation0], 120
    %79 = vst [vmem:[%s78] sm:%s74] %v77
    %s80 = smul.addr 4, 14
    %s81 = scalar_lea.vmem [#allocation1], %s80
    %v82 = vld [vmem:[%s81] sm:%s74]
    %s83 = scalar_lea.vmem [#allocation0], 112
    %84 = vst [vmem:[%s83] sm:%s74] %v82
    %s85 = smul.addr 4, 13
    %s86 = scalar_lea.vmem [#allocation1], %s85
    %v87 = vld [vmem:[%s86] sm:%s74]
    %s88 = scalar_lea.vmem [#allocation0], 104
    %89 = vst [vmem:[%s88] sm:%s74] %v87
    %s90 = smul.addr 4, 12
    %s91 = scalar_lea.vmem [#allocation1], %s90
    %v92 = vld [vmem:[%s91] sm:%s74]
    %s93 = scalar_lea.vmem [#allocation0], 96
    %94 = vst [vmem:[%s93] sm:%s74] %v92
    %s95 = smul.addr 4, 11
    %s96 = scalar_lea.vmem [#allocation1], %s95
    %v97 = vld [vmem:[%s96] sm:%s74]
    %s98 = scalar_lea.vmem [#allocation0], 88
    %99 = vst [vmem:[%s98] sm:%s74] %v97
    %s100 = smul.addr 4, 10
    %s101 = scalar_lea.vmem [#allocation1], %s100
    %v102 = vld [vmem:[%s101] sm:%s74]
    %s103 = scalar_lea.vmem [#allocation0], 80
    %104 = vst [vmem:[%s103] sm:%s74] %v102
    %s105 = smul.addr 4, 9
    %s106 = scalar_lea.vmem [#allocation1], %s105
    %v107 = vld [vmem:[%s106] sm:%s74]
    %s108 = scalar_lea.vmem [#allocation0], 72
    %109 = vst [vmem:[%s108] sm:%s74] %v107
    %s110 = smul.addr 4, 8
    %s111 = scalar_lea.vmem [#allocation1], %s110
    %v112 = vld [vmem:[%s111] sm:%s74]
    %s113 = scalar_lea.vmem [#allocation0], 64
    %114 = vst [vmem:[%s113] sm:%s74] %v112
    %s115 = smul.addr 4, 7
    %s116 = scalar_lea.vmem [#allocation1], %s115
    %v117 = vld [vmem:[%s116] sm:%s74]
    %s118 = scalar_lea.vmem [#allocation0], 56
    %119 = vst [vmem:[%s118] sm:%s74] %v117
    %s120 = smul.addr 4, 6
    %s121 = scalar_lea.vmem [#allocation1], %s120
    %v122 = vld [vmem:[%s121] sm:%s74]
    %s123 = scalar_lea.vmem [#allocation0], 48
    %124 = vst [vmem:[%s123] sm:%s74] %v122
    %s125 = smul.addr 4, 5
    %s126 = scalar_lea.vmem [#allocation1], %s125
    %v127 = vld [vmem:[%s126] sm:%s74]
    %s128 = scalar_lea.vmem [#allocation0], 40
    %129 = vst [vmem:[%s128] sm:%s74] %v127
    %s130 = smul.addr 4, 4
    %s131 = scalar_lea.vmem [#allocation1], %s130
    %v132 = vld [vmem:[%s131] sm:%s74]
    %s133 = scalar_lea.vmem [#allocation0], 32
    %134 = vst [vmem:[%s133] sm:%s74] %v132
    %s135 = smul.addr 4, 3
    %s136 = scalar_lea.vmem [#allocation1], %s135
    %v137 = vld [vmem:[%s136] sm:%s74]
    %s138 = scalar_lea.vmem [#allocation0], 24
    %139 = vst [vmem:[%s138] sm:%s74] %v137
    %s140 = smul.addr 4, 2
    %s141 = scalar_lea.vmem [#allocation1], %s140
    %v142 = vld [vmem:[%s141] sm:%s74]
    %s143 = scalar_lea.vmem [#allocation0], 16
    %144 = vst [vmem:[%s143] sm:%s74] %v142
    %s145 = scalar_lea.vmem [#allocation1], 4
    %v146 = vld [vmem:[%s145] sm:%s74]
    %s147 = scalar_lea.vmem [#allocation0], 8
    %148 = vst [vmem:[%s147] sm:%s74] %v146
    %v149 = vld [vmem:[#allocation1] sm:%s74]
    %150 = vst [vmem:[#allocation0] sm:%s74] %v149
    %s151 = scalar_lea.vmem [#allocation0], 7
    %v152 = vld [vmem:[%s151] ss:$-1 sm:$0xff]
    %v153 = vrot.slane %v152, 5
    %154 = vst [vmem:[#allocation2] sm:$0xff] %v153
    %s155 = scalar_lea.vmem [#allocation0], 8
    %s156 = scalar_lea.vmem %s155, 7 [#allocation0]
    %v157 = vld [vmem:[%s156] ss:$-1 sm:$0xff]
    %v158 = vrot.slane %v157, 5
    %v159 = vlaneseq
    %v160 = vshrl.u32 %v159, 7
    %vm161 = vcmp.lt.s32.totalorder %v160, 3
    %162 = vst.msk [vmem:[#allocation2] sm:$0xff] %vm161, %v158
    %s163 = scalar_lea.vmem [#allocation2], 8
    %s164 = scalar_lea.vmem [#allocation0], 16
    %s165 = scalar_lea.vmem %s164, 7 [#allocation0]
    %v166 = vld [vmem:[%s165] ss:$-1 sm:$0xff]
    %v167 = vrot.slane %v166, 5
    %168 = vst [vmem:[%s163] sm:$0xff] %v167
    %s169 = scalar_lea.vmem %s164, 8 [#allocation0]
    %s170 = scalar_lea.vmem %s169, 7 [#allocation0]
    %v171 = vld [vmem:[%s170] ss:$-1 sm:$0xff]
    %v172 = vrot.slane %v171, 5
    %v173 = vlaneseq
    %v174 = vshrl.u32 %v173, 7
    %vm175 = vcmp.lt.s32.totalorder %v174, 3
    %176 = vst.msk [vmem:[%s163] sm:$0xff] %vm175, %v172
    %s177 = scalar_lea.vmem [#allocation2], 16
    %s178 = scalar_lea.vmem [#allocation0], 32
    %s179 = scalar_lea.vmem %s178, 7 [#allocation0]
    %v180 = vld [vmem:[%s179] ss:$-1 sm:$0xff]
    %v181 = vrot.slane %v180, 5
    %182 = vst [vmem:[%s177] sm:$0xff] %v181
    %s183 = scalar_lea.vmem %s178, 8 [#allocation0]
    %s184 = scalar_lea.vmem %s183, 7 [#allocation0]
    %v185 = vld [vmem:[%s184] ss:$-1 sm:$0xff]
    %v186 = vrot.slane %v185, 5
    %v187 = vlaneseq
    %v188 = vshrl.u32 %v187, 7
    %vm189 = vcmp.lt.s32.totalorder %v188, 3
    %190 = vst.msk [vmem:[%s177] sm:$0xff] %vm189, %v186
    %s191 = scalar_lea.vmem [#allocation2], 24
    %s192 = scalar_lea.vmem [#allocation0], 48
    %s193 = scalar_lea.vmem %s192, 7 [#allocation0]
    %v194 = vld [vmem:[%s193] ss:$-1 sm:$0xff]
    %v195 = vrot.slane %v194, 5
    %196 = vst [vmem:[%s191] sm:$0xff] %v195
    %s197 = scalar_lea.vmem %s192, 8 [#allocation0]
    %s198 = scalar_lea.vmem %s197, 7 [#allocation0]
    %v199 = vld [vmem:[%s198] ss:$-1 sm:$0xff]
    %v200 = vrot.slane %v199, 5
    %v201 = vlaneseq
    %v202 = vshrl.u32 %v201, 7
    %vm203 = vcmp.lt.s32.totalorder %v202, 3
    %204 = vst.msk [vmem:[%s191] sm:$0xff] %vm203, %v200
    %s205 = scalar_lea.vmem [#allocation2], 32
    %s206 = scalar_lea.vmem [#allocation0], 64
    %s207 = scalar_lea.vmem %s206, 7 [#allocation0]
    %v208 = vld [vmem:[%s207] ss:$-1 sm:$0xff]
    %v209 = vrot.slane %v208, 5
    %210 = vst [vmem:[%s205] sm:$0xff] %v209
    %s211 = scalar_lea.vmem %s206, 8 [#allocation0]
    %s212 = scalar_lea.vmem %s211, 7 [#allocation0]
    %v213 = vld [vmem:[%s212] ss:$-1 sm:$0xff]
    %v214 = vrot.slane %v213, 5
    %v215 = vlaneseq
    %v216 = vshrl.u32 %v215, 7
    %vm217 = vcmp.lt.s32.totalorder %v216, 3
    %218 = vst.msk [vmem:[%s205] sm:$0xff] %vm217, %v214
    %s219 = scalar_lea.vmem [#allocation2], 40
    %s220 = scalar_lea.vmem [#allocation0], 80
    %s221 = scalar_lea.vmem %s220, 7 [#allocation0]
    %v222 = vld [vmem:[%s221] ss:$-1 sm:$0xff]
    %v223 = vrot.slane %v222, 5
    %224 = vst [vmem:[%s219] sm:$0xff] %v223
    %s225 = scalar_lea.vmem %s220, 8 [#allocation0]
    %s226 = scalar_lea.vmem %s225, 7 [#allocation0]
    %v227 = vld [vmem:[%s226] ss:$-1 sm:$0xff]
    %v228 = vrot.slane %v227, 5
    %v229 = vlaneseq
    %v230 = vshrl.u32 %v229, 7
    %vm231 = vcmp.lt.s32.totalorder %v230, 3
    %232 = vst.msk [vmem:[%s219] sm:$0xff] %vm231, %v228
    %s233 = scalar_lea.vmem [#allocation2], 48
    %s234 = scalar_lea.vmem [#allocation0], 96
    %s235 = scalar_lea.vmem %s234, 7 [#allocation0]
    %v236 = vld [vmem:[%s235] ss:$-1 sm:$0xff]
    %v237 = vrot.slane %v236, 5
    %238 = vst [vmem:[%s233] sm:$0xff] %v237
    %s239 = scalar_lea.vmem %s234, 8 [#allocation0]
    %s240 = scalar_lea.vmem %s239, 7 [#allocation0]
    %v241 = vld [vmem:[%s240] ss:$-1 sm:$0xff]
    %v242 = vrot.slane %v241, 5
    %v243 = vlaneseq
    %v244 = vshrl.u32 %v243, 7
    %vm245 = vcmp.lt.s32.totalorder %v244, 3
    %246 = vst.msk [vmem:[%s233] sm:$0xff] %vm245, %v242
    %s247 = scalar_lea.vmem [#allocation2], 56
    %s248 = scalar_lea.vmem [#allocation0], 112
    %s249 = scalar_lea.vmem %s248, 7 [#allocation0]
    %v250 = vld [vmem:[%s249] ss:$-1 sm:$0xff]
    %v251 = vrot.slane %v250, 5
    %252 = vst [vmem:[%s247] sm:$0xff] %v251
    %s253 = scalar_lea.vmem %s248, 8 [#allocation0]
    %s254 = scalar_lea.vmem %s253, 7 [#allocation0]
    %v255 = vld [vmem:[%s254] ss:$-1 sm:$0xff]
    %v256 = vrot.slane %v255, 5
    %v257 = vlaneseq
    %v258 = vshrl.u32 %v257, 7
    %vm259 = vcmp.lt.s32.totalorder %v258, 3
    %260 = vst.msk [vmem:[%s247] sm:$0xff] %vm259, %v256
    %s262 = sshll.u32 1, 4
    %s263 = ssub.s32 %s262, 1
    %v265 = vld [vmem:[#allocation2] sm:%s263]
    %s266 = sshll.u32 1, 4
    %s267 = ssub.s32 %s266, 1
    %268 = vst [vmem:[#allocation3] sm:%s267] %v265
    %s269 = scalar_lea.vmem [#allocation2], 8
    %v270 = vld [vmem:[%s269] sm:%s263]
    %s271 = sshll.u32 1, 4
    %s272 = ssub.s32 %s271, 1
    %s273 = scalar_lea.vmem [#allocation3], 4
    %274 = vst [vmem:[%s273] sm:%s272] %v270
    %s275 = scalar_lea.vmem [#allocation2], 16
    %v276 = vld [vmem:[%s275] sm:%s263]
    %s277 = sshll.u32 1, 4
    %s278 = ssub.s32 %s277, 1
    %s279 = smul.addr 4, 2
    %s280 = scalar_lea.vmem [#allocation3], %s279
    %281 = vst [vmem:[%s280] sm:%s278] %v276
    %s282 = scalar_lea.vmem [#allocation2], 24
    %v283 = vld [vmem:[%s282] sm:%s263]
    %s284 = sshll.u32 1, 4
    %s285 = ssub.s32 %s284, 1
    %s286 = smul.addr 4, 3
    %s287 = scalar_lea.vmem [#allocation3], %s286
    %288 = vst [vmem:[%s287] sm:%s285] %v283
    %s289 = scalar_lea.vmem [#allocation2], 32
    %v290 = vld [vmem:[%s289] sm:%s263]
    %s291 = sshll.u32 1, 4
    %s292 = ssub.s32 %s291, 1
    %s293 = smul.addr 4, 4
    %s294 = scalar_lea.vmem [#allocation3], %s293
    %295 = vst [vmem:[%s294] sm:%s292] %v290
    %s296 = scalar_lea.vmem [#allocation2], 40
    %v297 = vld [vmem:[%s296] sm:%s263]
    %s298 = sshll.u32 1, 4
    %s299 = ssub.s32 %s298, 1
    %s300 = smul.addr 4, 5
    %s301 = scalar_lea.vmem [#allocation3], %s300
    %302 = vst [vmem:[%s301] sm:%s299] %v297
    %s303 = scalar_lea.vmem [#allocation2], 48
    %v304 = vld [vmem:[%s303] sm:%s263]
    %s305 = sshll.u32 1, 4
    %s306 = ssub.s32 %s305, 1
    %s307 = smul.addr 4, 6
    %s308 = scalar_lea.vmem [#allocation3], %s307
    %309 = vst [vmem:[%s308] sm:%s306] %v304
    %s310 = scalar_lea.vmem [#allocation2], 56
    %v311 = vld [vmem:[%s310] sm:%s263]
    %s312 = sshll.u32 1, 4
    %s313 = ssub.s32 %s312, 1
    %s314 = smul.addr 4, 7
    %s315 = scalar_lea.vmem [#allocation3], %s314
    %316 = vst [vmem:[%s315] sm:%s313] %v311
    // Predicated region
    $region39: #{reverse.1} parent=1 // pred_check
      _
    $region40: #{reverse.1} parent=1 // pred_check_branch
      %318 = sbr.rel (0) target = $region42
    $region41: #{reverse.1} parent=1 // pred_region
      // Predicated region
      $region43: #{reverse.1} parent=41 // pred_check
        _
      $region44: #{reverse.1} parent=41 // pred_check_branch
        %320 = sbr.rel target = $region46
      $region45: #{reverse.1} parent=41 // pred_region
        // Predicated region
        $region58: #{reverse.1} parent=45 // pred_check
          _
        $region59: #{reverse.1} parent=45 // pred_check_branch
          %350 = sbr.rel (0) target = $region61
        $region60: #{reverse.1} parent=45 // pred_region
          loop: start=0, step=1, limit=1
          $region62: #{reverse.1} parent=60 // loop_pre_header
            _
          $region63: #{reverse.1} parent=60 // loop_header
            %s352 = sphi 0, %s356
            %p353 = scmp.ge.s32.totalorder %s352, 1
            %s357 = sphi [#allocation3], [#allocation3]
            %s358 = sphi %s1, %s1
          $region64: #{reverse.1} parent=60 // loop_header_branch
            %355 = sbr.rel (%p353) target = $region68
          $region65: #{reverse.1} parent=60 // loop_body
            _
          $region66: #{reverse.1} parent=60 // loop_footer
            %s356 = sadd.s32 1, %s352
          $region67: #{reverse.1} parent=60 // loop_footer_branch
            %351 = sbr.rel target = $region63
          $region68: #{reverse.1} parent=60 // loop_exit
            _
          %s360 = ssub.s32 16, 1
          loop: start=0, step=1, limit=1
          $region69: #{reverse.1} parent=60 // loop_pre_header
            _
          $region70: #{reverse.1} parent=60 // loop_header
            %s362 = sphi 0, %s366
            %p363 = scmp.ge.s32.totalorder %s362, 1
            %s367 = sphi [#allocation3], [#allocation3]
            %s368 = sphi %s1, %s1
          $region71: #{reverse.1} parent=60 // loop_header_branch
            %365 = sbr.rel (%p363) target = $region75
          $region72: #{reverse.1} parent=60 // loop_body
            %v369 = vld [vmem:[%s367] sm:%s360]
            %370 = vst [vmem:[%s368] sm:%s360] %v369
            %v371 = vld [vmem:[%s367 + $0x4] sm:%s360]
            %372 = vst [vmem:[%s368 + $0x4] sm:%s360] %v371
            %v373 = vld [vmem:[%s367 + $0x8] sm:%s360]
            %374 = vst [vmem:[%s368 + $0x8] sm:%s360] %v373
            %v375 = vld [vmem:[%s367 + $0xc] sm:%s360]
            %376 = vst [vmem:[%s368 + $0xc] sm:%s360] %v375
            %v377 = vld [vmem:[%s367 + $0x10] sm:%s360]
            %378 = vst [vmem:[%s368 + $0x10] sm:%s360] %v377
            %v379 = vld [vmem:[%s367 + $0x14] sm:%s360]
            %380 = vst [vmem:[%s368 + $0x14] sm:%s360] %v379
            %v381 = vld [vmem:[%s367 + $0x18] sm:%s360]
            %382 = vst [vmem:[%s368 + $0x18] sm:%s360] %v381
            %v383 = vld [vmem:[%s367 + $0x1c] sm:%s360]
            %384 = vst [vmem:[%s368 + $0x1c] sm:%s360] %v383
          $region73: #{reverse.1} parent=60 // loop_footer
            %s366 = sadd.s32 1, %s362
          $region74: #{reverse.1} parent=60 // loop_footer_branch
            %361 = sbr.rel target = $region70
          $region75: #{reverse.1} parent=60 // loop_exit
            _
        $region61: #{reverse.1} parent=45 // pred_fallthru
          _
      $region46: #{reverse.1} parent=41 // pred_fallthru
        _
      // Predicated region
      $region47: #{reverse.1} parent=41 // pred_check
        _
      $region48: #{reverse.1} parent=41 // pred_check_branch
        %322 = sbr.rel (0) target = $region50
      $region49: #{reverse.1} parent=41 // pred_region
        %s324 = ssub.s32 16, 1
        loop: start=0, step=1, limit=1
        $region51: #{reverse.1} parent=49 // loop_pre_header
          _
        $region52: #{reverse.1} parent=49 // loop_header
          %s326 = sphi 0, %s330
          %p327 = scmp.ge.s32.totalorder %s326, 1
          %s331 = sphi [#allocation3], [#allocation3]
          %s332 = sphi %s1, %s1
        $region53: #{reverse.1} parent=49 // loop_header_branch
          %329 = sbr.rel (%p327) target = $region57
        $region54: #{reverse.1} parent=49 // loop_body
          %v333 = vld [vmem:[%s331] sm:%s324]
          %334 = vst [vmem:[%s332] sm:%s324] %v333
          %v335 = vld [vmem:[%s331 + $0x4] sm:%s324]
          %336 = vst [vmem:[%s332 + $0x4] sm:%s324] %v335
          %v337 = vld [vmem:[%s331 + $0x8] sm:%s324]
          %338 = vst [vmem:[%s332 + $0x8] sm:%s324] %v337
          %v339 = vld [vmem:[%s331 + $0xc] sm:%s324]
          %340 = vst [vmem:[%s332 + $0xc] sm:%s324] %v339
          %v341 = vld [vmem:[%s331 + $0x10] sm:%s324]
          %342 = vst [vmem:[%s332 + $0x10] sm:%s324] %v341
          %v343 = vld [vmem:[%s331 + $0x14] sm:%s324]
          %344 = vst [vmem:[%s332 + $0x14] sm:%s324] %v343
          %v345 = vld [vmem:[%s331 + $0x18] sm:%s324]
          %346 = vst [vmem:[%s332 + $0x18] sm:%s324] %v345
          %v347 = vld [vmem:[%s331 + $0x1c] sm:%s324]
          %348 = vst [vmem:[%s332 + $0x1c] sm:%s324] %v347
        $region55: #{reverse.1} parent=49 // loop_footer
          %s330 = sadd.s32 1, %s326
        $region56: #{reverse.1} parent=49 // loop_footer_branch
          %325 = sbr.rel target = $region52
        $region57: #{reverse.1} parent=49 // loop_exit
          _
      $region50: #{reverse.1} parent=41 // pred_fallthru
        _
    $region42: #{reverse.1} parent=1 // pred_fallthru
      _
    %385 = vnop

// kernel: ffc_forward.6
$region0: #{ffc_forward.6}
  #allocation0 [shape = 'u32[]', space=smem, size = 0x4, offset = 0x4, fixed_abs, tag = 'smem constant byte address 0x4 - core index']
  #allocation1 [shape = 'u32[144,128]{1,0:T(1,128)}', space=vmem, size = 0x12000, scoped, tag = 'internal scratch']
  %s0 = inlined_call_operand.vmem [shape: bf16[8,8], index: 0, kind: input, shape index: {}]
  %s1 = inlined_call_operand.vmem [shape: bf16[2,8,128], index: 1, kind: input, shape index: {}]
  %s2 = inlined_call_operand.vmem [shape: f32[2,8,128], index: 2, kind: output, shape index: {}]
  %s3 = sld [smem:[#allocation0]]
  $region41: #{ffc_forward.6} parent=0
    _
  %s5 = ssub.s32 1, %s3
  %s6 = scalar_select 0, %s5, %s3
  loop: start=0, step=1, limit=4
  $region2: #{ffc_forward.6} parent=0 // loop_pre_header
    _
  $region3: #{ffc_forward.6} parent=0 // loop_header
    %s8 = sphi 0, %s12
    %p9 = scmp.ge.s32.totalorder %s8, 4
    %s15 = sphi 0, %s27
    %s16 = sphi 0, %s23
    %s17 = sphi 0, %s15
    %s18 = sphi 0, %s16
    %s19 = sphi 0, %s17
    %s20 = sphi 0, %s18
    %s28 = sphi 0, %s28
    %s30 = sphi 0, %s28
    %s31 = sphi 0, %s30
    %s45 = sphi 0, %s31
    %s53 = sphi 0, %s55
    %s56 = sphi 0, %s53
    %s57 = sphi 0, %s56
    %s73 = sphi 0, %s57
    %s81 = sphi 0, %s83
    %s84 = sphi 0, %s81
    %s85 = sphi 0, %s84
    %s101 = sphi 0, %s85
  $region4: #{ffc_forward.6} parent=0 // loop_header_branch
    %11 = sbr.rel (%p9) target = $region8
  $region5: #{ffc_forward.6} parent=0 // loop_body
    %s13 = ssub.s32 %s8, 1
    %s14 = ssub.s32 %s8, 2
    %s21 = sadd.s32 1, %s16
    %p22 = scmp.ge.s32.totalorder %s21, 1
    %s23 = scalar_select %p22, 0, %s21
    %s24 = sadd.s32 1, %s15
    %s25 = scalar_select %p22, %s24, %s15
    %p26 = scmp.ge.s32.totalorder %s25, 2
    %s27 = scalar_select %p26, 0, %s25
    %s29 = sadd.s32 %s28, 1
    %p32 = scmp.eq.s32.totalorder %s8, 1
    %p33 = scmp.ne.s32.totalorder %s28, %s30
    %p34 = scmp.eq.s32.totalorder %s8, 0
    %p35 = por %p33, %p34
    %p36 = scmp.ne.s32.totalorder %s28, %s30
    %p37 = scmp.eq.s32.totalorder %s13, 1
    %p38 = por %p36, %p37
    %p39 = scmp.ne.s32.totalorder %s30, %s31
    %p40 = scmp.eq.s32.totalorder %s13, 0
    %p41 = por %p39, %p40
    %p42 = scmp.ne.s32.totalorder %s30, %s31
    %p43 = scmp.eq.s32.totalorder %s14, 1
    %p44 = por %p42, %p43
    %p46 = scmp.ne.s32.totalorder %s31, %s45
    %p47 = scmp.eq.s32.totalorder %s14, 0
    %p48 = por %p46, %p47
    %s49 = ssub.s32 %s15, %s27
    %s50 = ssub.s32 %s16, %s23
    %s51 = sor.u32 %s49, %s50
    %p52 = scmp.eq.s32.totalorder %s51, 0
    %s54 = sadd.s32 %s53, 1
    %s55 = scalar_select %p52, %s53, %s54
    %p58 = pneg %p52
    %p59 = scmp.eq.s32.totalorder %s8, 1
    %p60 = por %p58, %p59
    %p61 = scmp.ne.s32.totalorder %s53, %s56
    %p62 = scmp.eq.s32.totalorder %s8, 0
    %p63 = por %p61, %p62
    %p64 = scmp.ne.s32.totalorder %s53, %s56
    %p65 = scmp.eq.s32.totalorder %s13, 1
    %p66 = por %p64, %p65
    %p67 = scmp.ne.s32.totalorder %s56, %s57
    %p68 = scmp.eq.s32.totalorder %s13, 0
    %p69 = por %p67, %p68
    %p70 = scmp.ne.s32.totalorder %s56, %s57
    %p71 = scmp.eq.s32.totalorder %s14, 1
    %p72 = por %p70, %p71
    %p74 = scmp.ne.s32.totalorder %s57, %s73
    %p75 = scmp.eq.s32.totalorder %s14, 0
    %p76 = por %p74, %p75
    %s77 = ssub.s32 %s15, %s27
    %s78 = ssub.s32 %s16, %s23
    %s79 = sor.u32 %s77, %s78
    %p80 = scmp.eq.s32.totalorder %s79, 0
    %s82 = sadd.s32 %s81, 1
    %s83 = scalar_select %p80, %s81, %s82
    %p86 = pneg %p80
    %p87 = scmp.eq.s32.totalorder %s8, 1
    %p88 = por %p86, %p87
    %p89 = scmp.ne.s32.totalorder %s81, %s84
    %p90 = scmp.eq.s32.totalorder %s8, 0
    %p91 = por %p89, %p90
    %p92 = scmp.ne.s32.totalorder %s81, %s84
    %p93 = scmp.eq.s32.totalorder %s13, 1
    %p94 = por %p92, %p93
    %p95 = scmp.ne.s32.totalorder %s84, %s85
    %p96 = scmp.eq.s32.totalorder %s13, 0
    %p97 = por %p95, %p96
    %p98 = scmp.ne.s32.totalorder %s84, %s85
    %p99 = scmp.eq.s32.totalorder %s14, 1
    %p100 = por %p98, %p99
    %p102 = scmp.ne.s32.totalorder %s85, %s101
    %p103 = scmp.eq.s32.totalorder %s14, 0
    %p104 = por %p102, %p103
    %p105 = scmp.le.s32.totalorder 1, %s8
    %p106 = scmp.lt.s32.totalorder %s8, 3
    %p107 = pnand %p105, %p106
    %p108 = pneg %p107
    // Predicated region
    $region9: #{ffc_forward.6} parent=5 // pred_check
      _
    $region10: #{ffc_forward.6} parent=5 // pred_check_branch
      %110 = sbr.rel (%p107) target = $region12
    $region11: #{ffc_forward.6} parent=5 // pred_region
      %s111 = ssub.s32 %s8, 1
      // Predicated region
      $region13: #{ffc_forward.6} parent=11 // pred_check
        %p112 = pneg %p41
      $region14: #{ffc_forward.6} parent=11 // pred_check_branch
        %114 = sbr.rel (%p112) target = $region16
      $region15: #{ffc_forward.6} parent=11 // pred_region
        _
      $region16: #{ffc_forward.6} parent=11 // pred_fallthru
        _
    $region12: #{ffc_forward.6} parent=5 // pred_fallthru
      _
    %p115 = scmp.lt.s32.totalorder %s8, 2
    // Predicated region
    $region17: #{ffc_forward.6} parent=5 // pred_check
      %p116 = pneg %p115
    $region18: #{ffc_forward.6} parent=5 // pred_check_branch
      %118 = sbr.rel (%p116) target = $region20
    $region19: #{ffc_forward.6} parent=5 // pred_region
      // Predicated region
      $region21: #{ffc_forward.6} parent=19 // pred_check
        %p119 = pneg %p63
      $region22: #{ffc_forward.6} parent=19 // pred_check_branch
        %121 = sbr.rel (%p119) target = $region24
      $region23: #{ffc_forward.6} parent=19 // pred_region
        %p122 = scmp.lt.s32.totalorder %s15, 1
        %s123 = scalar_select %p122, %s15, 1
        %p124 = scmp.lt.s32.totalorder %s16, 0
        %s125 = scalar_select %p124, %s16, 0
        %s126 = sadd.s32 %s125, %s123
        %s127 = smul.addr %s126, 4
        %s128 = scalar_lea.vmem %s1, %s127
      $region24: #{ffc_forward.6} parent=19 // pred_fallthru
        _
    $region20: #{ffc_forward.6} parent=5 // pred_fallthru
      _
    %p129 = scmp.le.s32.totalorder 1, %s8
    %p130 = scmp.lt.s32.totalorder %s8, 3
    %p131 = pnand %p129, %p130
    %p132 = pneg %p131
    // Predicated region
    $region25: #{ffc_forward.6} parent=5 // pred_check
      _
    $region26: #{ffc_forward.6} parent=5 // pred_check_branch
      %134 = sbr.rel (%p131) target = $region28
    $region27: #{ffc_forward.6} parent=5 // pred_region
      %s135 = ssub.s32 %s8, 1
      %p136 = pneg %p41
      %p137 = pneg %p38
      %p138 = scmp.lt.s32.totalorder %s17, 1
      %s139 = scalar_select %p138, %s17, 1
      %p140 = scmp.lt.s32.totalorder %s18, 0
      %s141 = scalar_select %p140, %s18, 0
      %s142 = sadd.s32 %s141, %s139
      %s143 = smul.addr %s142, 4
      %s144 = scalar_lea.vmem %s1, %s143
      %p145 = pneg %p69
      %p146 = pneg %p66
      %p147 = pneg %p97
      %p148 = pneg %p94
      %p149 = scmp.lt.s32.totalorder %s17, 1
      %s150 = scalar_select %p149, %s17, 1
      %p151 = scmp.lt.s32.totalorder %s18, 0
      %s152 = scalar_select %p151, %s18, 0
      %s153 = sadd.s32 %s152, %s150
      %s154 = smul.addr %s153, 8
      %s155 = scalar_lea.vmem %s2, %s154
      %p156 = scmp.lt.s32.totalorder %s17, 1
      %s157 = scalar_select %p156, %s17, 1
      %p158 = scmp.lt.s32.totalorder %s18, 0
      %s159 = scalar_select %p158, %s18, 0
      %s160 = sadd.s32 %s159, %s157
      %s161 = smul.addr %s160, 4
      %s162 = scalar_lea.vmem %s1, %s161
      %p163 = scmp.lt.s32.totalorder %s17, 1
      %s164 = scalar_select %p163, %s17, 1
      %p165 = scmp.lt.s32.totalorder %s18, 0
      %s166 = scalar_select %p165, %s18, 0
      %s167 = sadd.s32 %s166, %s164
      %s168 = smul.addr %s167, 8
      %s169 = scalar_lea.vmem %s2, %s168
      %v171 = vld [vmem:[%s0] sm:$0xf]
      %v172 = vld [vmem:[%s162] sm:$0xf]
      %vm173 = vcmask 64512
      %v175 = vsel %vm173, %v171, 0
      %vm177 = vcmask 1043456
      %v179 = vsel %vm177, %v172, 0
      %181 = vmatprep.subr.bf16.mxu0 0
      %182 = vmatpush1.bf16.msra.mxu0 0
      %183 = vmatprep.subr.bf16.mxu0 0
      %184 = vmatpush1.bf16.msra.mxu0 0
      %185 = vmatprep.subr.bf16.mxu0 0
      %186 = vmatpush1.bf16.msra.mxu0 0
      %187 = vmatprep.subr.bf16.mxu0 0
      %188 = vmatpush1.bf16.msra.mxu0 0
      %189 = vmatprep.subr.bf16.mxu0 0
      %190 = vmatpush1.bf16.msra.mxu0 0
      %191 = vmatprep.subr.bf16.mxu0 0
      %192 = vmatpush1.bf16.msra.mxu0 0
      %193 = vmatprep.subr.bf16.mxu0 0
      %194 = vmatpush1.bf16.msra.mxu0 0
      %195 = vmatprep.subr.bf16.mxu0 0
      %196 = vmatpush1.bf16.msra.mxu0 %v179
      %197 = vmatprep.subr.bf16.mxu0 0
      %198 = vmatpush2.bf16.msra.mxu0 0
      %199 = vmatprep.subr.bf16.mxu0 0
      %200 = vmatpush2.bf16.msra.mxu0 0
      %201 = vmatprep.subr.bf16.mxu0 0
      %202 = vmatpush2.bf16.msra.mxu0 0
      %203 = vmatprep.subr.bf16.mxu0 0
      %204 = vmatpush2.bf16.msra.mxu0 0
      %205 = vmatprep.subr.bf16.mxu0 0
      %206 = vmatpush2.bf16.msra.mxu0 0
      %207 = vmatprep.subr.bf16.mxu0 0
      %208 = vmatpush2.bf16.msra.mxu0 0
      %209 = vmatprep.subr.bf16.mxu0 0
      %210 = vmatpush2.bf16.msra.mxu0 0
      %211 = vmatprep.subr.bf16.mxu0 0
      %212 = vmatpush2.bf16.msra.mxu0 0
      %213 = vmatprep.mubr.bf16.mxu0 0
      %214 = vmatmul.mubr.bf16.gmra.mxu0 %v175
      %v215 = vpop.f32.mrf.mxu0
      %v216 = vadd.f32 0.0, %v215
      %v217 = vpop.f32.mrf.mxu0
      %v218 = vpop.f32.mrf.mxu0
      %v219 = vpop.f32.mrf.mxu0
      %220 = vdwg.mxu0
      %v221 = vmax.f32 %v216, 0.0
      %222 = vst [vmem:[%s169] sm:$0xff] %v221
      %p223 = scmp.lt.s32.totalorder %s17, 1
      %s224 = scalar_select %p223, %s17, 1
      %p225 = scmp.lt.s32.totalorder %s18, 0
      %s226 = scalar_select %p225, %s18, 0
      %s227 = sadd.s32 %s226, %s224
      %s228 = smul.addr %s227, 8
      %s229 = scalar_lea.vmem %s2, %s228
      // Predicated region
      $region29: #{ffc_forward.6} parent=27 // pred_check
        %p230 = pneg %p94
      $region30: #{ffc_forward.6} parent=27 // pred_check_branch
        %232 = sbr.rel (%p230) target = $region32
      $region31: #{ffc_forward.6} parent=27 // pred_region
        _
      $region32: #{ffc_forward.6} parent=27 // pred_fallthru
        _
    $region28: #{ffc_forward.6} parent=5 // pred_fallthru
      _
    %p233 = scmp.le.s32.totalorder 2, %s8
    // Predicated region
    $region33: #{ffc_forward.6} parent=5 // pred_check
      %p234 = pneg %p233
    $region34: #{ffc_forward.6} parent=5 // pred_check_branch
      %236 = sbr.rel (%p234) target = $region36
    $region35: #{ffc_forward.6} parent=5 // pred_region
      %s237 = ssub.s32 %s8, 2
      // Predicated region
      $region37: #{ffc_forward.6} parent=35 // pred_check
        %p238 = pneg %p100
      $region38: #{ffc_forward.6} parent=35 // pred_check_branch
        %240 = sbr.rel (%p238) target = $region40
      $region39: #{ffc_forward.6} parent=35 // pred_region
        %p241 = scmp.lt.s32.totalorder %s19, 1
        %s242 = scalar_select %p241, %s19, 1
        %p243 = scmp.lt.s32.totalorder %s20, 0
        %s244 = scalar_select %p243, %s20, 0
        %s245 = sadd.s32 %s244, %s242
        %s246 = smul.addr %s245, 8
        %s247 = scalar_lea.vmem %s2, %s246
      $region40: #{ffc_forward.6} parent=35 // pred_fallthru
        _
    $region36: #{ffc_forward.6} parent=5 // pred_fallthru
      _
  $region6: #{ffc_forward.6} parent=0 // loop_footer
    %s12 = sadd.s32 1, %s8
  $region7: #{ffc_forward.6} parent=0 // loop_footer_branch
    %7 = sbr.rel target = $region3
  $region8: #{ffc_forward.6} parent=0 // loop_exit
    _

// kernel: tile.9
$region0: #{tile.9}
  %s0 = inlined_call_operand.vmem [shape: f32[2,4,2,8,2,8], index: 0, kind: input, shape index: {}]
  %s1 = inlined_call_operand.vmem [shape: f32[2,4,16,16], index: 1, kind: output, shape index: {}]
  $region1: #{tile.9} parent=0
    #allocation0 [shape = 'u8[524288]{0}', space=vmem, size = 0x80000, scoped, tag = 'scoped mem for input reshape']
    %s3 = sshll.u32 1, 2
    %s4 = ssub.s32 %s3, 1
    %s5 = smul.addr 2, 127
    %s6 = scalar_lea.vmem %s0, %s5
    %v7 = vld [vmem:[%s6] sm:%s4]
    %s8 = scalar_lea.vmem [#allocation0], 1016
    %9 = vst [vmem:[%s8] sm:%s4] %v7
    %s10 = smul.addr 2, 126
    %s11 = scalar_lea.vmem %s0, %s10
    %v12 = vld [vmem:[%s11] sm:%s4]
    %s13 = scalar_lea.vmem [#allocation0], 1008
    %14 = vst [vmem:[%s13] sm:%s4] %v12
    %s15 = smul.addr 2, 125
    %s16 = scalar_lea.vmem %s0, %s15
    %v17 = vld [vmem:[%s16] sm:%s4]
    %s18 = scalar_lea.vmem [#allocation0], 1000
    %19 = vst [vmem:[%s18] sm:%s4] %v17
    %s20 = smul.addr 2, 124
    %s21 = scalar_lea.vmem %s0, %s20
    %v22 = vld [vmem:[%s21] sm:%s4]
    %s23 = scalar_lea.vmem [#allocation0], 992
    %24 = vst [vmem:[%s23] sm:%s4] %v22
    %s25 = smul.addr 2, 123
    %s26 = scalar_lea.vmem %s0, %s25
    %v27 = vld [vmem:[%s26] sm:%s4]
    %s28 = scalar_lea.vmem [#allocation0], 984
    %29 = vst [vmem:[%s28] sm:%s4] %v27
    %s30 = smul.addr 2, 122
    %s31 = scalar_lea.vmem %s0, %s30
    %v32 = vld [vmem:[%s31] sm:%s4]
    %s33 = scalar_lea.vmem [#allocation0], 976
    %34 = vst [vmem:[%s33] sm:%s4] %v32
    %s35 = smul.addr 2, 121
    %s36 = scalar_lea.vmem %s0, %s35
    %v37 = vld [vmem:[%s36] sm:%s4]
    %s38 = scalar_lea.vmem [#allocation0], 968
    %39 = vst [vmem:[%s38] sm:%s4] %v37
    %s40 = smul.addr 2, 120
    %s41 = scalar_lea.vmem %s0, %s40
    %v42 = vld [vmem:[%s41] sm:%s4]
    %s43 = scalar_lea.vmem [#allocation0], 960
    %44 = vst [vmem:[%s43] sm:%s4] %v42
    %s45 = smul.addr 2, 119
    %s46 = scalar_lea.vmem %s0, %s45
    %v47 = vld [vmem:[%s46] sm:%s4]
    %s48 = scalar_lea.vmem [#allocation0], 952
    %49 = vst [vmem:[%s48] sm:%s4] %v47
    %s50 = smul.addr 2, 118
    %s51 = scalar_lea.vmem %s0, %s50
    %v52 = vld [vmem:[%s51] sm:%s4]
    %s53 = scalar_lea.vmem [#allocation0], 944
    %54 = vst [vmem:[%s53] sm:%s4] %v52
    %s55 = smul.addr 2, 117
    %s56 = scalar_lea.vmem %s0, %s55
    %v57 = vld [vmem:[%s56] sm:%s4]
    %s58 = scalar_lea.vmem [#allocation0], 936
    %59 = vst [vmem:[%s58] sm:%s4] %v57
    %s60 = smul.addr 2, 116
    %s61 = scalar_lea.vmem %s0, %s60
    %v62 = vld [vmem:[%s61] sm:%s4]
    %s63 = scalar_lea.vmem [#allocation0], 928
    %64 = vst [vmem:[%s63] sm:%s4] %v62
    %s65 = smul.addr 2, 115
    %s66 = scalar_lea.vmem %s0, %s65
    %v67 = vld [vmem:[%s66] sm:%s4]
    %s68 = scalar_lea.vmem [#allocation0], 920
    %69 = vst [vmem:[%s68] sm:%s4] %v67
    %s70 = smul.addr 2, 114
    %s71 = scalar_lea.vmem %s0, %s70
    %v72 = vld [vmem:[%s71] sm:%s4]
    %s73 = scalar_lea.vmem [#allocation0], 912
    %74 = vst [vmem:[%s73] sm:%s4] %v72
    %s75 = smul.addr 2, 113
    %s76 = scalar_lea.vmem %s0, %s75
    %v77 = vld [vmem:[%s76] sm:%s4]
    %s78 = scalar_lea.vmem [#allocation0], 904
    %79 = vst [vmem:[%s78] sm:%s4] %v77
    %s80 = smul.addr 2, 112
    %s81 = scalar_lea.vmem %s0, %s80
    %v82 = vld [vmem:[%s81] sm:%s4]
    %s83 = scalar_lea.vmem [#allocation0], 896
    %84 = vst [vmem:[%s83] sm:%s4] %v82
    %s85 = smul.addr 2, 111
    %s86 = scalar_lea.vmem %s0, %s85
    %v87 = vld [vmem:[%s86] sm:%s4]
    %s88 = scalar_lea.vmem [#allocation0], 888
    %89 = vst [vmem:[%s88] sm:%s4] %v87
    %s90 = smul.addr 2, 110
    %s91 = scalar_lea.vmem %s0, %s90
    %v92 = vld [vmem:[%s91] sm:%s4]
    %s93 = scalar_lea.vmem [#allocation0], 880
    %94 = vst [vmem:[%s93] sm:%s4] %v92
    %s95 = smul.addr 2, 109
    %s96 = scalar_lea.vmem %s0, %s95
    %v97 = vld [vmem:[%s96] sm:%s4]
    %s98 = scalar_lea.vmem [#allocation0], 872
    %99 = vst [vmem:[%s98] sm:%s4] %v97
    %s100 = smul.addr 2, 108
    %s101 = scalar_lea.vmem %s0, %s100
    %v102 = vld [vmem:[%s101] sm:%s4]
    %s103 = scalar_lea.vmem [#allocation0], 864
    %104 = vst [vmem:[%s103] sm:%s4] %v102
    %s105 = smul.addr 2, 107
    %s106 = scalar_lea.vmem %s0, %s105
    %v107 = vld [vmem:[%s106] sm:%s4]
    %s108 = scalar_lea.vmem [#allocation0], 856
    %109 = vst [vmem:[%s108] sm:%s4] %v107
    %s110 = smul.addr 2, 106
    %s111 = scalar_lea.vmem %s0, %s110
    %v112 = vld [vmem:[%s111] sm:%s4]
    %s113 = scalar_lea.vmem [#allocation0], 848
    %114 = vst [vmem:[%s113] sm:%s4] %v112
    %s115 = smul.addr 2, 105
    %s116 = scalar_lea.vmem %s0, %s115
    %v117 = vld [vmem:[%s116] sm:%s4]
    %s118 = scalar_lea.vmem [#allocation0], 840
    %119 = vst [vmem:[%s118] sm:%s4] %v117
    %s120 = smul.addr 2, 104
    %s121 = scalar_lea.vmem %s0, %s120
    %v122 = vld [vmem:[%s121] sm:%s4]
    %s123 = scalar_lea.vmem [#allocation0], 832
    %124 = vst [vmem:[%s123] sm:%s4] %v122
    %s125 = smul.addr 2, 103
    %s126 = scalar_lea.vmem %s0, %s125
    %v127 = vld [vmem:[%s126] sm:%s4]
    %s128 = scalar_lea.vmem [#allocation0], 824
    %129 = vst [vmem:[%s128] sm:%s4] %v127
    %s130 = smul.addr 2, 102
    %s131 = scalar_lea.vmem %s0, %s130
    %v132 = vld [vmem:[%s131] sm:%s4]
    %s133 = scalar_lea.vmem [#allocation0], 816
    %134 = vst [vmem:[%s133] sm:%s4] %v132
    %s135 = smul.addr 2, 101
    %s136 = scalar_lea.vmem %s0, %s135
    %v137 = vld [vmem:[%s136] sm:%s4]
    %s138 = scalar_lea.vmem [#allocation0], 808
    %139 = vst [vmem:[%s138] sm:%s4] %v137
    %s140 = smul.addr 2, 100
    %s141 = scalar_lea.vmem %s0, %s140
    %v142 = vld [vmem:[%s141] sm:%s4]
    %s143 = scalar_lea.vmem [#allocation0], 800
    %144 = vst [vmem:[%s143] sm:%s4] %v142
    %s145 = smul.addr 2, 99
    %s146 = scalar_lea.vmem %s0, %s145
    %v147 = vld [vmem:[%s146] sm:%s4]
    %s148 = scalar_lea.vmem [#allocation0], 792
    %149 = vst [vmem:[%s148] sm:%s4] %v147
    %s150 = smul.addr 2, 98
    %s151 = scalar_lea.vmem %s0, %s150
    %v152 = vld [vmem:[%s151] sm:%s4]
    %s153 = scalar_lea.vmem [#allocation0], 784
    %154 = vst [vmem:[%s153] sm:%s4] %v152
    %s155 = smul.addr 2, 97
    %s156 = scalar_lea.vmem %s0, %s155
    %v157 = vld [vmem:[%s156] sm:%s4]
    %s158 = scalar_lea.vmem [#allocation0], 776
    %159 = vst [vmem:[%s158] sm:%s4] %v157
    %s160 = smul.addr 2, 96
    %s161 = scalar_lea.vmem %s0, %s160
    %v162 = vld [vmem:[%s161] sm:%s4]
    %s163 = scalar_lea.vmem [#allocation0], 768
    %164 = vst [vmem:[%s163] sm:%s4] %v162
    %s165 = smul.addr 2, 95
    %s166 = scalar_lea.vmem %s0, %s165
    %v167 = vld [vmem:[%s166] sm:%s4]
    %s168 = scalar_lea.vmem [#allocation0], 760
    %169 = vst [vmem:[%s168] sm:%s4] %v167
    %s170 = smul.addr 2, 94
    %s171 = scalar_lea.vmem %s0, %s170
    %v172 = vld [vmem:[%s171] sm:%s4]
    %s173 = scalar_lea.vmem [#allocation0], 752
    %174 = vst [vmem:[%s173] sm:%s4] %v172
    %s175 = smul.addr 2, 93
    %s176 = scalar_lea.vmem %s0, %s175
    %v177 = vld [vmem:[%s176] sm:%s4]
    %s178 = scalar_lea.vmem [#allocation0], 744
    %179 = vst [vmem:[%s178] sm:%s4] %v177
    %s180 = smul.addr 2, 92
    %s181 = scalar_lea.vmem %s0, %s180
    %v182 = vld [vmem:[%s181] sm:%s4]
    %s183 = scalar_lea.vmem [#allocation0], 736
    %184 = vst [vmem:[%s183] sm:%s4] %v182
    %s185 = smul.addr 2, 91
    %s186 = scalar_lea.vmem %s0, %s185
    %v187 = vld [vmem:[%s186] sm:%s4]
    %s188 = scalar_lea.vmem [#allocation0], 728
    %189 = vst [vmem:[%s188] sm:%s4] %v187
    %s190 = smul.addr 2, 90
    %s191 = scalar_lea.vmem %s0, %s190
    %v192 = vld [vmem:[%s191] sm:%s4]
    %s193 = scalar_lea.vmem [#allocation0], 720
    %194 = vst [vmem:[%s193] sm:%s4] %v192
    %s195 = smul.addr 2, 89
    %s196 = scalar_lea.vmem %s0, %s195
    %v197 = vld [vmem:[%s196] sm:%s4]
    %s198 = scalar_lea.vmem [#allocation0], 712
    %199 = vst [vmem:[%s198] sm:%s4] %v197
    %s200 = smul.addr 2, 88
    %s201 = scalar_lea.vmem %s0, %s200
    %v202 = vld [vmem:[%s201] sm:%s4]
    %s203 = scalar_lea.vmem [#allocation0], 704
    %204 = vst [vmem:[%s203] sm:%s4] %v202
    %s205 = smul.addr 2, 87
    %s206 = scalar_lea.vmem %s0, %s205
    %v207 = vld [vmem:[%s206] sm:%s4]
    %s208 = scalar_lea.vmem [#allocation0], 696
    %209 = vst [vmem:[%s208] sm:%s4] %v207
    %s210 = smul.addr 2, 86
    %s211 = scalar_lea.vmem %s0, %s210
    %v212 = vld [vmem:[%s211] sm:%s4]
    %s213 = scalar_lea.vmem [#allocation0], 688
    %214 = vst [vmem:[%s213] sm:%s4] %v212
    %s215 = smul.addr 2, 85
    %s216 = scalar_lea.vmem %s0, %s215
    %v217 = vld [vmem:[%s216] sm:%s4]
    %s218 = scalar_lea.vmem [#allocation0], 680
    %219 = vst [vmem:[%s218] sm:%s4] %v217
    %s220 = smul.addr 2, 84
    %s221 = scalar_lea.vmem %s0, %s220
    %v222 = vld [vmem:[%s221] sm:%s4]
    %s223 = scalar_lea.vmem [#allocation0], 672
    %224 = vst [vmem:[%s223] sm:%s4] %v222
    %s225 = smul.addr 2, 83
    %s226 = scalar_lea.vmem %s0, %s225
    %v227 = vld [vmem:[%s226] sm:%s4]
    %s228 = scalar_lea.vmem [#allocation0], 664
    %229 = vst [vmem:[%s228] sm:%s4] %v227
    %s230 = smul.addr 2, 82
    %s231 = scalar_lea.vmem %s0, %s230
    %v232 = vld [vmem:[%s231] sm:%s4]
    %s233 = scalar_lea.vmem [#allocation0], 656
    %234 = vst [vmem:[%s233] sm:%s4] %v232
    %s235 = smul.addr 2, 81
    %s236 = scalar_lea.vmem %s0, %s235
    %v237 = vld [vmem:[%s236] sm:%s4]
    %s238 = scalar_lea.vmem [#allocation0], 648
    %239 = vst [vmem:[%s238] sm:%s4] %v237
    %s240 = smul.addr 2, 80
    %s241 = scalar_lea.vmem %s0, %s240
    %v242 = vld [vmem:[%s241] sm:%s4]
    %s243 = scalar_lea.vmem [#allocation0], 640
    %244 = vst [vmem:[%s243] sm:%s4] %v242
    %s245 = smul.addr 2, 79
    %s246 = scalar_lea.vmem %s0, %s245
    %v247 = vld [vmem:[%s246] sm:%s4]
    %s248 = scalar_lea.vmem [#allocation0], 632
    %249 = vst [vmem:[%s248] sm:%s4] %v247
    %s250 = smul.addr 2, 78
    %s251 = scalar_lea.vmem %s0, %s250
    %v252 = vld [vmem:[%s251] sm:%s4]
    %s253 = scalar_lea.vmem [#allocation0], 624
    %254 = vst [vmem:[%s253] sm:%s4] %v252
    %s255 = smul.addr 2, 77
    %s256 = scalar_lea.vmem %s0, %s255
    %v257 = vld [vmem:[%s256] sm:%s4]
    %s258 = scalar_lea.vmem [#allocation0], 616
    %259 = vst [vmem:[%s258] sm:%s4] %v257
    %s260 = smul.addr 2, 76
    %s261 = scalar_lea.vmem %s0, %s260
    %v262 = vld [vmem:[%s261] sm:%s4]
    %s263 = scalar_lea.vmem [#allocation0], 608
    %264 = vst [vmem:[%s263] sm:%s4] %v262
    %s265 = smul.addr 2, 75
    %s266 = scalar_lea.vmem %s0, %s265
    %v267 = vld [vmem:[%s266] sm:%s4]
    %s268 = scalar_lea.vmem [#allocation0], 600
    %269 = vst [vmem:[%s268] sm:%s4] %v267
    %s270 = smul.addr 2, 74
    %s271 = scalar_lea.vmem %s0, %s270
    %v272 = vld [vmem:[%s271] sm:%s4]
    %s273 = scalar_lea.vmem [#allocation0], 592
    %274 = vst [vmem:[%s273] sm:%s4] %v272
    %s275 = smul.addr 2, 73
    %s276 = scalar_lea.vmem %s0, %s275
    %v277 = vld [vmem:[%s276] sm:%s4]
    %s278 = scalar_lea.vmem [#allocation0], 584
    %279 = vst [vmem:[%s278] sm:%s4] %v277
    %s280 = smul.addr 2, 72
    %s281 = scalar_lea.vmem %s0, %s280
    %v282 = vld [vmem:[%s281] sm:%s4]
    %s283 = scalar_lea.vmem [#allocation0], 576
    %284 = vst [vmem:[%s283] sm:%s4] %v282
    %s285 = smul.addr 2, 71
    %s286 = scalar_lea.vmem %s0, %s285
    %v287 = vld [vmem:[%s286] sm:%s4]
    %s288 = scalar_lea.vmem [#allocation0], 568
    %289 = vst [vmem:[%s288] sm:%s4] %v287
    %s290 = smul.addr 2, 70
    %s291 = scalar_lea.vmem %s0, %s290
    %v292 = vld [vmem:[%s291] sm:%s4]
    %s293 = scalar_lea.vmem [#allocation0], 560
    %294 = vst [vmem:[%s293] sm:%s4] %v292
    %s295 = smul.addr 2, 69
    %s296 = scalar_lea.vmem %s0, %s295
    %v297 = vld [vmem:[%s296] sm:%s4]
    %s298 = scalar_lea.vmem [#allocation0], 552
    %299 = vst [vmem:[%s298] sm:%s4] %v297
    %s300 = smul.addr 2, 68
    %s301 = scalar_lea.vmem %s0, %s300
    %v302 = vld [vmem:[%s301] sm:%s4]
    %s303 = scalar_lea.vmem [#allocation0], 544
    %304 = vst [vmem:[%s303] sm:%s4] %v302
    %s305 = smul.addr 2, 67
    %s306 = scalar_lea.vmem %s0, %s305
    %v307 = vld [vmem:[%s306] sm:%s4]
    %s308 = scalar_lea.vmem [#allocation0], 536
    %309 = vst [vmem:[%s308] sm:%s4] %v307
    %s310 = smul.addr 2, 66
    %s311 = scalar_lea.vmem %s0, %s310
    %v312 = vld [vmem:[%s311] sm:%s4]
    %s313 = scalar_lea.vmem [#allocation0], 528
    %314 = vst [vmem:[%s313] sm:%s4] %v312
    %s315 = smul.addr 2, 65
    %s316 = scalar_lea.vmem %s0, %s315
    %v317 = vld [vmem:[%s316] sm:%s4]
    %s318 = scalar_lea.vmem [#allocation0], 520
    %319 = vst [vmem:[%s318] sm:%s4] %v317
    %s320 = smul.addr 2, 64
    %s321 = scalar_lea.vmem %s0, %s320
    %v322 = vld [vmem:[%s321] sm:%s4]
    %s323 = scalar_lea.vmem [#allocation0], 512
    %324 = vst [vmem:[%s323] sm:%s4] %v322
    %s325 = smul.addr 2, 63
    %s326 = scalar_lea.vmem %s0, %s325
    %v327 = vld [vmem:[%s326] sm:%s4]
    %s328 = scalar_lea.vmem [#allocation0], 504
    %329 = vst [vmem:[%s328] sm:%s4] %v327
    %s330 = smul.addr 2, 62
    %s331 = scalar_lea.vmem %s0, %s330
    %v332 = vld [vmem:[%s331] sm:%s4]
    %s333 = scalar_lea.vmem [#allocation0], 496
    %334 = vst [vmem:[%s333] sm:%s4] %v332
    %s335 = smul.addr 2, 61
    %s336 = scalar_lea.vmem %s0, %s335
    %v337 = vld [vmem:[%s336] sm:%s4]
    %s338 = scalar_lea.vmem [#allocation0], 488
    %339 = vst [vmem:[%s338] sm:%s4] %v337
    %s340 = smul.addr 2, 60
    %s341 = scalar_lea.vmem %s0, %s340
    %v342 = vld [vmem:[%s341] sm:%s4]
    %s343 = scalar_lea.vmem [#allocation0], 480
    %344 = vst [vmem:[%s343] sm:%s4] %v342
    %s345 = smul.addr 2, 59
    %s346 = scalar_lea.vmem %s0, %s345
    %v347 = vld [vmem:[%s346] sm:%s4]
    %s348 = scalar_lea.vmem [#allocation0], 472
    %349 = vst [vmem:[%s348] sm:%s4] %v347
    %s350 = smul.addr 2, 58
    %s351 = scalar_lea.vmem %s0, %s350
    %v352 = vld [vmem:[%s351] sm:%s4]
    %s353 = scalar_lea.vmem [#allocation0], 464
    %354 = vst [vmem:[%s353] sm:%s4] %v352
    %s355 = smul.addr 2, 57
    %s356 = scalar_lea.vmem %s0, %s355
    %v357 = vld [vmem:[%s356] sm:%s4]
    %s358 = scalar_lea.vmem [#allocation0], 456
    %359 = vst [vmem:[%s358] sm:%s4] %v357
    %s360 = smul.addr 2, 56
    %s361 = scalar_lea.vmem %s0, %s360
    %v362 = vld [vmem:[%s361] sm:%s4]
    %s363 = scalar_lea.vmem [#allocation0], 448
    %364 = vst [vmem:[%s363] sm:%s4] %v362
    %s365 = smul.addr 2, 55
    %s366 = scalar_lea.vmem %s0, %s365
    %v367 = vld [vmem:[%s366] sm:%s4]
    %s368 = scalar_lea.vmem [#allocation0], 440
    %369 = vst [vmem:[%s368] sm:%s4] %v367
    %s370 = smul.addr 2, 54
    %s371 = scalar_lea.vmem %s0, %s370
    %v372 = vld [vmem:[%s371] sm:%s4]
    %s373 = scalar_lea.vmem [#allocation0], 432
    %374 = vst [vmem:[%s373] sm:%s4] %v372
    %s375 = smul.addr 2, 53
    %s376 = scalar_lea.vmem %s0, %s375
    %v377 = vld [vmem:[%s376] sm:%s4]
    %s378 = scalar_lea.vmem [#allocation0], 424
    %379 = vst [vmem:[%s378] sm:%s4] %v377
    %s380 = smul.addr 2, 52
    %s381 = scalar_lea.vmem %s0, %s380
    %v382 = vld [vmem:[%s381] sm:%s4]
    %s383 = scalar_lea.vmem [#allocation0], 416
    %384 = vst [vmem:[%s383] sm:%s4] %v382
    %s385 = smul.addr 2, 51
    %s386 = scalar_lea.vmem %s0, %s385
    %v387 = vld [vmem:[%s386] sm:%s4]
    %s388 = scalar_lea.vmem [#allocation0], 408
    %389 = vst [vmem:[%s388] sm:%s4] %v387
    %s390 = smul.addr 2, 50
    %s391 = scalar_lea.vmem %s0, %s390
    %v392 = vld [vmem:[%s391] sm:%s4]
    %s393 = scalar_lea.vmem [#allocation0], 400
    %394 = vst [vmem:[%s393] sm:%s4] %v392
    %s395 = smul.addr 2, 49
    %s396 = scalar_lea.vmem %s0, %s395
    %v397 = vld [vmem:[%s396] sm:%s4]
    %s398 = scalar_lea.vmem [#allocation0], 392
    %399 = vst [vmem:[%s398] sm:%s4] %v397
    %s400 = smul.addr 2, 48
    %s401 = scalar_lea.vmem %s0, %s400
    %v402 = vld [vmem:[%s401] sm:%s4]
    %s403 = scalar_lea.vmem [#allocation0], 384
    %404 = vst [vmem:[%s403] sm:%s4] %v402
    %s405 = smul.addr 2, 47
    %s406 = scalar_lea.vmem %s0, %s405
    %v407 = vld [vmem:[%s406] sm:%s4]
    %s408 = scalar_lea.vmem [#allocation0], 376
    %409 = vst [vmem:[%s408] sm:%s4] %v407
    %s410 = smul.addr 2, 46
    %s411 = scalar_lea.vmem %s0, %s410
    %v412 = vld [vmem:[%s411] sm:%s4]
    %s413 = scalar_lea.vmem [#allocation0], 368
    %414 = vst [vmem:[%s413] sm:%s4] %v412
    %s415 = smul.addr 2, 45
    %s416 = scalar_lea.vmem %s0, %s415
    %v417 = vld [vmem:[%s416] sm:%s4]
    %s418 = scalar_lea.vmem [#allocation0], 360
    %419 = vst [vmem:[%s418] sm:%s4] %v417
    %s420 = smul.addr 2, 44
    %s421 = scalar_lea.vmem %s0, %s420
    %v422 = vld [vmem:[%s421] sm:%s4]
    %s423 = scalar_lea.vmem [#allocation0], 352
    %424 = vst [vmem:[%s423] sm:%s4] %v422
    %s425 = smul.addr 2, 43
    %s426 = scalar_lea.vmem %s0, %s425
    %v427 = vld [vmem:[%s426] sm:%s4]
    %s428 = scalar_lea.vmem [#allocation0], 344
    %429 = vst [vmem:[%s428] sm:%s4] %v427
    %s430 = smul.addr 2, 42
    %s431 = scalar_lea.vmem %s0, %s430
    %v432 = vld [vmem:[%s431] sm:%s4]
    %s433 = scalar_lea.vmem [#allocation0], 336
    %434 = vst [vmem:[%s433] sm:%s4] %v432
    %s435 = smul.addr 2, 41
    %s436 = scalar_lea.vmem %s0, %s435
    %v437 = vld [vmem:[%s436] sm:%s4]
    %s438 = scalar_lea.vmem [#allocation0], 328
    %439 = vst [vmem:[%s438] sm:%s4] %v437
    %s440 = smul.addr 2, 40
    %s441 = scalar_lea.vmem %s0, %s440
    %v442 = vld [vmem:[%s441] sm:%s4]
    %s443 = scalar_lea.vmem [#allocation0], 320
    %444 = vst [vmem:[%s443] sm:%s4] %v442
    %s445 = smul.addr 2, 39
    %s446 = scalar_lea.vmem %s0, %s445
    %v447 = vld [vmem:[%s446] sm:%s4]
    %s448 = scalar_lea.vmem [#allocation0], 312
    %449 = vst [vmem:[%s448] sm:%s4] %v447
    %s450 = smul.addr 2, 38
    %s451 = scalar_lea.vmem %s0, %s450
    %v452 = vld [vmem:[%s451] sm:%s4]
    %s453 = scalar_lea.vmem [#allocation0], 304
    %454 = vst [vmem:[%s453] sm:%s4] %v452
    %s455 = smul.addr 2, 37
    %s456 = scalar_lea.vmem %s0, %s455
    %v457 = vld [vmem:[%s456] sm:%s4]
    %s458 = scalar_lea.vmem [#allocation0], 296
    %459 = vst [vmem:[%s458] sm:%s4] %v457
    %s460 = smul.addr 2, 36
    %s461 = scalar_lea.vmem %s0, %s460
    %v462 = vld [vmem:[%s461] sm:%s4]
    %s463 = scalar_lea.vmem [#allocation0], 288
    %464 = vst [vmem:[%s463] sm:%s4] %v462
    %s465 = smul.addr 2, 35
    %s466 = scalar_lea.vmem %s0, %s465
    %v467 = vld [vmem:[%s466] sm:%s4]
    %s468 = scalar_lea.vmem [#allocation0], 280
    %469 = vst [vmem:[%s468] sm:%s4] %v467
    %s470 = smul.addr 2, 34
    %s471 = scalar_lea.vmem %s0, %s470
    %v472 = vld [vmem:[%s471] sm:%s4]
    %s473 = scalar_lea.vmem [#allocation0], 272
    %474 = vst [vmem:[%s473] sm:%s4] %v472
    %s475 = smul.addr 2, 33
    %s476 = scalar_lea.vmem %s0, %s475
    %v477 = vld [vmem:[%s476] sm:%s4]
    %s478 = scalar_lea.vmem [#allocation0], 264
    %479 = vst [vmem:[%s478] sm:%s4] %v477
    %s480 = smul.addr 2, 32
    %s481 = scalar_lea.vmem %s0, %s480
    %v482 = vld [vmem:[%s481] sm:%s4]
    %s483 = scalar_lea.vmem [#allocation0], 256
    %484 = vst [vmem:[%s483] sm:%s4] %v482
    %s485 = smul.addr 2, 31
    %s486 = scalar_lea.vmem %s0, %s485
    %v487 = vld [vmem:[%s486] sm:%s4]
    %s488 = scalar_lea.vmem [#allocation0], 248
    %489 = vst [vmem:[%s488] sm:%s4] %v487
    %s490 = smul.addr 2, 30
    %s491 = scalar_lea.vmem %s0, %s490
    %v492 = vld [vmem:[%s491] sm:%s4]
    %s493 = scalar_lea.vmem [#allocation0], 240
    %494 = vst [vmem:[%s493] sm:%s4] %v492
    %s495 = smul.addr 2, 29
    %s496 = scalar_lea.vmem %s0, %s495
    %v497 = vld [vmem:[%s496] sm:%s4]
    %s498 = scalar_lea.vmem [#allocation0], 232
    %499 = vst [vmem:[%s498] sm:%s4] %v497
    %s500 = smul.addr 2, 28
    %s501 = scalar_lea.vmem %s0, %s500
    %v502 = vld [vmem:[%s501] sm:%s4]
    %s503 = scalar_lea.vmem [#allocation0], 224
    %504 = vst [vmem:[%s503] sm:%s4] %v502
    %s505 = smul.addr 2, 27
    %s506 = scalar_lea.vmem %s0, %s505
    %v507 = vld [vmem:[%s506] sm:%s4]
    %s508 = scalar_lea.vmem [#allocation0], 216
    %509 = vst [vmem:[%s508] sm:%s4] %v507
    %s510 = smul.addr 2, 26
    %s511 = scalar_lea.vmem %s0, %s510
    %v512 = vld [vmem:[%s511] sm:%s4]
    %s513 = scalar_lea.vmem [#allocation0], 208
    %514 = vst [vmem:[%s513] sm:%s4] %v512
    %s515 = smul.addr 2, 25
    %s516 = scalar_lea.vmem %s0, %s515
    %v517 = vld [vmem:[%s516] sm:%s4]
    %s518 = scalar_lea.vmem [#allocation0], 200
    %519 = vst [vmem:[%s518] sm:%s4] %v517
    %s520 = smul.addr 2, 24
    %s521 = scalar_lea.vmem %s0, %s520
    %v522 = vld [vmem:[%s521] sm:%s4]
    %s523 = scalar_lea.vmem [#allocation0], 192
    %524 = vst [vmem:[%s523] sm:%s4] %v522
    %s525 = smul.addr 2, 23
    %s526 = scalar_lea.vmem %s0, %s525
    %v527 = vld [vmem:[%s526] sm:%s4]
    %s528 = scalar_lea.vmem [#allocation0], 184
    %529 = vst [vmem:[%s528] sm:%s4] %v527
    %s530 = smul.addr 2, 22
    %s531 = scalar_lea.vmem %s0, %s530
    %v532 = vld [vmem:[%s531] sm:%s4]
    %s533 = scalar_lea.vmem [#allocation0], 176
    %534 = vst [vmem:[%s533] sm:%s4] %v532
    %s535 = smul.addr 2, 21
    %s536 = scalar_lea.vmem %s0, %s535
    %v537 = vld [vmem:[%s536] sm:%s4]
    %s538 = scalar_lea.vmem [#allocation0], 168
    %539 = vst [vmem:[%s538] sm:%s4] %v537
    %s540 = smul.addr 2, 20
    %s541 = scalar_lea.vmem %s0, %s540
    %v542 = vld [vmem:[%s541] sm:%s4]
    %s543 = scalar_lea.vmem [#allocation0], 160
    %544 = vst [vmem:[%s543] sm:%s4] %v542
    %s545 = smul.addr 2, 19
    %s546 = scalar_lea.vmem %s0, %s545
    %v547 = vld [vmem:[%s546] sm:%s4]
    %s548 = scalar_lea.vmem [#allocation0], 152
    %549 = vst [vmem:[%s548] sm:%s4] %v547
    %s550 = smul.addr 2, 18
    %s551 = scalar_lea.vmem %s0, %s550
    %v552 = vld [vmem:[%s551] sm:%s4]
    %s553 = scalar_lea.vmem [#allocation0], 144
    %554 = vst [vmem:[%s553] sm:%s4] %v552
    %s555 = smul.addr 2, 17
    %s556 = scalar_lea.vmem %s0, %s555
    %v557 = vld [vmem:[%s556] sm:%s4]
    %s558 = scalar_lea.vmem [#allocation0], 136
    %559 = vst [vmem:[%s558] sm:%s4] %v557
    %s560 = smul.addr 2, 16
    %s561 = scalar_lea.vmem %s0, %s560
    %v562 = vld [vmem:[%s561] sm:%s4]
    %s563 = scalar_lea.vmem [#allocation0], 128
    %564 = vst [vmem:[%s563] sm:%s4] %v562
    %s565 = smul.addr 2, 15
    %s566 = scalar_lea.vmem %s0, %s565
    %v567 = vld [vmem:[%s566] sm:%s4]
    %s568 = scalar_lea.vmem [#allocation0], 120
    %569 = vst [vmem:[%s568] sm:%s4] %v567
    %s570 = smul.addr 2, 14
    %s571 = scalar_lea.vmem %s0, %s570
    %v572 = vld [vmem:[%s571] sm:%s4]
    %s573 = scalar_lea.vmem [#allocation0], 112
    %574 = vst [vmem:[%s573] sm:%s4] %v572
    %s575 = smul.addr 2, 13
    %s576 = scalar_lea.vmem %s0, %s575
    %v577 = vld [vmem:[%s576] sm:%s4]
    %s578 = scalar_lea.vmem [#allocation0], 104
    %579 = vst [vmem:[%s578] sm:%s4] %v577
    %s580 = smul.addr 2, 12
    %s581 = scalar_lea.vmem %s0, %s580
    %v582 = vld [vmem:[%s581] sm:%s4]
    %s583 = scalar_lea.vmem [#allocation0], 96
    %584 = vst [vmem:[%s583] sm:%s4] %v582
    %s585 = smul.addr 2, 11
    %s586 = scalar_lea.vmem %s0, %s585
    %v587 = vld [vmem:[%s586] sm:%s4]
    %s588 = scalar_lea.vmem [#allocation0], 88
    %589 = vst [vmem:[%s588] sm:%s4] %v587
    %s590 = smul.addr 2, 10
    %s591 = scalar_lea.vmem %s0, %s590
    %v592 = vld [vmem:[%s591] sm:%s4]
    %s593 = scalar_lea.vmem [#allocation0], 80
    %594 = vst [vmem:[%s593] sm:%s4] %v592
    %s595 = smul.addr 2, 9
    %s596 = scalar_lea.vmem %s0, %s595
    %v597 = vld [vmem:[%s596] sm:%s4]
    %s598 = scalar_lea.vmem [#allocation0], 72
    %599 = vst [vmem:[%s598] sm:%s4] %v597
    %s600 = smul.addr 2, 8
    %s601 = scalar_lea.vmem %s0, %s600
    %v602 = vld [vmem:[%s601] sm:%s4]
    %s603 = scalar_lea.vmem [#allocation0], 64
    %604 = vst [vmem:[%s603] sm:%s4] %v602
    %s605 = smul.addr 2, 7
    %s606 = scalar_lea.vmem %s0, %s605
    %v607 = vld [vmem:[%s606] sm:%s4]
    %s608 = scalar_lea.vmem [#allocation0], 56
    %609 = vst [vmem:[%s608] sm:%s4] %v607
    %s610 = smul.addr 2, 6
    %s611 = scalar_lea.vmem %s0, %s610
    %v612 = vld [vmem:[%s611] sm:%s4]
    %s613 = scalar_lea.vmem [#allocation0], 48
    %614 = vst [vmem:[%s613] sm:%s4] %v612
    %s615 = smul.addr 2, 5
    %s616 = scalar_lea.vmem %s0, %s615
    %v617 = vld [vmem:[%s616] sm:%s4]
    %s618 = scalar_lea.vmem [#allocation0], 40
    %619 = vst [vmem:[%s618] sm:%s4] %v617
    %s620 = smul.addr 2, 4
    %s621 = scalar_lea.vmem %s0, %s620
    %v622 = vld [vmem:[%s621] sm:%s4]
    %s623 = scalar_lea.vmem [#allocation0], 32
    %624 = vst [vmem:[%s623] sm:%s4] %v622
    %s625 = smul.addr 2, 3
    %s626 = scalar_lea.vmem %s0, %s625
    %v627 = vld [vmem:[%s626] sm:%s4]
    %s628 = scalar_lea.vmem [#allocation0], 24
    %629 = vst [vmem:[%s628] sm:%s4] %v627
    %s630 = smul.addr 2, 2
    %s631 = scalar_lea.vmem %s0, %s630
    %v632 = vld [vmem:[%s631] sm:%s4]
    %s633 = scalar_lea.vmem [#allocation0], 16
    %634 = vst [vmem:[%s633] sm:%s4] %v632
    %s635 = scalar_lea.vmem %s0, 2
    %v636 = vld [vmem:[%s635] sm:%s4]
    %s637 = scalar_lea.vmem [#allocation0], 8
    %638 = vst [vmem:[%s637] sm:%s4] %v636
    %v639 = vld [vmem:[%s0] sm:%s4]
    %640 = vst [vmem:[#allocation0] sm:%s4] %v639
    %v641 = vld [vmem:[#allocation0] ss:$8 sm:$0xf]
    %v642 = vld [vmem:[#allocation0] ss:$8 sm:$0xf0]
    %vm643 = vcmask 1047556
    %v644 = vsel %vm643, %v642, %v641
    %vm645 = vcmask 64512
    %646 = vst.msk [vmem:[%s1] sm:$0xff] %vm645, %v644
    %s647 = scalar_lea.vmem [#allocation0], 64
    %v648 = vld [vmem:[%s647] ss:$8 sm:$0xf]
    %s649 = scalar_lea.vmem [#allocation0], 64
    %v650 = vld [vmem:[%s649] ss:$8 sm:$0xf0]
    %vm651 = vcmask 1047556
    %v652 = vsel %vm651, %v650, %v648
    %vm653 = vcmask 64512
    %s654 = scalar_lea.vmem %s1, 8
    %655 = vst.msk [vmem:[%s654] sm:$0xff] %vm653, %v652
    %s656 = scalar_lea.vmem [#allocation0], 128
    %v657 = vld [vmem:[%s656] ss:$8 sm:$0xf]
    %s658 = scalar_lea.vmem [#allocation0], 128
    %v659 = vld [vmem:[%s658] ss:$8 sm:$0xf0]
    %vm660 = vcmask 1047556
    %v661 = vsel %vm660, %v659, %v657
    %vm662 = vcmask 64512
    %s663 = scalar_lea.vmem %s1, 16
    %664 = vst.msk [vmem:[%s663] sm:$0xff] %vm662, %v661
    %s665 = scalar_lea.vmem [#allocation0], 192
    %v666 = vld [vmem:[%s665] ss:$8 sm:$0xf]
    %s667 = scalar_lea.vmem [#allocation0], 192
    %v668 = vld [vmem:[%s667] ss:$8 sm:$0xf0]
    %vm669 = vcmask 1047556
    %v670 = vsel %vm669, %v668, %v666
    %vm671 = vcmask 64512
    %s672 = scalar_lea.vmem %s1, 24
    %673 = vst.msk [vmem:[%s672] sm:$0xff] %vm671, %v670
    %s674 = scalar_lea.vmem [#allocation0], 256
    %v675 = vld [vmem:[%s674] ss:$8 sm:$0xf]
    %s676 = scalar_lea.vmem [#allocation0], 256
    %v677 = vld [vmem:[%s676] ss:$8 sm:$0xf0]
    %vm678 = vcmask 1047556
    %v679 = vsel %vm678, %v677, %v675
    %vm680 = vcmask 64512
    %s681 = scalar_lea.vmem %s1, 32
    %682 = vst.msk [vmem:[%s681] sm:$0xff] %vm680, %v679
    %s683 = scalar_lea.vmem [#allocation0], 320
    %v684 = vld [vmem:[%s683] ss:$8 sm:$0xf]
    %s685 = scalar_lea.vmem [#allocation0], 320
    %v686 = vld [vmem:[%s685] ss:$8 sm:$0xf0]
    %vm687 = vcmask 1047556
    %v688 = vsel %vm687, %v686, %v684
    %vm689 = vcmask 64512
    %s690 = scalar_lea.vmem %s1, 40
    %691 = vst.msk [vmem:[%s690] sm:$0xff] %vm689, %v688
    %s692 = scalar_lea.vmem [#allocation0], 384
    %v693 = vld [vmem:[%s692] ss:$8 sm:$0xf]
    %s694 = scalar_lea.vmem [#allocation0], 384
    %v695 = vld [vmem:[%s694] ss:$8 sm:$0xf0]
    %vm696 = vcmask 1047556
    %v697 = vsel %vm696, %v695, %v693
    %vm698 = vcmask 64512
    %s699 = scalar_lea.vmem %s1, 48
    %700 = vst.msk [vmem:[%s699] sm:$0xff] %vm698, %v697
    %s701 = scalar_lea.vmem [#allocation0], 448
    %v702 = vld [vmem:[%s701] ss:$8 sm:$0xf]
    %s703 = scalar_lea.vmem [#allocation0], 448
    %v704 = vld [vmem:[%s703] ss:$8 sm:$0xf0]
    %vm705 = vcmask 1047556
    %v706 = vsel %vm705, %v704, %v702
    %vm707 = vcmask 64512
    %s708 = scalar_lea.vmem %s1, 56
    %709 = vst.msk [vmem:[%s708] sm:$0xff] %vm707, %v706
    %s710 = scalar_lea.vmem [#allocation0], 512
    %v711 = vld [vmem:[%s710] ss:$8 sm:$0xf]
    %s712 = scalar_lea.vmem [#allocation0], 512
    %v713 = vld [vmem:[%s712] ss:$8 sm:$0xf0]
    %vm714 = vcmask 1047556
    %v715 = vsel %vm714, %v713, %v711
    %vm716 = vcmask 64512
    %s717 = scalar_lea.vmem %s1, 64
    %718 = vst.msk [vmem:[%s717] sm:$0xff] %vm716, %v715
    %s719 = scalar_lea.vmem [#allocation0], 576
    %v720 = vld [vmem:[%s719] ss:$8 sm:$0xf]
    %s721 = scalar_lea.vmem [#allocation0], 576
    %v722 = vld [vmem:[%s721] ss:$8 sm:$0xf0]
    %vm723 = vcmask 1047556
    %v724 = vsel %vm723, %v722, %v720
    %vm725 = vcmask 64512
    %s726 = scalar_lea.vmem %s1, 72
    %727 = vst.msk [vmem:[%s726] sm:$0xff] %vm725, %v724
    %s728 = scalar_lea.vmem [#allocation0], 640
    %v729 = vld [vmem:[%s728] ss:$8 sm:$0xf]
    %s730 = scalar_lea.vmem [#allocation0], 640
    %v731 = vld [vmem:[%s730] ss:$8 sm:$0xf0]
    %vm732 = vcmask 1047556
    %v733 = vsel %vm732, %v731, %v729
    %vm734 = vcmask 64512
    %s735 = scalar_lea.vmem %s1, 80
    %736 = vst.msk [vmem:[%s735] sm:$0xff] %vm734, %v733
    %s737 = scalar_lea.vmem [#allocation0], 704
    %v738 = vld [vmem:[%s737] ss:$8 sm:$0xf]
    %s739 = scalar_lea.vmem [#allocation0], 704
    %v740 = vld [vmem:[%s739] ss:$8 sm:$0xf0]
    %vm741 = vcmask 1047556
    %v742 = vsel %vm741, %v740, %v738
    %vm743 = vcmask 64512
    %s744 = scalar_lea.vmem %s1, 88
    %745 = vst.msk [vmem:[%s744] sm:$0xff] %vm743, %v742
    %s746 = scalar_lea.vmem [#allocation0], 768
    %v747 = vld [vmem:[%s746] ss:$8 sm:$0xf]
    %s748 = scalar_lea.vmem [#allocation0], 768
    %v749 = vld [vmem:[%s748] ss:$8 sm:$0xf0]
    %vm750 = vcmask 1047556
    %v751 = vsel %vm750, %v749, %v747
    %vm752 = vcmask 64512
    %s753 = scalar_lea.vmem %s1, 96
    %754 = vst.msk [vmem:[%s753] sm:$0xff] %vm752, %v751
    %s755 = scalar_lea.vmem [#allocation0], 832
    %v756 = vld [vmem:[%s755] ss:$8 sm:$0xf]
    %s757 = scalar_lea.vmem [#allocation0], 832
    %v758 = vld [vmem:[%s757] ss:$8 sm:$0xf0]
    %vm759 = vcmask 1047556
    %v760 = vsel %vm759, %v758, %v756
    %vm761 = vcmask 64512
    %s762 = scalar_lea.vmem %s1, 104
    %763 = vst.msk [vmem:[%s762] sm:$0xff] %vm761, %v760
    %s764 = scalar_lea.vmem [#allocation0], 896
    %v765 = vld [vmem:[%s764] ss:$8 sm:$0xf]
    %s766 = scalar_lea.vmem [#allocation0], 896
    %v767 = vld [vmem:[%s766] ss:$8 sm:$0xf0]
    %vm768 = vcmask 1047556
    %v769 = vsel %vm768, %v767, %v765
    %vm770 = vcmask 64512
    %s771 = scalar_lea.vmem %s1, 112
    %772 = vst.msk [vmem:[%s771] sm:$0xff] %vm770, %v769
    %s773 = scalar_lea.vmem [#allocation0], 960
    %v774 = vld [vmem:[%s773] ss:$8 sm:$0xf]
    %s775 = scalar_lea.vmem [#allocation0], 960
    %v776 = vld [vmem:[%s775] ss:$8 sm:$0xf0]
    %vm777 = vcmask 1047556
    %v778 = vsel %vm777, %v776, %v774
    %vm779 = vcmask 64512
    %s780 = scalar_lea.vmem %s1, 120
    %781 = vst.msk [vmem:[%s780] sm:$0xff] %vm779, %v778
    %s782 = scalar_lea.vmem [#allocation0], 1
    %v783 = vld [vmem:[%s782] ss:$8 sm:$0xf]
    %s784 = scalar_lea.vmem [#allocation0], 1
    %v785 = vld [vmem:[%s784] ss:$8 sm:$0xf0]
    %vm786 = vcmask 1047556
    %v787 = vsel %vm786, %v785, %v783
    %788 = vrot.lane.b32.xlu0 %v787, 8
    %v789 = vpop.permute.xlu0 %788
    %vm790 = vcmask 130112
    %791 = vst.msk [vmem:[%s1] sm:$0xff] %vm790, %v789
    %s792 = scalar_lea.vmem [#allocation0], 257
    %v793 = vld [vmem:[%s792] ss:$8 sm:$0xf]
    %s794 = scalar_lea.vmem [#allocation0], 257
    %v795 = vld [vmem:[%s794] ss:$8 sm:$0xf0]
    %vm796 = vcmask 1047556
    %v797 = vsel %vm796, %v795, %v793
    %798 = vrot.lane.b32.xlu0 %v797, 8
    %v799 = vpop.permute.xlu0 %798
    %vm800 = vcmask 130112
    %s801 = scalar_lea.vmem %s1, 32
    %802 = vst.msk [vmem:[%s801] sm:$0xff] %vm800, %v799
    %s803 = scalar_lea.vmem [#allocation0], 513
    %v804 = vld [vmem:[%s803] ss:$8 sm:$0xf]
    %s805 = scalar_lea.vmem [#allocation0], 513
    %v806 = vld [vmem:[%s805] ss:$8 sm:$0xf0]
    %vm807 = vcmask 1047556
    %v808 = vsel %vm807, %v806, %v804
    %809 = vrot.lane.b32.xlu0 %v808, 8
    %v810 = vpop.permute.xlu0 %809
    %vm811 = vcmask 130112
    %s812 = scalar_lea.vmem %s1, 64
    %813 = vst.msk [vmem:[%s812] sm:$0xff] %vm811, %v810
    %s814 = scalar_lea.vmem [#allocation0], 769
    %v815 = vld [vmem:[%s814] ss:$8 sm:$0xf]
    %s816 = scalar_lea.vmem [#allocation0], 769
    %v817 = vld [vmem:[%s816] ss:$8 sm:$0xf0]
    %vm818 = vcmask 1047556
    %v819 = vsel %vm818, %v817, %v815
    %820 = vrot.lane.b32.xlu0 %v819, 8
    %v821 = vpop.permute.xlu0 %820
    %vm822 = vcmask 130112
    %s823 = scalar_lea.vmem %s1, 96
    %824 = vst.msk [vmem:[%s823] sm:$0xff] %vm822, %v821
    %s825 = scalar_lea.vmem [#allocation0], 65
    %v826 = vld [vmem:[%s825] ss:$8 sm:$0xf]
    %s827 = scalar_lea.vmem [#allocation0], 65
    %v828 = vld [vmem:[%s827] ss:$8 sm:$0xf0]
    %vm829 = vcmask 1047556
    %v830 = vsel %vm829, %v828, %v826
    %831 = vrot.lane.b32.xlu0 %v830, 8
    %v832 = vpop.permute.xlu0 %831
    %vm833 = vcmask 130112
    %s834 = scalar_lea.vmem %s1, 8
    %835 = vst.msk [vmem:[%s834] sm:$0xff] %vm833, %v832
    %s836 = scalar_lea.vmem [#allocation0], 321
    %v837 = vld [vmem:[%s836] ss:$8 sm:$0xf]
    %s838 = scalar_lea.vmem [#allocation0], 321
    %v839 = vld [vmem:[%s838] ss:$8 sm:$0xf0]
    %vm840 = vcmask 1047556
    %v841 = vsel %vm840, %v839, %v837
    %842 = vrot.lane.b32.xlu0 %v841, 8
    %v843 = vpop.permute.xlu0 %842
    %vm844 = vcmask 130112
    %s845 = scalar_lea.vmem %s1, 40
    %846 = vst.msk [vmem:[%s845] sm:$0xff] %vm844, %v843
    %s847 = scalar_lea.vmem [#allocation0], 577
    %v848 = vld [vmem:[%s847] ss:$8 sm:$0xf]
    %s849 = scalar_lea.vmem [#allocation0], 577
    %v850 = vld [vmem:[%s849] ss:$8 sm:$0xf0]
    %vm851 = vcmask 1047556
    %v852 = vsel %vm851, %v850, %v848
    %853 = vrot.lane.b32.xlu0 %v852, 8
    %v854 = vpop.permute.xlu0 %853
    %vm855 = vcmask 130112
    %s856 = scalar_lea.vmem %s1, 72
    %857 = vst.msk [vmem:[%s856] sm:$0xff] %vm855, %v854
    %s858 = scalar_lea.vmem [#allocation0], 833
    %v859 = vld [vmem:[%s858] ss:$8 sm:$0xf]
    %s860 = scalar_lea.vmem [#allocation0], 833
    %v861 = vld [vmem:[%s860] ss:$8 sm:$0xf0]
    %vm862 = vcmask 1047556
    %v863 = vsel %vm862, %v861, %v859
    %864 = vrot.lane.b32.xlu0 %v863, 8
    %v865 = vpop.permute.xlu0 %864
    %vm866 = vcmask 130112
    %s867 = scalar_lea.vmem %s1, 104
    %868 = vst.msk [vmem:[%s867] sm:$0xff] %vm866, %v865
    %s869 = scalar_lea.vmem [#allocation0], 129
    %v870 = vld [vmem:[%s869] ss:$8 sm:$0xf]
    %s871 = scalar_lea.vmem [#allocation0], 129
    %v872 = vld [vmem:[%s871] ss:$8 sm:$0xf0]
    %vm873 = vcmask 1047556
    %v874 = vsel %vm873, %v872, %v870
    %875 = vrot.lane.b32.xlu0 %v874, 8
    %v876 = vpop.permute.xlu0 %875
    %vm877 = vcmask 130112
    %s878 = scalar_lea.vmem %s1, 16
    %879 = vst.msk [vmem:[%s878] sm:$0xff] %vm877, %v876
    %s880 = scalar_lea.vmem [#allocation0], 385
    %v881 = vld [vmem:[%s880] ss:$8 sm:$0xf]
    %s882 = scalar_lea.vmem [#allocation0], 385
    %v883 = vld [vmem:[%s882] ss:$8 sm:$0xf0]
    %vm884 = vcmask 1047556
    %v885 = vsel %vm884, %v883, %v881
    %886 = vrot.lane.b32.xlu0 %v885, 8
    %v887 = vpop.permute.xlu0 %886
    %vm888 = vcmask 130112
    %s889 = scalar_lea.vmem %s1, 48
    %890 = vst.msk [vmem:[%s889] sm:$0xff] %vm888, %v887
    %s891 = scalar_lea.vmem [#allocation0], 641
    %v892 = vld [vmem:[%s891] ss:$8 sm:$0xf]
    %s893 = scalar_lea.vmem [#allocation0], 641
    %v894 = vld [vmem:[%s893] ss:$8 sm:$0xf0]
    %vm895 = vcmask 1047556
    %v896 = vsel %vm895, %v894, %v892
    %897 = vrot.lane.b32.xlu0 %v896, 8
    %v898 = vpop.permute.xlu0 %897
    %vm899 = vcmask 130112
    %s900 = scalar_lea.vmem %s1, 80
    %901 = vst.msk [vmem:[%s900] sm:$0xff] %vm899, %v898
    %s902 = scalar_lea.vmem [#allocation0], 897
    %v903 = vld [vmem:[%s902] ss:$8 sm:$0xf]
    %s904 = scalar_lea.vmem [#allocation0], 897
    %v905 = vld [vmem:[%s904] ss:$8 sm:$0xf0]
    %vm906 = vcmask 1047556
    %v907 = vsel %vm906, %v905, %v903
    %908 = vrot.lane.b32.xlu0 %v907, 8
    %v909 = vpop.permute.xlu0 %908
    %vm910 = vcmask 130112
    %s911 = scalar_lea.vmem %s1, 112
    %912 = vst.msk [vmem:[%s911] sm:$0xff] %vm910, %v909
    %s913 = scalar_lea.vmem [#allocation0], 193
    %v914 = vld [vmem:[%s913] ss:$8 sm:$0xf]
    %s915 = scalar_lea.vmem [#allocation0], 193
    %v916 = vld [vmem:[%s915] ss:$8 sm:$0xf0]
    %vm917 = vcmask 1047556
    %v918 = vsel %vm917, %v916, %v914
    %919 = vrot.lane.b32.xlu0 %v918, 8
    %v920 = vpop.permute.xlu0 %919
    %vm921 = vcmask 130112
    %s922 = scalar_lea.vmem %s1, 24
    %923 = vst.msk [vmem:[%s922] sm:$0xff] %vm921, %v920
    %s924 = scalar_lea.vmem [#allocation0], 449
    %v925 = vld [vmem:[%s924] ss:$8 sm:$0xf]
    %s926 = scalar_lea.vmem [#allocation0], 449
    %v927 = vld [vmem:[%s926] ss:$8 sm:$0xf0]
    %vm928 = vcmask 1047556
    %v929 = vsel %vm928, %v927, %v925
    %930 = vrot.lane.b32.xlu0 %v929, 8
    %v931 = vpop.permute.xlu0 %930
    %vm932 = vcmask 130112
    %s933 = scalar_lea.vmem %s1, 56
    %934 = vst.msk [vmem:[%s933] sm:$0xff] %vm932, %v931
    %s935 = scalar_lea.vmem [#allocation0], 705
    %v936 = vld [vmem:[%s935] ss:$8 sm:$0xf]
    %s937 = scalar_lea.vmem [#allocation0], 705
    %v938 = vld [vmem:[%s937] ss:$8 sm:$0xf0]
    %vm939 = vcmask 1047556
    %v940 = vsel %vm939, %v938, %v936
    %941 = vrot.lane.b32.xlu0 %v940, 8
    %v942 = vpop.permute.xlu0 %941
    %vm943 = vcmask 130112
    %s944 = scalar_lea.vmem %s1, 88
    %945 = vst.msk [vmem:[%s944] sm:$0xff] %vm943, %v942
    %s946 = scalar_lea.vmem [#allocation0], 961
    %v947 = vld [vmem:[%s946] ss:$8 sm:$0xf]
    %s948 = scalar_lea.vmem [#allocation0], 961
    %v949 = vld [vmem:[%s948] ss:$8 sm:$0xf0]
    %vm950 = vcmask 1047556
    %v951 = vsel %vm950, %v949, %v947
    %952 = vrot.lane.b32.xlu0 %v951, 8
    %v953 = vpop.permute.xlu0 %952
    %vm954 = vcmask 130112
    %s955 = scalar_lea.vmem %s1, 120
    %956 = vst.msk [vmem:[%s955] sm:$0xff] %vm954, %v953

// kernel: ffc_forward.7
$region0: #{ffc_forward.7}
  #allocation0 [shape = 'u32[]', space=smem, size = 0x4, offset = 0x4, fixed_abs, tag = 'smem constant byte address 0x4 - core index']
  #allocation1 [shape = 'u32[144,128]{1,0:T(1,128)}', space=vmem, size = 0x12000, scoped, tag = 'internal scratch']
  %s0 = inlined_call_operand.vmem [shape: bf16[16,148], index: 0, kind: input, shape index: {}]
  %s1 = inlined_call_operand.vmem [shape: bf16[2,16,512], index: 1, kind: input, shape index: {}]
  %s2 = inlined_call_operand.vmem [shape: bf16[2,4,384], index: 2, kind: input, shape index: {}]
  %s3 = inlined_call_operand.vmem [shape: f32[2,16,384], index: 3, kind: output, shape index: {}]
  %s4 = sld [smem:[#allocation0]]
  $region45: #{ffc_forward.7} parent=0
    _
  %s6 = ssub.s32 1, %s4
  %s7 = scalar_select 0, %s6, %s4
  loop: start=0, step=1, limit=4
  $region2: #{ffc_forward.7} parent=0 // loop_pre_header
    _
  $region3: #{ffc_forward.7} parent=0 // loop_header
    %s9 = sphi 0, %s13
    %p10 = scmp.ge.s32.totalorder %s9, 4
    %s17 = sphi 0, %s17
    %s19 = sphi 0, %s17
    %s20 = sphi 0, %s19
    %s34 = sphi 0, %s20
    %s40 = sphi 0, %s42
    %s43 = sphi 0, %s40
    %s44 = sphi 0, %s43
    %s60 = sphi 0, %s44
    %s66 = sphi 0, %s68
    %s69 = sphi 0, %s66
    %s70 = sphi 0, %s69
    %s86 = sphi 0, %s70
    %s92 = sphi 0, %s94
    %s95 = sphi 0, %s92
    %s96 = sphi 0, %s95
    %s112 = sphi 0, %s96
  $region4: #{ffc_forward.7} parent=0 // loop_header_branch
    %12 = sbr.rel (%p10) target = $region8
  $region5: #{ffc_forward.7} parent=0 // loop_body
    %s14 = ssub.s32 %s9, 1
    %s15 = ssub.s32 %s9, 2
    %s16 = sadd.s32 %s9, 1
    %s18 = sadd.s32 %s17, 1
    %p21 = scmp.eq.s32.totalorder %s9, 1
    %p22 = scmp.ne.s32.totalorder %s17, %s19
    %p23 = scmp.eq.s32.totalorder %s9, 0
    %p24 = por %p22, %p23
    %p25 = scmp.ne.s32.totalorder %s17, %s19
    %p26 = scmp.eq.s32.totalorder %s14, 1
    %p27 = por %p25, %p26
    %p28 = scmp.ne.s32.totalorder %s19, %s20
    %p29 = scmp.eq.s32.totalorder %s14, 0
    %p30 = por %p28, %p29
    %p31 = scmp.ne.s32.totalorder %s19, %s20
    %p32 = scmp.eq.s32.totalorder %s15, 1
    %p33 = por %p31, %p32
    %p35 = scmp.ne.s32.totalorder %s20, %s34
    %p36 = scmp.eq.s32.totalorder %s15, 0
    %p37 = por %p35, %p36
    %s38 = ssub.s32 %s9, %s16
    %p39 = scmp.eq.s32.totalorder %s38, 0
    %s41 = sadd.s32 %s40, 1
    %s42 = scalar_select %p39, %s40, %s41
    %p45 = pneg %p39
    %p46 = scmp.eq.s32.totalorder %s9, 1
    %p47 = por %p45, %p46
    %p48 = scmp.ne.s32.totalorder %s40, %s43
    %p49 = scmp.eq.s32.totalorder %s9, 0
    %p50 = por %p48, %p49
    %p51 = scmp.ne.s32.totalorder %s40, %s43
    %p52 = scmp.eq.s32.totalorder %s14, 1
    %p53 = por %p51, %p52
    %p54 = scmp.ne.s32.totalorder %s43, %s44
    %p55 = scmp.eq.s32.totalorder %s14, 0
    %p56 = por %p54, %p55
    %p57 = scmp.ne.s32.totalorder %s43, %s44
    %p58 = scmp.eq.s32.totalorder %s15, 1
    %p59 = por %p57, %p58
    %p61 = scmp.ne.s32.totalorder %s44, %s60
    %p62 = scmp.eq.s32.totalorder %s15, 0
    %p63 = por %p61, %p62
    %s64 = ssub.s32 %s9, %s16
    %p65 = scmp.eq.s32.totalorder %s64, 0
    %s67 = sadd.s32 %s66, 1
    %s68 = scalar_select %p65, %s66, %s67
    %p71 = pneg %p65
    %p72 = scmp.eq.s32.totalorder %s9, 1
    %p73 = por %p71, %p72
    %p74 = scmp.ne.s32.totalorder %s66, %s69
    %p75 = scmp.eq.s32.totalorder %s9, 0
    %p76 = por %p74, %p75
    %p77 = scmp.ne.s32.totalorder %s66, %s69
    %p78 = scmp.eq.s32.totalorder %s14, 1
    %p79 = por %p77, %p78
    %p80 = scmp.ne.s32.totalorder %s69, %s70
    %p81 = scmp.eq.s32.totalorder %s14, 0
    %p82 = por %p80, %p81
    %p83 = scmp.ne.s32.totalorder %s69, %s70
    %p84 = scmp.eq.s32.totalorder %s15, 1
    %p85 = por %p83, %p84
    %p87 = scmp.ne.s32.totalorder %s70, %s86
    %p88 = scmp.eq.s32.totalorder %s15, 0
    %p89 = por %p87, %p88
    %s90 = ssub.s32 %s9, %s16
    %p91 = scmp.eq.s32.totalorder %s90, 0
    %s93 = sadd.s32 %s92, 1
    %s94 = scalar_select %p91, %s92, %s93
    %p97 = pneg %p91
    %p98 = scmp.eq.s32.totalorder %s9, 1
    %p99 = por %p97, %p98
    %p100 = scmp.ne.s32.totalorder %s92, %s95
    %p101 = scmp.eq.s32.totalorder %s9, 0
    %p102 = por %p100, %p101
    %p103 = scmp.ne.s32.totalorder %s92, %s95
    %p104 = scmp.eq.s32.totalorder %s14, 1
    %p105 = por %p103, %p104
    %p106 = scmp.ne.s32.totalorder %s95, %s96
    %p107 = scmp.eq.s32.totalorder %s14, 0
    %p108 = por %p106, %p107
    %p109 = scmp.ne.s32.totalorder %s95, %s96
    %p110 = scmp.eq.s32.totalorder %s15, 1
    %p111 = por %p109, %p110
    %p113 = scmp.ne.s32.totalorder %s96, %s112
    %p114 = scmp.eq.s32.totalorder %s15, 0
    %p115 = por %p113, %p114
    %p116 = scmp.le.s32.totalorder 1, %s9
    %p117 = scmp.lt.s32.totalorder %s9, 3
    %p118 = pnand %p116, %p117
    %p119 = pneg %p118
    // Predicated region
    $region9: #{ffc_forward.7} parent=5 // pred_check
      _
    $region10: #{ffc_forward.7} parent=5 // pred_check_branch
      %121 = sbr.rel (%p118) target = $region12
    $region11: #{ffc_forward.7} parent=5 // pred_region
      %s122 = ssub.s32 %s9, 1
      // Predicated region
      $region13: #{ffc_forward.7} parent=11 // pred_check
        %p123 = pneg %p30
      $region14: #{ffc_forward.7} parent=11 // pred_check_branch
        %125 = sbr.rel (%p123) target = $region16
      $region15: #{ffc_forward.7} parent=11 // pred_region
        _
      $region16: #{ffc_forward.7} parent=11 // pred_fallthru
        _
    $region12: #{ffc_forward.7} parent=5 // pred_fallthru
      _
    %p126 = scmp.lt.s32.totalorder %s9, 2
    // Predicated region
    $region17: #{ffc_forward.7} parent=5 // pred_check
      %p127 = pneg %p126
    $region18: #{ffc_forward.7} parent=5 // pred_check_branch
      %129 = sbr.rel (%p127) target = $region20
    $region19: #{ffc_forward.7} parent=5 // pred_region
      // Predicated region
      $region21: #{ffc_forward.7} parent=19 // pred_check
        %p130 = pneg %p50
      $region22: #{ffc_forward.7} parent=19 // pred_check_branch
        %132 = sbr.rel (%p130) target = $region24
      $region23: #{ffc_forward.7} parent=19 // pred_region
        %p133 = scmp.lt.s32.totalorder %s9, 1
        %s134 = scalar_select %p133, %s9, 1
        %s135 = smul.addr %s134, 8
        %s136 = smul.addr %s135, 4
        %s137 = scalar_lea.vmem %s1, %s136
      $region24: #{ffc_forward.7} parent=19 // pred_fallthru
        _
      // Predicated region
      $region25: #{ffc_forward.7} parent=19 // pred_check
        %p138 = pneg %p76
      $region26: #{ffc_forward.7} parent=19 // pred_check_branch
        %140 = sbr.rel (%p138) target = $region28
      $region27: #{ffc_forward.7} parent=19 // pred_region
        %p141 = scmp.lt.s32.totalorder %s9, 1
        %s142 = scalar_select %p141, %s9, 1
        %s143 = smul.addr %s142, 3
        %s144 = smul.addr %s143, 2
        %s145 = scalar_lea.vmem %s2, %s144
      $region28: #{ffc_forward.7} parent=19 // pred_fallthru
        _
    $region20: #{ffc_forward.7} parent=5 // pred_fallthru
      _
    %p146 = scmp.le.s32.totalorder 1, %s9
    %p147 = scmp.lt.s32.totalorder %s9, 3
    %p148 = pnand %p146, %p147
    %p149 = pneg %p148
    // Predicated region
    $region29: #{ffc_forward.7} parent=5 // pred_check
      _
    $region30: #{ffc_forward.7} parent=5 // pred_check_branch
      %151 = sbr.rel (%p148) target = $region32
    $region31: #{ffc_forward.7} parent=5 // pred_region
      %s152 = ssub.s32 %s9, 1
      %p153 = pneg %p30
      %p154 = pneg %p27
      %p155 = scmp.lt.s32.totalorder %s14, 1
      %s156 = scalar_select %p155, %s14, 1
      %s157 = smul.addr %s156, 8
      %s158 = smul.addr %s157, 4
      %s159 = scalar_lea.vmem %s1, %s158
      %p160 = pneg %p56
      %p161 = pneg %p53
      %p162 = scmp.lt.s32.totalorder %s14, 1
      %s163 = scalar_select %p162, %s14, 1
      %s164 = smul.addr %s163, 3
      %s165 = smul.addr %s164, 2
      %s166 = scalar_lea.vmem %s2, %s165
      %p167 = pneg %p82
      %p168 = pneg %p79
      %p169 = pneg %p108
      %p170 = pneg %p105
      %p171 = scmp.lt.s32.totalorder %s14, 1
      %s172 = scalar_select %p171, %s14, 1
      %s173 = smul.addr %s172, 6
      %s174 = smul.addr %s173, 8
      %s175 = scalar_lea.vmem %s3, %s174
      %p176 = scmp.lt.s32.totalorder %s14, 1
      %s177 = scalar_select %p176, %s14, 1
      %s178 = smul.addr %s177, 8
      %s179 = smul.addr %s178, 4
      %s180 = scalar_lea.vmem %s1, %s179
      %p181 = scmp.lt.s32.totalorder %s14, 1
      %s182 = scalar_select %p181, %s14, 1
      %s183 = smul.addr %s182, 3
      %s184 = smul.addr %s183, 2
      %s185 = scalar_lea.vmem %s2, %s184
      %p186 = scmp.lt.s32.totalorder %s14, 1
      %s187 = scalar_select %p186, %s14, 1
      %s188 = smul.addr %s187, 6
      %s189 = smul.addr %s188, 8
      %s190 = scalar_lea.vmem %s3, %s189
      %v192 = vld [vmem:[%s0 + $0x4] sm:$0xf]
      %v193 = vld [vmem:[%s0 + $0xc] sm:$0xf]
      %v194 = vld [vmem:[%s185] sm:$0x3f]
      %v197 = vunpack.c.l.b16 %v192
      %v198 = vunpack.c.l.b16 %v193
      %v199 = vpack.c.b16 %v198, %v197
      %200 = vrot.lane.b32.xlu0 %v199, 112
      %v201 = vpop.permute.xlu0 %200
      %v203 = vcombine.high %v194, %v194
      %v205 = vunpack.c.l.s4 1983009808
      %v206 = vunpack.c.0.s8 %v205
      %v207 = vlaneseq
      %v208 = vshrl.u32 %v207, 7
      %v209 = vsub.s32 %v206, %v208
      %v210 = vrot.slane %v194, %v209
      %v212 = vunpack.c.l.s4 1983009808
      %v213 = vunpack.c.0.s8 %v212
      %v214 = vlaneseq
      %v215 = vshrl.u32 %v214, 7
      %v216 = vsub.s32 %v213, %v215
      %v217 = vrot.slane %v203, %v216
      %v218 = vcombine.high %v210, %v210
      %vm219 = vcmask 31744
      %v221 = vsel %vm219, %v201, 0
      %vm223 = vcmask 1041408
      %v225 = vsel %vm223, %v210, 0
      %v228 = vsel %vm223, %v218, 0
      %v231 = vsel %vm223, %v217, 0
      %233 = vmatprep.subr.bf16.mxu0 0
      %234 = vmatpush1.bf16.msra.mxu0 0
      %235 = vmatprep.subr.bf16.mxu0 0
      %236 = vmatpush1.bf16.msra.mxu0 0
      %237 = vmatprep.subr.bf16.mxu0 0
      %238 = vmatpush1.bf16.msra.mxu0 0
      %239 = vmatprep.subr.bf16.mxu0 0
      %240 = vmatpush1.bf16.msra.mxu0 0
      %241 = vmatprep.subr.bf16.mxu0 0
      %242 = vmatpush1.bf16.msra.mxu0 0
      %243 = vmatprep.subr.bf16.mxu0 0
      %244 = vmatpush1.bf16.msra.mxu0 0
      %245 = vmatprep.subr.bf16.mxu0 0
      %246 = vmatpush1.bf16.msra.mxu0 0
      %247 = vmatprep.subr.bf16.mxu0 %v228
      %248 = vmatpush1.bf16.msra.mxu0 %v225
      %249 = vmatprep.subr.bf16.mxu0 0
      %250 = vmatpush2.bf16.msra.mxu0 0
      %251 = vmatprep.subr.bf16.mxu0 0
      %252 = vmatpush2.bf16.msra.mxu0 0
      %253 = vmatprep.subr.bf16.mxu0 0
      %254 = vmatpush2.bf16.msra.mxu0 0
      %255 = vmatprep.subr.bf16.mxu0 0
      %256 = vmatpush2.bf16.msra.mxu0 0
      %257 = vmatprep.subr.bf16.mxu0 0
      %258 = vmatpush2.bf16.msra.mxu0 0
      %259 = vmatprep.subr.bf16.mxu0 0
      %260 = vmatpush2.bf16.msra.mxu0 0
      %261 = vmatprep.subr.bf16.mxu0 0
      %262 = vmatpush2.bf16.msra.mxu0 0
      %263 = vmatprep.subr.bf16.mxu0 0
      %264 = vmatpush2.bf16.msra.mxu0 0
      %265 = vmatprep.mubr.bf16.mxu0 0
      %266 = vmatmul.mubr.bf16.gmra.mxu0 %v221
      %v267 = vpop.f32.mrf.mxu0
      %v268 = vadd.f32 0.0, %v267
      %v269 = vpop.f32.mrf.mxu0
      %v270 = vadd.f32 0.0, %v269
      %v271 = vpop.f32.mrf.mxu0
      %v272 = vadd.f32 0.0, %v271
      %v273 = vpop.f32.mrf.mxu0
      %v274 = vadd.f32 0.0, %v273
      %275 = vdwg.mxu0
      %276 = vmatprep.subr.bf16.mxu0 0
      %277 = vmatpush1.bf16.msra.mxu0 0
      %278 = vmatprep.subr.bf16.mxu0 0
      %279 = vmatpush1.bf16.msra.mxu0 0
      %280 = vmatprep.subr.bf16.mxu0 0
      %281 = vmatpush1.bf16.msra.mxu0 0
      %282 = vmatprep.subr.bf16.mxu0 0
      %283 = vmatpush1.bf16.msra.mxu0 0
      %284 = vmatprep.subr.bf16.mxu0 0
      %285 = vmatpush1.bf16.msra.mxu0 0
      %286 = vmatprep.subr.bf16.mxu0 0
      %287 = vmatpush1.bf16.msra.mxu0 0
      %288 = vmatprep.subr.bf16.mxu0 0
      %289 = vmatpush1.bf16.msra.mxu0 0
      %290 = vmatprep.subr.bf16.mxu0 0
      %291 = vmatpush1.bf16.msra.mxu0 %v231
      %292 = vmatprep.subr.bf16.mxu0 0
      %293 = vmatpush2.bf16.msra.mxu0 0
      %294 = vmatprep.subr.bf16.mxu0 0
      %295 = vmatpush2.bf16.msra.mxu0 0
      %296 = vmatprep.subr.bf16.mxu0 0
      %297 = vmatpush2.bf16.msra.mxu0 0
      %298 = vmatprep.subr.bf16.mxu0 0
      %299 = vmatpush2.bf16.msra.mxu0 0
      %300 = vmatprep.subr.bf16.mxu0 0
      %301 = vmatpush2.bf16.msra.mxu0 0
      %302 = vmatprep.subr.bf16.mxu0 0
      %303 = vmatpush2.bf16.msra.mxu0 0
      %304 = vmatprep.subr.bf16.mxu0 0
      %305 = vmatpush2.bf16.msra.mxu0 0
      %306 = vmatprep.subr.bf16.mxu0 0
      %307 = vmatpush2.bf16.msra.mxu0 0
      %308 = vmatprep.mubr.bf16.mxu0 0
      %309 = vmatmul.mubr.bf16.gmra.mxu0 %v221
      %v310 = vpop.f32.mrf.mxu0
      %v311 = vadd.f32 0.0, %v310
      %v312 = vpop.f32.mrf.mxu0
      %v313 = vpop.f32.mrf.mxu0
      %v314 = vadd.f32 0.0, %v313
      %v315 = vpop.f32.mrf.mxu0
      %316 = vdwg.mxu0
      %317 = vst [vmem:[%s190] sm:$0xff] %v268
      %318 = vst [vmem:[%s190 + $0x8] sm:$0xff] %v270
      %319 = vst [vmem:[%s190 + $0x10] sm:$0xff] %v311
      %320 = vst [vmem:[%s190 + $0x18] sm:$0xff] %v272
      %321 = vst [vmem:[%s190 + $0x20] sm:$0xff] %v274
      %322 = vst [vmem:[%s190 + $0x28] sm:$0xff] %v314
      %v323 = vld [vmem:[%s190] sm:$0xff]
      %v324 = vld [vmem:[%s190 + $0x8] sm:$0xff]
      %v325 = vld [vmem:[%s190 + $0x10] sm:$0xff]
      %v326 = vld [vmem:[%s190 + $0x18] sm:$0xff]
      %v327 = vld [vmem:[%s190 + $0x20] sm:$0xff]
      %v328 = vld [vmem:[%s190 + $0x28] sm:$0xff]
      %v329 = vld [vmem:[%s0] sm:$0xf]
      %v330 = vld [vmem:[%s0 + $0x8] sm:$0xf]
      %v331 = vld [vmem:[%s180] sm:$0xff]
      %v332 = vld [vmem:[%s180 + $0x8] sm:$0xf]
      %v333 = vld [vmem:[%s180 + $0x10] sm:$0xff]
      %v334 = vld [vmem:[%s180 + $0x18] sm:$0xf]
      %v337 = vunpack.c.l.b16 %v329
      %v338 = vunpack.c.l.b16 %v330
      %v339 = vpack.c.b16 %v338, %v337
      %v344 = vunpack.c.l.b16 %v331
      %v345 = vunpack.c.h.b16 %v331
      %v346 = vunpack.c.l.b16 %v332
      %v347 = vunpack.c.l.b16 %v333
      %v348 = vunpack.c.h.b16 %v333
      %v349 = vunpack.c.l.b16 %v334
      %v350 = vpack.c.b16 %v347, %v344
      %v351 = vpack.c.b16 %v348, %v345
      %v352 = vpack.c.b16 %v349, %v346
      %vm356 = vcmask 130048
      %v358 = vsel %vm356, %v339, 0
      %360 = vmatprep.subr.bf16.mxu0 0
      %361 = vmatpush1.bf16.msra.mxu0 0
      %362 = vmatprep.subr.bf16.mxu0 0
      %363 = vmatpush1.bf16.msra.mxu0 0
      %364 = vmatprep.subr.bf16.mxu0 0
      %365 = vmatpush1.bf16.msra.mxu0 0
      %366 = vmatprep.subr.bf16.mxu0 0
      %367 = vmatpush1.bf16.msra.mxu0 0
      %368 = vmatprep.subr.bf16.mxu0 0
      %369 = vmatpush1.bf16.msra.mxu0 0
      %370 = vmatprep.subr.bf16.mxu0 0
      %371 = vmatpush1.bf16.msra.mxu0 0
      %372 = vmatprep.subr.bf16.mxu0 0
      %373 = vmatpush1.bf16.msra.mxu0 0
      %374 = vmatprep.subr.bf16.mxu0 %v351
      %375 = vmatpush1.bf16.msra.mxu0 %v350
      %376 = vmatprep.subr.bf16.mxu0 0
      %377 = vmatpush2.bf16.msra.mxu0 0
      %378 = vmatprep.subr.bf16.mxu0 0
      %379 = vmatpush2.bf16.msra.mxu0 0
      %380 = vmatprep.subr.bf16.mxu0 0
      %381 = vmatpush2.bf16.msra.mxu0 0
      %382 = vmatprep.subr.bf16.mxu0 0
      %383 = vmatpush2.bf16.msra.mxu0 0
      %384 = vmatprep.subr.bf16.mxu0 0
      %385 = vmatpush2.bf16.msra.mxu0 0
      %386 = vmatprep.subr.bf16.mxu0 0
      %387 = vmatpush2.bf16.msra.mxu0 0
      %388 = vmatprep.subr.bf16.mxu0 0
      %389 = vmatpush2.bf16.msra.mxu0 0
      %390 = vmatprep.subr.bf16.mxu0 0
      %391 = vmatpush2.bf16.msra.mxu0 0
      %392 = vmatprep.mubr.bf16.mxu0 0
      %393 = vmatmul.mubr.bf16.gmra.mxu0 %v358
      %v394 = vpop.f32.mrf.mxu0
      %v395 = vadd.f32 0.0, %v394
      %v396 = vpop.f32.mrf.mxu0
      %v397 = vadd.f32 0.0, %v396
      %v398 = vpop.f32.mrf.mxu0
      %v399 = vadd.f32 0.0, %v398
      %v400 = vpop.f32.mrf.mxu0
      %v401 = vadd.f32 0.0, %v400
      %402 = vdwg.mxu0
      %403 = vmatprep.subr.bf16.mxu0 0
      %404 = vmatpush1.bf16.msra.mxu0 0
      %405 = vmatprep.subr.bf16.mxu0 0
      %406 = vmatpush1.bf16.msra.mxu0 0
      %407 = vmatprep.subr.bf16.mxu0 0
      %408 = vmatpush1.bf16.msra.mxu0 0
      %409 = vmatprep.subr.bf16.mxu0 0
      %410 = vmatpush1.bf16.msra.mxu0 0
      %411 = vmatprep.subr.bf16.mxu0 0
      %412 = vmatpush1.bf16.msra.mxu0 0
      %413 = vmatprep.subr.bf16.mxu0 0
      %414 = vmatpush1.bf16.msra.mxu0 0
      %415 = vmatprep.subr.bf16.mxu0 0
      %416 = vmatpush1.bf16.msra.mxu0 0
      %417 = vmatprep.subr.bf16.mxu0 0
      %418 = vmatpush1.bf16.msra.mxu0 %v352
      %419 = vmatprep.subr.bf16.mxu0 0
      %420 = vmatpush2.bf16.msra.mxu0 0
      %421 = vmatprep.subr.bf16.mxu0 0
      %422 = vmatpush2.bf16.msra.mxu0 0
      %423 = vmatprep.subr.bf16.mxu0 0
      %424 = vmatpush2.bf16.msra.mxu0 0
      %425 = vmatprep.subr.bf16.mxu0 0
      %426 = vmatpush2.bf16.msra.mxu0 0
      %427 = vmatprep.subr.bf16.mxu0 0
      %428 = vmatpush2.bf16.msra.mxu0 0
      %429 = vmatprep.subr.bf16.mxu0 0
      %430 = vmatpush2.bf16.msra.mxu0 0
      %431 = vmatprep.subr.bf16.mxu0 0
      %432 = vmatpush2.bf16.msra.mxu0 0
      %433 = vmatprep.subr.bf16.mxu0 0
      %434 = vmatpush2.bf16.msra.mxu0 0
      %435 = vmatprep.mubr.bf16.mxu0 0
      %436 = vmatmul.mubr.bf16.gmra.mxu0 %v358
      %v437 = vpop.f32.mrf.mxu0
      %v438 = vadd.f32 0.0, %v437
      %v439 = vpop.f32.mrf.mxu0
      %v440 = vpop.f32.mrf.mxu0
      %v441 = vadd.f32 0.0, %v440
      %v442 = vpop.f32.mrf.mxu0
      %443 = vdwg.mxu0
      %v444 = vadd.f32 %v323, %v395
      %v445 = vadd.f32 %v324, %v397
      %v446 = vadd.f32 %v325, %v438
      %v447 = vadd.f32 %v326, %v399
      %v448 = vadd.f32 %v327, %v401
      %v449 = vadd.f32 %v328, %v441
      %450 = vst [vmem:[%s190] sm:$0xff] %v444
      %451 = vst [vmem:[%s190 + $0x8] sm:$0xff] %v445
      %452 = vst [vmem:[%s190 + $0x10] sm:$0xff] %v446
      %453 = vst [vmem:[%s190 + $0x18] sm:$0xff] %v447
      %454 = vst [vmem:[%s190 + $0x20] sm:$0xff] %v448
      %455 = vst [vmem:[%s190 + $0x28] sm:$0xff] %v449
      %v456 = vld [vmem:[%s190] sm:$0xff]
      %v457 = vld [vmem:[%s190 + $0x8] sm:$0xff]
      %v458 = vld [vmem:[%s190 + $0x10] sm:$0xff]
      %v459 = vld [vmem:[%s190 + $0x18] sm:$0xff]
      %v460 = vld [vmem:[%s190 + $0x20] sm:$0xff]
      %v461 = vld [vmem:[%s190 + $0x28] sm:$0xff]
      %v462 = vld [vmem:[%s0] sm:$0xf]
      %v463 = vld [vmem:[%s0 + $0x8] sm:$0xf]
      %v464 = vld [vmem:[%s180] sm:$0xff]
      %v465 = vld [vmem:[%s180 + $0x8] sm:$0xff]
      %v466 = vld [vmem:[%s180 + $0x10] sm:$0xff]
      %v467 = vld [vmem:[%s180 + $0x18] sm:$0xff]
      %v470 = vunpack.c.l.b16 %v462
      %v471 = vunpack.c.l.b16 %v463
      %v472 = vpack.c.b16 %v471, %v470
      %473 = vrot.lane.b32.xlu0 %v472, 112
      %v474 = vpop.permute.xlu0 %473
      %v479 = vunpack.c.l.b16 %v464
      %v480 = vunpack.c.h.b16 %v464
      %v481 = vunpack.c.l.b16 %v465
      %v482 = vunpack.c.h.b16 %v465
      %v483 = vunpack.c.l.b16 %v466
      %v484 = vunpack.c.h.b16 %v466
      %v485 = vunpack.c.l.b16 %v467
      %v486 = vunpack.c.h.b16 %v467
      %v487 = vpack.c.b16 %v483, %v479
      %v488 = vpack.c.b16 %v484, %v480
      %v489 = vpack.c.b16 %v485, %v481
      %v490 = vpack.c.b16 %v486, %v482
      %491 = vrot.lane.b32.xlu0 %v487, 127
      %v492 = vpop.permute.xlu0 %491
      %493 = vrot.lane.b32.xlu0 %v488, 127
      %v494 = vpop.permute.xlu0 %493
      %495 = vrot.lane.b32.xlu0 %v489, 127
      %v496 = vpop.permute.xlu0 %495
      %497 = vrot.lane.b32.xlu0 %v490, 127
      %v498 = vpop.permute.xlu0 %497
      %vm499 = vcmask 1039360
      %v500 = vsel %vm499, %v492, %v494
      %v501 = vsel %vm499, %v494, %v496
      %v502 = vsel %vm499, %v496, %v498
      %v507 = vsel %vm356, %v474, 0
      %509 = vmatprep.subr.bf16.mxu0 0
      %510 = vmatpush1.bf16.msra.mxu0 0
      %511 = vmatprep.subr.bf16.mxu0 0
      %512 = vmatpush1.bf16.msra.mxu0 0
      %513 = vmatprep.subr.bf16.mxu0 0
      %514 = vmatpush1.bf16.msra.mxu0 0
      %515 = vmatprep.subr.bf16.mxu0 0
      %516 = vmatpush1.bf16.msra.mxu0 0
      %517 = vmatprep.subr.bf16.mxu0 0
      %518 = vmatpush1.bf16.msra.mxu0 0
      %519 = vmatprep.subr.bf16.mxu0 0
      %520 = vmatpush1.bf16.msra.mxu0 0
      %521 = vmatprep.subr.bf16.mxu0 0
      %522 = vmatpush1.bf16.msra.mxu0 0
      %523 = vmatprep.subr.bf16.mxu0 %v501
      %524 = vmatpush1.bf16.msra.mxu0 %v500
      %525 = vmatprep.subr.bf16.mxu0 0
      %526 = vmatpush2.bf16.msra.mxu0 0
      %527 = vmatprep.subr.bf16.mxu0 0
      %528 = vmatpush2.bf16.msra.mxu0 0
      %529 = vmatprep.subr.bf16.mxu0 0
      %530 = vmatpush2.bf16.msra.mxu0 0
      %531 = vmatprep.subr.bf16.mxu0 0
      %532 = vmatpush2.bf16.msra.mxu0 0
      %533 = vmatprep.subr.bf16.mxu0 0
      %534 = vmatpush2.bf16.msra.mxu0 0
      %535 = vmatprep.subr.bf16.mxu0 0
      %536 = vmatpush2.bf16.msra.mxu0 0
      %537 = vmatprep.subr.bf16.mxu0 0
      %538 = vmatpush2.bf16.msra.mxu0 0
      %539 = vmatprep.subr.bf16.mxu0 0
      %540 = vmatpush2.bf16.msra.mxu0 0
      %541 = vmatprep.mubr.bf16.mxu0 0
      %542 = vmatmul.mubr.bf16.gmra.mxu0 %v507
      %v543 = vpop.f32.mrf.mxu0
      %v544 = vadd.f32 0.0, %v543
      %v545 = vpop.f32.mrf.mxu0
      %v546 = vadd.f32 0.0, %v545
      %v547 = vpop.f32.mrf.mxu0
      %v548 = vadd.f32 0.0, %v547
      %v549 = vpop.f32.mrf.mxu0
      %v550 = vadd.f32 0.0, %v549
      %551 = vdwg.mxu0
      %552 = vmatprep.subr.bf16.mxu0 0
      %553 = vmatpush1.bf16.msra.mxu0 0
      %554 = vmatprep.subr.bf16.mxu0 0
      %555 = vmatpush1.bf16.msra.mxu0 0
      %556 = vmatprep.subr.bf16.mxu0 0
      %557 = vmatpush1.bf16.msra.mxu0 0
      %558 = vmatprep.subr.bf16.mxu0 0
      %559 = vmatpush1.bf16.msra.mxu0 0
      %560 = vmatprep.subr.bf16.mxu0 0
      %561 = vmatpush1.bf16.msra.mxu0 0
      %562 = vmatprep.subr.bf16.mxu0 0
      %563 = vmatpush1.bf16.msra.mxu0 0
      %564 = vmatprep.subr.bf16.mxu0 0
      %565 = vmatpush1.bf16.msra.mxu0 0
      %566 = vmatprep.subr.bf16.mxu0 0
      %567 = vmatpush1.bf16.msra.mxu0 %v502
      %568 = vmatprep.subr.bf16.mxu0 0
      %569 = vmatpush2.bf16.msra.mxu0 0
      %570 = vmatprep.subr.bf16.mxu0 0
      %571 = vmatpush2.bf16.msra.mxu0 0
      %572 = vmatprep.subr.bf16.mxu0 0
      %573 = vmatpush2.bf16.msra.mxu0 0
      %574 = vmatprep.subr.bf16.mxu0 0
      %575 = vmatpush2.bf16.msra.mxu0 0
      %576 = vmatprep.subr.bf16.mxu0 0
      %577 = vmatpush2.bf16.msra.mxu0 0
      %578 = vmatprep.subr.bf16.mxu0 0
      %579 = vmatpush2.bf16.msra.mxu0 0
      %580 = vmatprep.subr.bf16.mxu0 0
      %581 = vmatpush2.bf16.msra.mxu0 0
      %582 = vmatprep.subr.bf16.mxu0 0
      %583 = vmatpush2.bf16.msra.mxu0 0
      %584 = vmatprep.mubr.bf16.mxu0 0
      %585 = vmatmul.mubr.bf16.gmra.mxu0 %v507
      %v586 = vpop.f32.mrf.mxu0
      %v587 = vadd.f32 0.0, %v586
      %v588 = vpop.f32.mrf.mxu0
      %v589 = vpop.f32.mrf.mxu0
      %v590 = vadd.f32 0.0, %v589
      %v591 = vpop.f32.mrf.mxu0
      %592 = vdwg.mxu0
      %v593 = vadd.f32 %v456, %v544
      %v594 = vadd.f32 %v457, %v546
      %v595 = vadd.f32 %v458, %v587
      %v596 = vadd.f32 %v459, %v548
      %v597 = vadd.f32 %v460, %v550
      %v598 = vadd.f32 %v461, %v590
      %599 = vst [vmem:[%s190] sm:$0xff] %v593
      %600 = vst [vmem:[%s190 + $0x8] sm:$0xff] %v594
      %601 = vst [vmem:[%s190 + $0x10] sm:$0xff] %v595
      %602 = vst [vmem:[%s190 + $0x18] sm:$0xff] %v596
      %603 = vst [vmem:[%s190 + $0x20] sm:$0xff] %v597
      %604 = vst [vmem:[%s190 + $0x28] sm:$0xff] %v598
      %v605 = vld [vmem:[%s190] sm:$0xff]
      %v606 = vld [vmem:[%s190 + $0x8] sm:$0xff]
      %v607 = vld [vmem:[%s190 + $0x10] sm:$0xff]
      %v608 = vld [vmem:[%s190 + $0x18] sm:$0xff]
      %v609 = vld [vmem:[%s190 + $0x20] sm:$0xff]
      %v610 = vld [vmem:[%s190 + $0x28] sm:$0xff]
      %v611 = vld [vmem:[%s0] sm:$0xf]
      %v612 = vld [vmem:[%s0 + $0x8] sm:$0xf]
      %v613 = vld [vmem:[%s180] sm:$0xff]
      %v614 = vld [vmem:[%s180 + $0x8] sm:$0xff]
      %v615 = vld [vmem:[%s180 + $0x10] sm:$0xff]
      %v616 = vld [vmem:[%s180 + $0x18] sm:$0xff]
      %v619 = vunpack.c.l.b16 %v611
      %v620 = vunpack.c.l.b16 %v612
      %v621 = vpack.c.b16 %v620, %v619
      %622 = vrot.lane.b32.xlu0 %v621, 96
      %v623 = vpop.permute.xlu0 %622
      %v628 = vunpack.c.l.b16 %v613
      %v629 = vunpack.c.h.b16 %v613
      %v630 = vunpack.c.l.b16 %v614
      %v631 = vunpack.c.h.b16 %v614
      %v632 = vunpack.c.l.b16 %v615
      %v633 = vunpack.c.h.b16 %v615
      %v634 = vunpack.c.l.b16 %v616
      %v635 = vunpack.c.h.b16 %v616
      %v636 = vpack.c.b16 %v632, %v628
      %v637 = vpack.c.b16 %v633, %v629
      %v638 = vpack.c.b16 %v634, %v630
      %v639 = vpack.c.b16 %v635, %v631
      %640 = vrot.lane.b32.xlu0 %v636, 126
      %v641 = vpop.permute.xlu0 %640
      %642 = vrot.lane.b32.xlu0 %v637, 126
      %v643 = vpop.permute.xlu0 %642
      %644 = vrot.lane.b32.xlu0 %v638, 126
      %v645 = vpop.permute.xlu0 %644
      %646 = vrot.lane.b32.xlu0 %v639, 126
      %v647 = vpop.permute.xlu0 %646
      %vm648 = vcmask 1031168
      %v649 = vsel %vm648, %v641, %v643
      %v650 = vsel %vm648, %v643, %v645
      %v651 = vsel %vm648, %v645, %v647
      %v656 = vsel %vm356, %v623, 0
      %658 = vmatprep.subr.bf16.mxu0 0
      %659 = vmatpush1.bf16.msra.mxu0 0
      %660 = vmatprep.subr.bf16.mxu0 0
      %661 = vmatpush1.bf16.msra.mxu0 0
      %662 = vmatprep.subr.bf16.mxu0 0
      %663 = vmatpush1.bf16.msra.mxu0 0
      %664 = vmatprep.subr.bf16.mxu0 0
      %665 = vmatpush1.bf16.msra.mxu0 0
      %666 = vmatprep.subr.bf16.mxu0 0
      %667 = vmatpush1.bf16.msra.mxu0 0
      %668 = vmatprep.subr.bf16.mxu0 0
      %669 = vmatpush1.bf16.msra.mxu0 0
      %670 = vmatprep.subr.bf16.mxu0 0
      %671 = vmatpush1.bf16.msra.mxu0 0
      %672 = vmatprep.subr.bf16.mxu0 %v650
      %673 = vmatpush1.bf16.msra.mxu0 %v649
      %674 = vmatprep.subr.bf16.mxu0 0
      %675 = vmatpush2.bf16.msra.mxu0 0
      %676 = vmatprep.subr.bf16.mxu0 0
      %677 = vmatpush2.bf16.msra.mxu0 0
      %678 = vmatprep.subr.bf16.mxu0 0
      %679 = vmatpush2.bf16.msra.mxu0 0
      %680 = vmatprep.subr.bf16.mxu0 0
      %681 = vmatpush2.bf16.msra.mxu0 0
      %682 = vmatprep.subr.bf16.mxu0 0
      %683 = vmatpush2.bf16.msra.mxu0 0
      %684 = vmatprep.subr.bf16.mxu0 0
      %685 = vmatpush2.bf16.msra.mxu0 0
      %686 = vmatprep.subr.bf16.mxu0 0
      %687 = vmatpush2.bf16.msra.mxu0 0
      %688 = vmatprep.subr.bf16.mxu0 0
      %689 = vmatpush2.bf16.msra.mxu0 0
      %690 = vmatprep.mubr.bf16.mxu0 0
      %691 = vmatmul.mubr.bf16.gmra.mxu0 %v656
      %v692 = vpop.f32.mrf.mxu0
      %v693 = vadd.f32 0.0, %v692
      %v694 = vpop.f32.mrf.mxu0
      %v695 = vadd.f32 0.0, %v694
      %v696 = vpop.f32.mrf.mxu0
      %v697 = vadd.f32 0.0, %v696
      %v698 = vpop.f32.mrf.mxu0
      %v699 = vadd.f32 0.0, %v698
      %700 = vdwg.mxu0
      %701 = vmatprep.subr.bf16.mxu0 0
      %702 = vmatpush1.bf16.msra.mxu0 0
      %703 = vmatprep.subr.bf16.mxu0 0
      %704 = vmatpush1.bf16.msra.mxu0 0
      %705 = vmatprep.subr.bf16.mxu0 0
      %706 = vmatpush1.bf16.msra.mxu0 0
      %707 = vmatprep.subr.bf16.mxu0 0
      %708 = vmatpush1.bf16.msra.mxu0 0
      %709 = vmatprep.subr.bf16.mxu0 0
      %710 = vmatpush1.bf16.msra.mxu0 0
      %711 = vmatprep.subr.bf16.mxu0 0
      %712 = vmatpush1.bf16.msra.mxu0 0
      %713 = vmatprep.subr.bf16.mxu0 0
      %714 = vmatpush1.bf16.msra.mxu0 0
      %715 = vmatprep.subr.bf16.mxu0 0
      %716 = vmatpush1.bf16.msra.mxu0 %v651
      %717 = vmatprep.subr.bf16.mxu0 0
      %718 = vmatpush2.bf16.msra.mxu0 0
      %719 = vmatprep.subr.bf16.mxu0 0
      %720 = vmatpush2.bf16.msra.mxu0 0
      %721 = vmatprep.subr.bf16.mxu0 0
      %722 = vmatpush2.bf16.msra.mxu0 0
      %723 = vmatprep.subr.bf16.mxu0 0
      %724 = vmatpush2.bf16.msra.mxu0 0
      %725 = vmatprep.subr.bf16.mxu0 0
      %726 = vmatpush2.bf16.msra.mxu0 0
      %727 = vmatprep.subr.bf16.mxu0 0
      %728 = vmatpush2.bf16.msra.mxu0 0
      %729 = vmatprep.subr.bf16.mxu0 0
      %730 = vmatpush2.bf16.msra.mxu0 0
      %731 = vmatprep.subr.bf16.mxu0 0
      %732 = vmatpush2.bf16.msra.mxu0 0
      %733 = vmatprep.mubr.bf16.mxu0 0
      %734 = vmatmul.mubr.bf16.gmra.mxu0 %v656
      %v735 = vpop.f32.mrf.mxu0
      %v736 = vadd.f32 0.0, %v735
      %v737 = vpop.f32.mrf.mxu0
      %v738 = vpop.f32.mrf.mxu0
      %v739 = vadd.f32 0.0, %v738
      %v740 = vpop.f32.mrf.mxu0
      %741 = vdwg.mxu0
      %v742 = vadd.f32 %v605, %v693
      %v743 = vadd.f32 %v606, %v695
      %v744 = vadd.f32 %v607, %v736
      %v745 = vadd.f32 %v608, %v697
      %v746 = vadd.f32 %v609, %v699
      %v747 = vadd.f32 %v610, %v739
      %748 = vst [vmem:[%s190] sm:$0xff] %v742
      %749 = vst [vmem:[%s190 + $0x8] sm:$0xff] %v743
      %750 = vst [vmem:[%s190 + $0x10] sm:$0xff] %v744
      %751 = vst [vmem:[%s190 + $0x18] sm:$0xff] %v745
      %752 = vst [vmem:[%s190 + $0x20] sm:$0xff] %v746
      %753 = vst [vmem:[%s190 + $0x28] sm:$0xff] %v747
      %v754 = vld [vmem:[%s190] sm:$0xff]
      %v755 = vld [vmem:[%s190 + $0x8] sm:$0xff]
      %v756 = vld [vmem:[%s190 + $0x10] sm:$0xff]
      %v757 = vld [vmem:[%s190 + $0x18] sm:$0xff]
      %v758 = vld [vmem:[%s190 + $0x20] sm:$0xff]
      %v759 = vld [vmem:[%s190 + $0x28] sm:$0xff]
      %v760 = vld [vmem:[%s0] sm:$0xf]
      %v761 = vld [vmem:[%s0 + $0x8] sm:$0xf]
      %v762 = vld [vmem:[%s180] sm:$0xff]
      %v763 = vld [vmem:[%s180 + $0x8] sm:$0xff]
      %v764 = vld [vmem:[%s180 + $0x10] sm:$0xff]
      %v765 = vld [vmem:[%s180 + $0x18] sm:$0xff]
      %v768 = vunpack.c.l.b16 %v760
      %v769 = vunpack.c.l.b16 %v761
      %v770 = vpack.c.b16 %v769, %v768
      %771 = vrot.lane.b32.xlu0 %v770, 80
      %v772 = vpop.permute.xlu0 %771
      %v777 = vunpack.c.l.b16 %v762
      %v778 = vunpack.c.h.b16 %v762
      %v779 = vunpack.c.l.b16 %v763
      %v780 = vunpack.c.h.b16 %v763
      %v781 = vunpack.c.l.b16 %v764
      %v782 = vunpack.c.h.b16 %v764
      %v783 = vunpack.c.l.b16 %v765
      %v784 = vunpack.c.h.b16 %v765
      %v785 = vpack.c.b16 %v781, %v777
      %v786 = vpack.c.b16 %v782, %v778
      %v787 = vpack.c.b16 %v783, %v779
      %v788 = vpack.c.b16 %v784, %v780
      %789 = vrot.lane.b32.xlu0 %v785, 110
      %v790 = vpop.permute.xlu0 %789
      %791 = vrot.lane.b32.xlu0 %v786, 110
      %v792 = vpop.permute.xlu0 %791
      %793 = vrot.lane.b32.xlu0 %v787, 110
      %v794 = vpop.permute.xlu0 %793
      %795 = vrot.lane.b32.xlu0 %v788, 110
      %v796 = vpop.permute.xlu0 %795
      %vm797 = vcmask 900096
      %v798 = vsel %vm797, %v790, %v792
      %v799 = vsel %vm797, %v792, %v794
      %v800 = vsel %vm797, %v794, %v796
      %v805 = vsel %vm356, %v772, 0
      %807 = vmatprep.subr.bf16.mxu0 0
      %808 = vmatpush1.bf16.msra.mxu0 0
      %809 = vmatprep.subr.bf16.mxu0 0
      %810 = vmatpush1.bf16.msra.mxu0 0
      %811 = vmatprep.subr.bf16.mxu0 0
      %812 = vmatpush1.bf16.msra.mxu0 0
      %813 = vmatprep.subr.bf16.mxu0 0
      %814 = vmatpush1.bf16.msra.mxu0 0
      %815 = vmatprep.subr.bf16.mxu0 0
      %816 = vmatpush1.bf16.msra.mxu0 0
      %817 = vmatprep.subr.bf16.mxu0 0
      %818 = vmatpush1.bf16.msra.mxu0 0
      %819 = vmatprep.subr.bf16.mxu0 0
      %820 = vmatpush1.bf16.msra.mxu0 0
      %821 = vmatprep.subr.bf16.mxu0 %v799
      %822 = vmatpush1.bf16.msra.mxu0 %v798
      %823 = vmatprep.subr.bf16.mxu0 0
      %824 = vmatpush2.bf16.msra.mxu0 0
      %825 = vmatprep.subr.bf16.mxu0 0
      %826 = vmatpush2.bf16.msra.mxu0 0
      %827 = vmatprep.subr.bf16.mxu0 0
      %828 = vmatpush2.bf16.msra.mxu0 0
      %829 = vmatprep.subr.bf16.mxu0 0
      %830 = vmatpush2.bf16.msra.mxu0 0
      %831 = vmatprep.subr.bf16.mxu0 0
      %832 = vmatpush2.bf16.msra.mxu0 0
      %833 = vmatprep.subr.bf16.mxu0 0
      %834 = vmatpush2.bf16.msra.mxu0 0
      %835 = vmatprep.subr.bf16.mxu0 0
      %836 = vmatpush2.bf16.msra.mxu0 0
      %837 = vmatprep.subr.bf16.mxu0 0
      %838 = vmatpush2.bf16.msra.mxu0 0
      %839 = vmatprep.mubr.bf16.mxu0 0
      %840 = vmatmul.mubr.bf16.gmra.mxu0 %v805
      %v841 = vpop.f32.mrf.mxu0
      %v842 = vadd.f32 0.0, %v841
      %v843 = vpop.f32.mrf.mxu0
      %v844 = vadd.f32 0.0, %v843
      %v845 = vpop.f32.mrf.mxu0
      %v846 = vadd.f32 0.0, %v845
      %v847 = vpop.f32.mrf.mxu0
      %v848 = vadd.f32 0.0, %v847
      %849 = vdwg.mxu0
      %850 = vmatprep.subr.bf16.mxu0 0
      %851 = vmatpush1.bf16.msra.mxu0 0
      %852 = vmatprep.subr.bf16.mxu0 0
      %853 = vmatpush1.bf16.msra.mxu0 0
      %854 = vmatprep.subr.bf16.mxu0 0
      %855 = vmatpush1.bf16.msra.mxu0 0
      %856 = vmatprep.subr.bf16.mxu0 0
      %857 = vmatpush1.bf16.msra.mxu0 0
      %858 = vmatprep.subr.bf16.mxu0 0
      %859 = vmatpush1.bf16.msra.mxu0 0
      %860 = vmatprep.subr.bf16.mxu0 0
      %861 = vmatpush1.bf16.msra.mxu0 0
      %862 = vmatprep.subr.bf16.mxu0 0
      %863 = vmatpush1.bf16.msra.mxu0 0
      %864 = vmatprep.subr.bf16.mxu0 0
      %865 = vmatpush1.bf16.msra.mxu0 %v800
      %866 = vmatprep.subr.bf16.mxu0 0
      %867 = vmatpush2.bf16.msra.mxu0 0
      %868 = vmatprep.subr.bf16.mxu0 0
      %869 = vmatpush2.bf16.msra.mxu0 0
      %870 = vmatprep.subr.bf16.mxu0 0
      %871 = vmatpush2.bf16.msra.mxu0 0
      %872 = vmatprep.subr.bf16.mxu0 0
      %873 = vmatpush2.bf16.msra.mxu0 0
      %874 = vmatprep.subr.bf16.mxu0 0
      %875 = vmatpush2.bf16.msra.mxu0 0
      %876 = vmatprep.subr.bf16.mxu0 0
      %877 = vmatpush2.bf16.msra.mxu0 0
      %878 = vmatprep.subr.bf16.mxu0 0
      %879 = vmatpush2.bf16.msra.mxu0 0
      %880 = vmatprep.subr.bf16.mxu0 0
      %881 = vmatpush2.bf16.msra.mxu0 0
      %882 = vmatprep.mubr.bf16.mxu0 0
      %883 = vmatmul.mubr.bf16.gmra.mxu0 %v805
      %v884 = vpop.f32.mrf.mxu0
      %v885 = vadd.f32 0.0, %v884
      %v886 = vpop.f32.mrf.mxu0
      %v887 = vpop.f32.mrf.mxu0
      %v888 = vadd.f32 0.0, %v887
      %v889 = vpop.f32.mrf.mxu0
      %890 = vdwg.mxu0
      %v891 = vadd.f32 %v754, %v842
      %v892 = vadd.f32 %v755, %v844
      %v893 = vadd.f32 %v756, %v885
      %v894 = vadd.f32 %v757, %v846
      %v895 = vadd.f32 %v758, %v848
      %v896 = vadd.f32 %v759, %v888
      %897 = vst [vmem:[%s190] sm:$0xff] %v891
      %898 = vst [vmem:[%s190 + $0x8] sm:$0xff] %v892
      %899 = vst [vmem:[%s190 + $0x10] sm:$0xff] %v893
      %900 = vst [vmem:[%s190 + $0x18] sm:$0xff] %v894
      %901 = vst [vmem:[%s190 + $0x20] sm:$0xff] %v895
      %902 = vst [vmem:[%s190 + $0x28] sm:$0xff] %v896
      %v903 = vld [vmem:[%s190] sm:$0xff]
      %v904 = vld [vmem:[%s190 + $0x8] sm:$0xff]
      %v905 = vld [vmem:[%s190 + $0x10] sm:$0xff]
      %v906 = vld [vmem:[%s190 + $0x18] sm:$0xff]
      %v907 = vld [vmem:[%s190 + $0x20] sm:$0xff]
      %v908 = vld [vmem:[%s190 + $0x28] sm:$0xff]
      %v909 = vld [vmem:[%s0] sm:$0xf]
      %v910 = vld [vmem:[%s0 + $0x8] sm:$0xf]
      %v911 = vld [vmem:[%s180] sm:$0xff]
      %v912 = vld [vmem:[%s180 + $0x8] sm:$0xff]
      %v913 = vld [vmem:[%s180 + $0x10] sm:$0xff]
      %v914 = vld [vmem:[%s180 + $0x18] sm:$0xff]
      %v917 = vunpack.c.l.b16 %v909
      %v918 = vunpack.c.l.b16 %v910
      %v919 = vpack.c.b16 %v918, %v917
      %920 = vrot.lane.b32.xlu0 %v919, 64
      %v921 = vpop.permute.xlu0 %920
      %v926 = vunpack.c.l.b16 %v911
      %v927 = vunpack.c.h.b16 %v911
      %v928 = vunpack.c.l.b16 %v912
      %v929 = vunpack.c.h.b16 %v912
      %v930 = vunpack.c.l.b16 %v913
      %v931 = vunpack.c.h.b16 %v913
      %v932 = vunpack.c.l.b16 %v914
      %v933 = vunpack.c.h.b16 %v914
      %v934 = vpack.c.b16 %v930, %v926
      %v935 = vpack.c.b16 %v931, %v927
      %v936 = vpack.c.b16 %v932, %v928
      %v937 = vpack.c.b16 %v933, %v929
      %938 = vrot.lane.b32.xlu0 %v934, 109
      %v939 = vpop.permute.xlu0 %938
      %940 = vrot.lane.b32.xlu0 %v935, 109
      %v941 = vpop.permute.xlu0 %940
      %942 = vrot.lane.b32.xlu0 %v936, 109
      %v943 = vpop.permute.xlu0 %942
      %944 = vrot.lane.b32.xlu0 %v937, 109
      %v945 = vpop.permute.xlu0 %944
      %vm946 = vcmask 891904
      %v947 = vsel %vm946, %v939, %v941
      %v948 = vsel %vm946, %v941, %v943
      %v949 = vsel %vm946, %v943, %v945
      %v954 = vsel %vm356, %v921, 0
      %956 = vmatprep.subr.bf16.mxu0 0
      %957 = vmatpush1.bf16.msra.mxu0 0
      %958 = vmatprep.subr.bf16.mxu0 0
      %959 = vmatpush1.bf16.msra.mxu0 0
      %960 = vmatprep.subr.bf16.mxu0 0
      %961 = vmatpush1.bf16.msra.mxu0 0
      %962 = vmatprep.subr.bf16.mxu0 0
      %963 = vmatpush1.bf16.msra.mxu0 0
      %964 = vmatprep.subr.bf16.mxu0 0
      %965 = vmatpush1.bf16.msra.mxu0 0
      %966 = vmatprep.subr.bf16.mxu0 0
      %967 = vmatpush1.bf16.msra.mxu0 0
      %968 = vmatprep.subr.bf16.mxu0 0
      %969 = vmatpush1.bf16.msra.mxu0 0
      %970 = vmatprep.subr.bf16.mxu0 %v948
      %971 = vmatpush1.bf16.msra.mxu0 %v947
      %972 = vmatprep.subr.bf16.mxu0 0
      %973 = vmatpush2.bf16.msra.mxu0 0
      %974 = vmatprep.subr.bf16.mxu0 0
      %975 = vmatpush2.bf16.msra.mxu0 0
      %976 = vmatprep.subr.bf16.mxu0 0
      %977 = vmatpush2.bf16.msra.mxu0 0
      %978 = vmatprep.subr.bf16.mxu0 0
      %979 = vmatpush2.bf16.msra.mxu0 0
      %980 = vmatprep.subr.bf16.mxu0 0
      %981 = vmatpush2.bf16.msra.mxu0 0
      %982 = vmatprep.subr.bf16.mxu0 0
      %983 = vmatpush2.bf16.msra.mxu0 0
      %984 = vmatprep.subr.bf16.mxu0 0
      %985 = vmatpush2.bf16.msra.mxu0 0
      %986 = vmatprep.subr.bf16.mxu0 0
      %987 = vmatpush2.bf16.msra.mxu0 0
      %988 = vmatprep.mubr.bf16.mxu0 0
      %989 = vmatmul.mubr.bf16.gmra.mxu0 %v954
      %v990 = vpop.f32.mrf.mxu0
      %v991 = vadd.f32 0.0, %v990
      %v992 = vpop.f32.mrf.mxu0
      %v993 = vadd.f32 0.0, %v992
      %v994 = vpop.f32.mrf.mxu0
      %v995 = vadd.f32 0.0, %v994
      %v996 = vpop.f32.mrf.mxu0
      %v997 = vadd.f32 0.0, %v996
      %998 = vdwg.mxu0
      %999 = vmatprep.subr.bf16.mxu0 0
      %1000 = vmatpush1.bf16.msra.mxu0 0
      %1001 = vmatprep.subr.bf16.mxu0 0
      %1002 = vmatpush1.bf16.msra.mxu0 0
      %1003 = vmatprep.subr.bf16.mxu0 0
      %1004 = vmatpush1.bf16.msra.mxu0 0
      %1005 = vmatprep.subr.bf16.mxu0 0
      %1006 = vmatpush1.bf16.msra.mxu0 0
      %1007 = vmatprep.subr.bf16.mxu0 0
      %1008 = vmatpush1.bf16.msra.mxu0 0
      %1009 = vmatprep.subr.bf16.mxu0 0
      %1010 = vmatpush1.bf16.msra.mxu0 0
      %1011 = vmatprep.subr.bf16.mxu0 0
      %1012 = vmatpush1.bf16.msra.mxu0 0
      %1013 = vmatprep.subr.bf16.mxu0 0
      %1014 = vmatpush1.bf16.msra.mxu0 %v949
      %1015 = vmatprep.subr.bf16.mxu0 0
      %1016 = vmatpush2.bf16.msra.mxu0 0
      %1017 = vmatprep.subr.bf16.mxu0 0
      %1018 = vmatpush2.bf16.msra.mxu0 0
      %1019 = vmatprep.subr.bf16.mxu0 0
      %1020 = vmatpush2.bf16.msra.mxu0 0
      %1021 = vmatprep.subr.bf16.mxu0 0
      %1022 = vmatpush2.bf16.msra.mxu0 0
      %1023 = vmatprep.subr.bf16.mxu0 0
      %1024 = vmatpush2.bf16.msra.mxu0 0
      %1025 = vmatprep.subr.bf16.mxu0 0
      %1026 = vmatpush2.bf16.msra.mxu0 0
      %1027 = vmatprep.subr.bf16.mxu0 0
      %1028 = vmatpush2.bf16.msra.mxu0 0
      %1029 = vmatprep.subr.bf16.mxu0 0
      %1030 = vmatpush2.bf16.msra.mxu0 0
      %1031 = vmatprep.mubr.bf16.mxu0 0
      %1032 = vmatmul.mubr.bf16.gmra.mxu0 %v954
      %v1033 = vpop.f32.mrf.mxu0
      %v1034 = vadd.f32 0.0, %v1033
      %v1035 = vpop.f32.mrf.mxu0
      %v1036 = vpop.f32.mrf.mxu0
      %v1037 = vadd.f32 0.0, %v1036
      %v1038 = vpop.f32.mrf.mxu0
      %1039 = vdwg.mxu0
      %v1040 = vadd.f32 %v903, %v991
      %v1041 = vadd.f32 %v904, %v993
      %v1042 = vadd.f32 %v905, %v1034
      %v1043 = vadd.f32 %v906, %v995
      %v1044 = vadd.f32 %v907, %v997
      %v1045 = vadd.f32 %v908, %v1037
      %1046 = vst [vmem:[%s190] sm:$0xff] %v1040
      %1047 = vst [vmem:[%s190 + $0x8] sm:$0xff] %v1041
      %1048 = vst [vmem:[%s190 + $0x10] sm:$0xff] %v1042
      %1049 = vst [vmem:[%s190 + $0x18] sm:$0xff] %v1043
      %1050 = vst [vmem:[%s190 + $0x20] sm:$0xff] %v1044
      %1051 = vst [vmem:[%s190 + $0x28] sm:$0xff] %v1045
      %v1052 = vld [vmem:[%s190] sm:$0xff]
      %v1053 = vld [vmem:[%s190 + $0x8] sm:$0xff]
      %v1054 = vld [vmem:[%s190 + $0x10] sm:$0xff]
      %v1055 = vld [vmem:[%s190 + $0x18] sm:$0xff]
      %v1056 = vld [vmem:[%s190 + $0x20] sm:$0xff]
      %v1057 = vld [vmem:[%s190 + $0x28] sm:$0xff]
      %v1058 = vld [vmem:[%s0] sm:$0xf]
      %v1059 = vld [vmem:[%s0 + $0x8] sm:$0xf]
      %v1060 = vld [vmem:[%s180] sm:$0xff]
      %v1061 = vld [vmem:[%s180 + $0x8] sm:$0xff]
      %v1062 = vld [vmem:[%s180 + $0x10] sm:$0xff]
      %v1063 = vld [vmem:[%s180 + $0x18] sm:$0xff]
      %v1066 = vunpack.c.l.b16 %v1058
      %v1067 = vunpack.c.l.b16 %v1059
      %v1068 = vpack.c.b16 %v1067, %v1066
      %1069 = vrot.lane.b32.xlu0 %v1068, 48
      %v1070 = vpop.permute.xlu0 %1069
      %v1075 = vunpack.c.l.b16 %v1060
      %v1076 = vunpack.c.h.b16 %v1060
      %v1077 = vunpack.c.l.b16 %v1061
      %v1078 = vunpack.c.h.b16 %v1061
      %v1079 = vunpack.c.l.b16 %v1062
      %v1080 = vunpack.c.h.b16 %v1062
      %v1081 = vunpack.c.l.b16 %v1063
      %v1082 = vunpack.c.h.b16 %v1063
      %v1083 = vpack.c.b16 %v1079, %v1075
      %v1084 = vpack.c.b16 %v1080, %v1076
      %v1085 = vpack.c.b16 %v1081, %v1077
      %v1086 = vpack.c.b16 %v1082, %v1078
      %1087 = vrot.lane.b32.xlu0 %v1083, 108
      %v1088 = vpop.permute.xlu0 %1087
      %1089 = vrot.lane.b32.xlu0 %v1084, 108
      %v1090 = vpop.permute.xlu0 %1089
      %1091 = vrot.lane.b32.xlu0 %v1085, 108
      %v1092 = vpop.permute.xlu0 %1091
      %1093 = vrot.lane.b32.xlu0 %v1086, 108
      %v1094 = vpop.permute.xlu0 %1093
      %vm1095 = vcmask 883712
      %v1096 = vsel %vm1095, %v1088, %v1090
      %v1097 = vsel %vm1095, %v1090, %v1092
      %v1098 = vsel %vm1095, %v1092, %v1094
      %v1103 = vsel %vm356, %v1070, 0
      %1105 = vmatprep.subr.bf16.mxu0 0
      %1106 = vmatpush1.bf16.msra.mxu0 0
      %1107 = vmatprep.subr.bf16.mxu0 0
      %1108 = vmatpush1.bf16.msra.mxu0 0
      %1109 = vmatprep.subr.bf16.mxu0 0
      %1110 = vmatpush1.bf16.msra.mxu0 0
      %1111 = vmatprep.subr.bf16.mxu0 0
      %1112 = vmatpush1.bf16.msra.mxu0 0
      %1113 = vmatprep.subr.bf16.mxu0 0
      %1114 = vmatpush1.bf16.msra.mxu0 0
      %1115 = vmatprep.subr.bf16.mxu0 0
      %1116 = vmatpush1.bf16.msra.mxu0 0
      %1117 = vmatprep.subr.bf16.mxu0 0
      %1118 = vmatpush1.bf16.msra.mxu0 0
      %1119 = vmatprep.subr.bf16.mxu0 %v1097
      %1120 = vmatpush1.bf16.msra.mxu0 %v1096
      %1121 = vmatprep.subr.bf16.mxu0 0
      %1122 = vmatpush2.bf16.msra.mxu0 0
      %1123 = vmatprep.subr.bf16.mxu0 0
      %1124 = vmatpush2.bf16.msra.mxu0 0
      %1125 = vmatprep.subr.bf16.mxu0 0
      %1126 = vmatpush2.bf16.msra.mxu0 0
      %1127 = vmatprep.subr.bf16.mxu0 0
      %1128 = vmatpush2.bf16.msra.mxu0 0
      %1129 = vmatprep.subr.bf16.mxu0 0
      %1130 = vmatpush2.bf16.msra.mxu0 0
      %1131 = vmatprep.subr.bf16.mxu0 0
      %1132 = vmatpush2.bf16.msra.mxu0 0
      %1133 = vmatprep.subr.bf16.mxu0 0
      %1134 = vmatpush2.bf16.msra.mxu0 0
      %1135 = vmatprep.subr.bf16.mxu0 0
      %1136 = vmatpush2.bf16.msra.mxu0 0
      %1137 = vmatprep.mubr.bf16.mxu0 0
      %1138 = vmatmul.mubr.bf16.gmra.mxu0 %v1103
      %v1139 = vpop.f32.mrf.mxu0
      %v1140 = vadd.f32 0.0, %v1139
      %v1141 = vpop.f32.mrf.mxu0
      %v1142 = vadd.f32 0.0, %v1141
      %v1143 = vpop.f32.mrf.mxu0
      %v1144 = vadd.f32 0.0, %v1143
      %v1145 = vpop.f32.mrf.mxu0
      %v1146 = vadd.f32 0.0, %v1145
      %1147 = vdwg.mxu0
      %1148 = vmatprep.subr.bf16.mxu0 0
      %1149 = vmatpush1.bf16.msra.mxu0 0
      %1150 = vmatprep.subr.bf16.mxu0 0
      %1151 = vmatpush1.bf16.msra.mxu0 0
      %1152 = vmatprep.subr.bf16.mxu0 0
      %1153 = vmatpush1.bf16.msra.mxu0 0
      %1154 = vmatprep.subr.bf16.mxu0 0
      %1155 = vmatpush1.bf16.msra.mxu0 0
      %1156 = vmatprep.subr.bf16.mxu0 0
      %1157 = vmatpush1.bf16.msra.mxu0 0
      %1158 = vmatprep.subr.bf16.mxu0 0
      %1159 = vmatpush1.bf16.msra.mxu0 0
      %1160 = vmatprep.subr.bf16.mxu0 0
      %1161 = vmatpush1.bf16.msra.mxu0 0
      %1162 = vmatprep.subr.bf16.mxu0 0
      %1163 = vmatpush1.bf16.msra.mxu0 %v1098
      %1164 = vmatprep.subr.bf16.mxu0 0
      %1165 = vmatpush2.bf16.msra.mxu0 0
      %1166 = vmatprep.subr.bf16.mxu0 0
      %1167 = vmatpush2.bf16.msra.mxu0 0
      %1168 = vmatprep.subr.bf16.mxu0 0
      %1169 = vmatpush2.bf16.msra.mxu0 0
      %1170 = vmatprep.subr.bf16.mxu0 0
      %1171 = vmatpush2.bf16.msra.mxu0 0
      %1172 = vmatprep.subr.bf16.mxu0 0
      %1173 = vmatpush2.bf16.msra.mxu0 0
      %1174 = vmatprep.subr.bf16.mxu0 0
      %1175 = vmatpush2.bf16.msra.mxu0 0
      %1176 = vmatprep.subr.bf16.mxu0 0
      %1177 = vmatpush2.bf16.msra.mxu0 0
      %1178 = vmatprep.subr.bf16.mxu0 0
      %1179 = vmatpush2.bf16.msra.mxu0 0
      %1180 = vmatprep.mubr.bf16.mxu0 0
      %1181 = vmatmul.mubr.bf16.gmra.mxu0 %v1103
      %v1182 = vpop.f32.mrf.mxu0
      %v1183 = vadd.f32 0.0, %v1182
      %v1184 = vpop.f32.mrf.mxu0
      %v1185 = vpop.f32.mrf.mxu0
      %v1186 = vadd.f32 0.0, %v1185
      %v1187 = vpop.f32.mrf.mxu0
      %1188 = vdwg.mxu0
      %v1189 = vadd.f32 %v1052, %v1140
      %v1190 = vadd.f32 %v1053, %v1142
      %v1191 = vadd.f32 %v1054, %v1183
      %v1192 = vadd.f32 %v1055, %v1144
      %v1193 = vadd.f32 %v1056, %v1146
      %v1194 = vadd.f32 %v1057, %v1186
      %1195 = vst [vmem:[%s190] sm:$0xff] %v1189
      %1196 = vst [vmem:[%s190 + $0x8] sm:$0xff] %v1190
      %1197 = vst [vmem:[%s190 + $0x10] sm:$0xff] %v1191
      %1198 = vst [vmem:[%s190 + $0x18] sm:$0xff] %v1192
      %1199 = vst [vmem:[%s190 + $0x20] sm:$0xff] %v1193
      %1200 = vst [vmem:[%s190 + $0x28] sm:$0xff] %v1194
      %v1201 = vld [vmem:[%s190] sm:$0xff]
      %v1202 = vld [vmem:[%s190 + $0x8] sm:$0xff]
      %v1203 = vld [vmem:[%s190 + $0x10] sm:$0xff]
      %v1204 = vld [vmem:[%s190 + $0x18] sm:$0xff]
      %v1205 = vld [vmem:[%s190 + $0x20] sm:$0xff]
      %v1206 = vld [vmem:[%s190 + $0x28] sm:$0xff]
      %v1207 = vld [vmem:[%s0] sm:$0xf]
      %v1208 = vld [vmem:[%s0 + $0x8] sm:$0xf]
      %v1209 = vld [vmem:[%s180] sm:$0xff]
      %v1210 = vld [vmem:[%s180 + $0x8] sm:$0xff]
      %v1211 = vld [vmem:[%s180 + $0x10] sm:$0xff]
      %v1212 = vld [vmem:[%s180 + $0x18] sm:$0xff]
      %v1215 = vunpack.c.l.b16 %v1207
      %v1216 = vunpack.c.l.b16 %v1208
      %v1217 = vpack.c.b16 %v1216, %v1215
      %1218 = vrot.lane.b32.xlu0 %v1217, 32
      %v1219 = vpop.permute.xlu0 %1218
      %v1224 = vunpack.c.l.b16 %v1209
      %v1225 = vunpack.c.h.b16 %v1209
      %v1226 = vunpack.c.l.b16 %v1210
      %v1227 = vunpack.c.h.b16 %v1210
      %v1228 = vunpack.c.l.b16 %v1211
      %v1229 = vunpack.c.h.b16 %v1211
      %v1230 = vunpack.c.l.b16 %v1212
      %v1231 = vunpack.c.h.b16 %v1212
      %v1232 = vpack.c.b16 %v1228, %v1224
      %v1233 = vpack.c.b16 %v1229, %v1225
      %v1234 = vpack.c.b16 %v1230, %v1226
      %v1235 = vpack.c.b16 %v1231, %v1227
      %1236 = vrot.lane.b32.xlu0 %v1232, 92
      %v1237 = vpop.permute.xlu0 %1236
      %1238 = vrot.lane.b32.xlu0 %v1233, 92
      %v1239 = vpop.permute.xlu0 %1238
      %1240 = vrot.lane.b32.xlu0 %v1234, 92
      %v1241 = vpop.permute.xlu0 %1240
      %1242 = vrot.lane.b32.xlu0 %v1235, 92
      %v1243 = vpop.permute.xlu0 %1242
      %vm1244 = vcmask 752640
      %v1245 = vsel %vm1244, %v1237, %v1239
      %v1246 = vsel %vm1244, %v1239, %v1241
      %v1247 = vsel %vm1244, %v1241, %v1243
      %v1252 = vsel %vm356, %v1219, 0
      %1254 = vmatprep.subr.bf16.mxu0 0
      %1255 = vmatpush1.bf16.msra.mxu0 0
      %1256 = vmatprep.subr.bf16.mxu0 0
      %1257 = vmatpush1.bf16.msra.mxu0 0
      %1258 = vmatprep.subr.bf16.mxu0 0
      %1259 = vmatpush1.bf16.msra.mxu0 0
      %1260 = vmatprep.subr.bf16.mxu0 0
      %1261 = vmatpush1.bf16.msra.mxu0 0
      %1262 = vmatprep.subr.bf16.mxu0 0
      %1263 = vmatpush1.bf16.msra.mxu0 0
      %1264 = vmatprep.subr.bf16.mxu0 0
      %1265 = vmatpush1.bf16.msra.mxu0 0
      %1266 = vmatprep.subr.bf16.mxu0 0
      %1267 = vmatpush1.bf16.msra.mxu0 0
      %1268 = vmatprep.subr.bf16.mxu0 %v1246
      %1269 = vmatpush1.bf16.msra.mxu0 %v1245
      %1270 = vmatprep.subr.bf16.mxu0 0
      %1271 = vmatpush2.bf16.msra.mxu0 0
      %1272 = vmatprep.subr.bf16.mxu0 0
      %1273 = vmatpush2.bf16.msra.mxu0 0
      %1274 = vmatprep.subr.bf16.mxu0 0
      %1275 = vmatpush2.bf16.msra.mxu0 0
      %1276 = vmatprep.subr.bf16.mxu0 0
      %1277 = vmatpush2.bf16.msra.mxu0 0
      %1278 = vmatprep.subr.bf16.mxu0 0
      %1279 = vmatpush2.bf16.msra.mxu0 0
      %1280 = vmatprep.subr.bf16.mxu0 0
      %1281 = vmatpush2.bf16.msra.mxu0 0
      %1282 = vmatprep.subr.bf16.mxu0 0
      %1283 = vmatpush2.bf16.msra.mxu0 0
      %1284 = vmatprep.subr.bf16.mxu0 0
      %1285 = vmatpush2.bf16.msra.mxu0 0
      %1286 = vmatprep.mubr.bf16.mxu0 0
      %1287 = vmatmul.mubr.bf16.gmra.mxu0 %v1252
      %v1288 = vpop.f32.mrf.mxu0
      %v1289 = vadd.f32 0.0, %v1288
      %v1290 = vpop.f32.mrf.mxu0
      %v1291 = vadd.f32 0.0, %v1290
      %v1292 = vpop.f32.mrf.mxu0
      %v1293 = vadd.f32 0.0, %v1292
      %v1294 = vpop.f32.mrf.mxu0
      %v1295 = vadd.f32 0.0, %v1294
      %1296 = vdwg.mxu0
      %1297 = vmatprep.subr.bf16.mxu0 0
      %1298 = vmatpush1.bf16.msra.mxu0 0
      %1299 = vmatprep.subr.bf16.mxu0 0
      %1300 = vmatpush1.bf16.msra.mxu0 0
      %1301 = vmatprep.subr.bf16.mxu0 0
      %1302 = vmatpush1.bf16.msra.mxu0 0
      %1303 = vmatprep.subr.bf16.mxu0 0
      %1304 = vmatpush1.bf16.msra.mxu0 0
      %1305 = vmatprep.subr.bf16.mxu0 0
      %1306 = vmatpush1.bf16.msra.mxu0 0
      %1307 = vmatprep.subr.bf16.mxu0 0
      %1308 = vmatpush1.bf16.msra.mxu0 0
      %1309 = vmatprep.subr.bf16.mxu0 0
      %1310 = vmatpush1.bf16.msra.mxu0 0
      %1311 = vmatprep.subr.bf16.mxu0 0
      %1312 = vmatpush1.bf16.msra.mxu0 %v1247
      %1313 = vmatprep.subr.bf16.mxu0 0
      %1314 = vmatpush2.bf16.msra.mxu0 0
      %1315 = vmatprep.subr.bf16.mxu0 0
      %1316 = vmatpush2.bf16.msra.mxu0 0
      %1317 = vmatprep.subr.bf16.mxu0 0
      %1318 = vmatpush2.bf16.msra.mxu0 0
      %1319 = vmatprep.subr.bf16.mxu0 0
      %1320 = vmatpush2.bf16.msra.mxu0 0
      %1321 = vmatprep.subr.bf16.mxu0 0
      %1322 = vmatpush2.bf16.msra.mxu0 0
      %1323 = vmatprep.subr.bf16.mxu0 0
      %1324 = vmatpush2.bf16.msra.mxu0 0
      %1325 = vmatprep.subr.bf16.mxu0 0
      %1326 = vmatpush2.bf16.msra.mxu0 0
      %1327 = vmatprep.subr.bf16.mxu0 0
      %1328 = vmatpush2.bf16.msra.mxu0 0
      %1329 = vmatprep.mubr.bf16.mxu0 0
      %1330 = vmatmul.mubr.bf16.gmra.mxu0 %v1252
      %v1331 = vpop.f32.mrf.mxu0
      %v1332 = vadd.f32 0.0, %v1331
      %v1333 = vpop.f32.mrf.mxu0
      %v1334 = vpop.f32.mrf.mxu0
      %v1335 = vadd.f32 0.0, %v1334
      %v1336 = vpop.f32.mrf.mxu0
      %1337 = vdwg.mxu0
      %v1338 = vadd.f32 %v1201, %v1289
      %v1339 = vadd.f32 %v1202, %v1291
      %v1340 = vadd.f32 %v1203, %v1332
      %v1341 = vadd.f32 %v1204, %v1293
      %v1342 = vadd.f32 %v1205, %v1295
      %v1343 = vadd.f32 %v1206, %v1335
      %1344 = vst [vmem:[%s190] sm:$0xff] %v1338
      %1345 = vst [vmem:[%s190 + $0x8] sm:$0xff] %v1339
      %1346 = vst [vmem:[%s190 + $0x10] sm:$0xff] %v1340
      %1347 = vst [vmem:[%s190 + $0x18] sm:$0xff] %v1341
      %1348 = vst [vmem:[%s190 + $0x20] sm:$0xff] %v1342
      %1349 = vst [vmem:[%s190 + $0x28] sm:$0xff] %v1343
      %v1350 = vld [vmem:[%s190] sm:$0xff]
      %v1351 = vld [vmem:[%s190 + $0x8] sm:$0xff]
      %v1352 = vld [vmem:[%s190 + $0x10] sm:$0xff]
      %v1353 = vld [vmem:[%s190 + $0x18] sm:$0xff]
      %v1354 = vld [vmem:[%s190 + $0x20] sm:$0xff]
      %v1355 = vld [vmem:[%s190 + $0x28] sm:$0xff]
      %v1356 = vld [vmem:[%s0] sm:$0xf]
      %v1357 = vld [vmem:[%s0 + $0x8] sm:$0xf]
      %v1358 = vld [vmem:[%s180] sm:$0xff]
      %v1359 = vld [vmem:[%s180 + $0x8] sm:$0xff]
      %v1360 = vld [vmem:[%s180 + $0x10] sm:$0xff]
      %v1361 = vld [vmem:[%s180 + $0x18] sm:$0xff]
      %v1364 = vunpack.c.l.b16 %v1356
      %v1365 = vunpack.c.l.b16 %v1357
      %v1366 = vpack.c.b16 %v1365, %v1364
      %1367 = vrot.lane.b32.xlu0 %v1366, 16
      %v1368 = vpop.permute.xlu0 %1367
      %v1373 = vunpack.c.l.b16 %v1358
      %v1374 = vunpack.c.h.b16 %v1358
      %v1375 = vunpack.c.l.b16 %v1359
      %v1376 = vunpack.c.h.b16 %v1359
      %v1377 = vunpack.c.l.b16 %v1360
      %v1378 = vunpack.c.h.b16 %v1360
      %v1379 = vunpack.c.l.b16 %v1361
      %v1380 = vunpack.c.h.b16 %v1361
      %v1381 = vpack.c.b16 %v1377, %v1373
      %v1382 = vpack.c.b16 %v1378, %v1374
      %v1383 = vpack.c.b16 %v1379, %v1375
      %v1384 = vpack.c.b16 %v1380, %v1376
      %1385 = vrot.lane.b32.xlu0 %v1381, 91
      %v1386 = vpop.permute.xlu0 %1385
      %1387 = vrot.lane.b32.xlu0 %v1382, 91
      %v1388 = vpop.permute.xlu0 %1387
      %1389 = vrot.lane.b32.xlu0 %v1383, 91
      %v1390 = vpop.permute.xlu0 %1389
      %1391 = vrot.lane.b32.xlu0 %v1384, 91
      %v1392 = vpop.permute.xlu0 %1391
      %vm1393 = vcmask 744448
      %v1394 = vsel %vm1393, %v1386, %v1388
      %v1395 = vsel %vm1393, %v1388, %v1390
      %v1396 = vsel %vm1393, %v1390, %v1392
      %v1401 = vsel %vm356, %v1368, 0
      %1403 = vmatprep.subr.bf16.mxu0 0
      %1404 = vmatpush1.bf16.msra.mxu0 0
      %1405 = vmatprep.subr.bf16.mxu0 0
      %1406 = vmatpush1.bf16.msra.mxu0 0
      %1407 = vmatprep.subr.bf16.mxu0 0
      %1408 = vmatpush1.bf16.msra.mxu0 0
      %1409 = vmatprep.subr.bf16.mxu0 0
      %1410 = vmatpush1.bf16.msra.mxu0 0
      %1411 = vmatprep.subr.bf16.mxu0 0
      %1412 = vmatpush1.bf16.msra.mxu0 0
      %1413 = vmatprep.subr.bf16.mxu0 0
      %1414 = vmatpush1.bf16.msra.mxu0 0
      %1415 = vmatprep.subr.bf16.mxu0 0
      %1416 = vmatpush1.bf16.msra.mxu0 0
      %1417 = vmatprep.subr.bf16.mxu0 %v1395
      %1418 = vmatpush1.bf16.msra.mxu0 %v1394
      %1419 = vmatprep.subr.bf16.mxu0 0
      %1420 = vmatpush2.bf16.msra.mxu0 0
      %1421 = vmatprep.subr.bf16.mxu0 0
      %1422 = vmatpush2.bf16.msra.mxu0 0
      %1423 = vmatprep.subr.bf16.mxu0 0
      %1424 = vmatpush2.bf16.msra.mxu0 0
      %1425 = vmatprep.subr.bf16.mxu0 0
      %1426 = vmatpush2.bf16.msra.mxu0 0
      %1427 = vmatprep.subr.bf16.mxu0 0
      %1428 = vmatpush2.bf16.msra.mxu0 0
      %1429 = vmatprep.subr.bf16.mxu0 0
      %1430 = vmatpush2.bf16.msra.mxu0 0
      %1431 = vmatprep.subr.bf16.mxu0 0
      %1432 = vmatpush2.bf16.msra.mxu0 0
      %1433 = vmatprep.subr.bf16.mxu0 0
      %1434 = vmatpush2.bf16.msra.mxu0 0
      %1435 = vmatprep.mubr.bf16.mxu0 0
      %1436 = vmatmul.mubr.bf16.gmra.mxu0 %v1401
      %v1437 = vpop.f32.mrf.mxu0
      %v1438 = vadd.f32 0.0, %v1437
      %v1439 = vpop.f32.mrf.mxu0
      %v1440 = vadd.f32 0.0, %v1439
      %v1441 = vpop.f32.mrf.mxu0
      %v1442 = vadd.f32 0.0, %v1441
      %v1443 = vpop.f32.mrf.mxu0
      %v1444 = vadd.f32 0.0, %v1443
      %1445 = vdwg.mxu0
      %1446 = vmatprep.subr.bf16.mxu0 0
      %1447 = vmatpush1.bf16.msra.mxu0 0
      %1448 = vmatprep.subr.bf16.mxu0 0
      %1449 = vmatpush1.bf16.msra.mxu0 0
      %1450 = vmatprep.subr.bf16.mxu0 0
      %1451 = vmatpush1.bf16.msra.mxu0 0
      %1452 = vmatprep.subr.bf16.mxu0 0
      %1453 = vmatpush1.bf16.msra.mxu0 0
      %1454 = vmatprep.subr.bf16.mxu0 0
      %1455 = vmatpush1.bf16.msra.mxu0 0
      %1456 = vmatprep.subr.bf16.mxu0 0
      %1457 = vmatpush1.bf16.msra.mxu0 0
      %1458 = vmatprep.subr.bf16.mxu0 0
      %1459 = vmatpush1.bf16.msra.mxu0 0
      %1460 = vmatprep.subr.bf16.mxu0 0
      %1461 = vmatpush1.bf16.msra.mxu0 %v1396
      %1462 = vmatprep.subr.bf16.mxu0 0
      %1463 = vmatpush2.bf16.msra.mxu0 0
      %1464 = vmatprep.subr.bf16.mxu0 0
      %1465 = vmatpush2.bf16.msra.mxu0 0
      %1466 = vmatprep.subr.bf16.mxu0 0
      %1467 = vmatpush2.bf16.msra.mxu0 0
      %1468 = vmatprep.subr.bf16.mxu0 0
      %1469 = vmatpush2.bf16.msra.mxu0 0
      %1470 = vmatprep.subr.bf16.mxu0 0
      %1471 = vmatpush2.bf16.msra.mxu0 0
      %1472 = vmatprep.subr.bf16.mxu0 0
      %1473 = vmatpush2.bf16.msra.mxu0 0
      %1474 = vmatprep.subr.bf16.mxu0 0
      %1475 = vmatpush2.bf16.msra.mxu0 0
      %1476 = vmatprep.subr.bf16.mxu0 0
      %1477 = vmatpush2.bf16.msra.mxu0 0
      %1478 = vmatprep.mubr.bf16.mxu0 0
      %1479 = vmatmul.mubr.bf16.gmra.mxu0 %v1401
      %v1480 = vpop.f32.mrf.mxu0
      %v1481 = vadd.f32 0.0, %v1480
      %v1482 = vpop.f32.mrf.mxu0
      %v1483 = vpop.f32.mrf.mxu0
      %v1484 = vadd.f32 0.0, %v1483
      %v1485 = vpop.f32.mrf.mxu0
      %1486 = vdwg.mxu0
      %v1487 = vadd.f32 %v1350, %v1438
      %v1488 = vadd.f32 %v1351, %v1440
      %v1489 = vadd.f32 %v1352, %v1481
      %v1490 = vadd.f32 %v1353, %v1442
      %v1491 = vadd.f32 %v1354, %v1444
      %v1492 = vadd.f32 %v1355, %v1484
      %1493 = vst [vmem:[%s190] sm:$0xff] %v1487
      %1494 = vst [vmem:[%s190 + $0x8] sm:$0xff] %v1488
      %1495 = vst [vmem:[%s190 + $0x10] sm:$0xff] %v1489
      %1496 = vst [vmem:[%s190 + $0x18] sm:$0xff] %v1490
      %1497 = vst [vmem:[%s190 + $0x20] sm:$0xff] %v1491
      %1498 = vst [vmem:[%s190 + $0x28] sm:$0xff] %v1492
      %v1499 = vld [vmem:[%s190] sm:$0xff]
      %v1500 = vld [vmem:[%s190 + $0x8] sm:$0xff]
      %v1501 = vld [vmem:[%s190 + $0x10] sm:$0xff]
      %v1502 = vld [vmem:[%s190 + $0x18] sm:$0xff]
      %v1503 = vld [vmem:[%s190 + $0x20] sm:$0xff]
      %v1504 = vld [vmem:[%s190 + $0x28] sm:$0xff]
      %v1505 = vld [vmem:[%s0 + $0x4] sm:$0xf]
      %v1506 = vld [vmem:[%s0 + $0xc] sm:$0xf]
      %v1507 = vld [vmem:[%s180] sm:$0xff]
      %v1508 = vld [vmem:[%s180 + $0x8] sm:$0xff]
      %v1509 = vld [vmem:[%s180 + $0x10] sm:$0xff]
      %v1510 = vld [vmem:[%s180 + $0x18] sm:$0xff]
      %v1513 = vunpack.c.l.b16 %v1505
      %v1514 = vunpack.c.l.b16 %v1506
      %v1515 = vpack.c.b16 %v1514, %v1513
      %v1520 = vunpack.c.l.b16 %v1507
      %v1521 = vunpack.c.h.b16 %v1507
      %v1522 = vunpack.c.l.b16 %v1508
      %v1523 = vunpack.c.h.b16 %v1508
      %v1524 = vunpack.c.l.b16 %v1509
      %v1525 = vunpack.c.h.b16 %v1509
      %v1526 = vunpack.c.l.b16 %v1510
      %v1527 = vunpack.c.h.b16 %v1510
      %v1528 = vpack.c.b16 %v1524, %v1520
      %v1529 = vpack.c.b16 %v1525, %v1521
      %v1530 = vpack.c.b16 %v1526, %v1522
      %v1531 = vpack.c.b16 %v1527, %v1523
      %1532 = vrot.lane.b32.xlu0 %v1528, 90
      %v1533 = vpop.permute.xlu0 %1532
      %1534 = vrot.lane.b32.xlu0 %v1529, 90
      %v1535 = vpop.permute.xlu0 %1534
      %1536 = vrot.lane.b32.xlu0 %v1530, 90
      %v1537 = vpop.permute.xlu0 %1536
      %1538 = vrot.lane.b32.xlu0 %v1531, 90
      %v1539 = vpop.permute.xlu0 %1538
      %vm1540 = vcmask 736256
      %v1541 = vsel %vm1540, %v1533, %v1535
      %v1542 = vsel %vm1540, %v1535, %v1537
      %v1543 = vsel %vm1540, %v1537, %v1539
      %v1548 = vsel %vm356, %v1515, 0
      %1550 = vmatprep.subr.bf16.mxu0 0
      %1551 = vmatpush1.bf16.msra.mxu0 0
      %1552 = vmatprep.subr.bf16.mxu0 0
      %1553 = vmatpush1.bf16.msra.mxu0 0
      %1554 = vmatprep.subr.bf16.mxu0 0
      %1555 = vmatpush1.bf16.msra.mxu0 0
      %1556 = vmatprep.subr.bf16.mxu0 0
      %1557 = vmatpush1.bf16.msra.mxu0 0
      %1558 = vmatprep.subr.bf16.mxu0 0
      %1559 = vmatpush1.bf16.msra.mxu0 0
      %1560 = vmatprep.subr.bf16.mxu0 0
      %1561 = vmatpush1.bf16.msra.mxu0 0
      %1562 = vmatprep.subr.bf16.mxu0 0
      %1563 = vmatpush1.bf16.msra.mxu0 0
      %1564 = vmatprep.subr.bf16.mxu0 %v1542
      %1565 = vmatpush1.bf16.msra.mxu0 %v1541
      %1566 = vmatprep.subr.bf16.mxu0 0
      %1567 = vmatpush2.bf16.msra.mxu0 0
      %1568 = vmatprep.subr.bf16.mxu0 0
      %1569 = vmatpush2.bf16.msra.mxu0 0
      %1570 = vmatprep.subr.bf16.mxu0 0
      %1571 = vmatpush2.bf16.msra.mxu0 0
      %1572 = vmatprep.subr.bf16.mxu0 0
      %1573 = vmatpush2.bf16.msra.mxu0 0
      %1574 = vmatprep.subr.bf16.mxu0 0
      %1575 = vmatpush2.bf16.msra.mxu0 0
      %1576 = vmatprep.subr.bf16.mxu0 0
      %1577 = vmatpush2.bf16.msra.mxu0 0
      %1578 = vmatprep.subr.bf16.mxu0 0
      %1579 = vmatpush2.bf16.msra.mxu0 0
      %1580 = vmatprep.subr.bf16.mxu0 0
      %1581 = vmatpush2.bf16.msra.mxu0 0
      %1582 = vmatprep.mubr.bf16.mxu0 0
      %1583 = vmatmul.mubr.bf16.gmra.mxu0 %v1548
      %v1584 = vpop.f32.mrf.mxu0
      %v1585 = vadd.f32 0.0, %v1584
      %v1586 = vpop.f32.mrf.mxu0
      %v1587 = vadd.f32 0.0, %v1586
      %v1588 = vpop.f32.mrf.mxu0
      %v1589 = vadd.f32 0.0, %v1588
      %v1590 = vpop.f32.mrf.mxu0
      %v1591 = vadd.f32 0.0, %v1590
      %1592 = vdwg.mxu0
      %1593 = vmatprep.subr.bf16.mxu0 0
      %1594 = vmatpush1.bf16.msra.mxu0 0
      %1595 = vmatprep.subr.bf16.mxu0 0
      %1596 = vmatpush1.bf16.msra.mxu0 0
      %1597 = vmatprep.subr.bf16.mxu0 0
      %1598 = vmatpush1.bf16.msra.mxu0 0
      %1599 = vmatprep.subr.bf16.mxu0 0
      %1600 = vmatpush1.bf16.msra.mxu0 0
      %1601 = vmatprep.subr.bf16.mxu0 0
      %1602 = vmatpush1.bf16.msra.mxu0 0
      %1603 = vmatprep.subr.bf16.mxu0 0
      %1604 = vmatpush1.bf16.msra.mxu0 0
      %1605 = vmatprep.subr.bf16.mxu0 0
      %1606 = vmatpush1.bf16.msra.mxu0 0
      %1607 = vmatprep.subr.bf16.mxu0 0
      %1608 = vmatpush1.bf16.msra.mxu0 %v1543
      %1609 = vmatprep.subr.bf16.mxu0 0
      %1610 = vmatpush2.bf16.msra.mxu0 0
      %1611 = vmatprep.subr.bf16.mxu0 0
      %1612 = vmatpush2.bf16.msra.mxu0 0
      %1613 = vmatprep.subr.bf16.mxu0 0
      %1614 = vmatpush2.bf16.msra.mxu0 0
      %1615 = vmatprep.subr.bf16.mxu0 0
      %1616 = vmatpush2.bf16.msra.mxu0 0
      %1617 = vmatprep.subr.bf16.mxu0 0
      %1618 = vmatpush2.bf16.msra.mxu0 0
      %1619 = vmatprep.subr.bf16.mxu0 0
      %1620 = vmatpush2.bf16.msra.mxu0 0
      %1621 = vmatprep.subr.bf16.mxu0 0
      %1622 = vmatpush2.bf16.msra.mxu0 0
      %1623 = vmatprep.subr.bf16.mxu0 0
      %1624 = vmatpush2.bf16.msra.mxu0 0
      %1625 = vmatprep.mubr.bf16.mxu0 0
      %1626 = vmatmul.mubr.bf16.gmra.mxu0 %v1548
      %v1627 = vpop.f32.mrf.mxu0
      %v1628 = vadd.f32 0.0, %v1627
      %v1629 = vpop.f32.mrf.mxu0
      %v1630 = vpop.f32.mrf.mxu0
      %v1631 = vadd.f32 0.0, %v1630
      %v1632 = vpop.f32.mrf.mxu0
      %1633 = vdwg.mxu0
      %v1634 = vadd.f32 %v1499, %v1585
      %v1635 = vadd.f32 %v1500, %v1587
      %v1636 = vadd.f32 %v1501, %v1628
      %v1637 = vadd.f32 %v1502, %v1589
      %v1638 = vadd.f32 %v1503, %v1591
      %v1639 = vadd.f32 %v1504, %v1631
      %1640 = vst [vmem:[%s190] sm:$0xff] %v1634
      %1641 = vst [vmem:[%s190 + $0x8] sm:$0xff] %v1635
      %1642 = vst [vmem:[%s190 + $0x10] sm:$0xff] %v1636
      %1643 = vst [vmem:[%s190 + $0x18] sm:$0xff] %v1637
      %1644 = vst [vmem:[%s190 + $0x20] sm:$0xff] %v1638
      %1645 = vst [vmem:[%s190 + $0x28] sm:$0xff] %v1639
      %p1646 = scmp.lt.s32.totalorder %s14, 1
      %s1647 = scalar_select %p1646, %s14, 1
      %s1648 = smul.addr %s1647, 6
      %s1649 = smul.addr %s1648, 8
      %s1650 = scalar_lea.vmem %s3, %s1649
      // Predicated region
      $region33: #{ffc_forward.7} parent=31 // pred_check
        %p1651 = pneg %p105
      $region34: #{ffc_forward.7} parent=31 // pred_check_branch
        %1653 = sbr.rel (%p1651) target = $region36
      $region35: #{ffc_forward.7} parent=31 // pred_region
        _
      $region36: #{ffc_forward.7} parent=31 // pred_fallthru
        _
    $region32: #{ffc_forward.7} parent=5 // pred_fallthru
      _
    %p1654 = scmp.le.s32.totalorder 2, %s9
    // Predicated region
    $region37: #{ffc_forward.7} parent=5 // pred_check
      %p1655 = pneg %p1654
    $region38: #{ffc_forward.7} parent=5 // pred_check_branch
      %1657 = sbr.rel (%p1655) target = $region40
    $region39: #{ffc_forward.7} parent=5 // pred_region
      %s1658 = ssub.s32 %s9, 2
      // Predicated region
      $region41: #{ffc_forward.7} parent=39 // pred_check
        %p1659 = pneg %p111
      $region42: #{ffc_forward.7} parent=39 // pred_check_branch
        %1661 = sbr.rel (%p1659) target = $region44
      $region43: #{ffc_forward.7} parent=39 // pred_region
        %p1662 = scmp.lt.s32.totalorder %s15, 1
        %s1663 = scalar_select %p1662, %s15, 1
        %s1664 = smul.addr %s1663, 6
        %s1665 = smul.addr %s1664, 8
        %s1666 = scalar_lea.vmem %s3, %s1665
      $region44: #{ffc_forward.7} parent=39 // pred_fallthru
        _
    $region40: #{ffc_forward.7} parent=5 // pred_fallthru
      _
  $region6: #{ffc_forward.7} parent=0 // loop_footer
    %s13 = sadd.s32 1, %s9
  $region7: #{ffc_forward.7} parent=0 // loop_footer_branch
    %8 = sbr.rel target = $region3
  $region8: #{ffc_forward.7} parent=0 // loop_exit
    _

</llo_original>
